<compile_context>
chip_gen: v6e
topology: v6e:2x2x1
jax: 0.10.0
libtpu: 0.0.40
codegen_flags: <defaults>
</compile_context>

<pallas_src>
import jax
import jax.numpy as jnp
from jax import lax
from jax.experimental import pallas as pl
from jax.experimental.pallas import tpu as pltpu

EPS = 1e-5
VMEM = pl.BlockSpec(memory_space=pltpu.MemorySpace.VMEM)


def _split_gates(gates, H):
    # Full-width EUP activations, then one slice per gate.
    sg = jax.nn.sigmoid(gates)
    tg = jnp.tanh(gates)
    return sg[:, 0:H], sg[:, H:2 * H], tg[:, 2 * H:3 * H], sg[:, 3 * H:4 * H]


# ----------------------------- Pallas kernels -----------------------------

def lstm1_fused_kernel(x_ref, wih_ref, whh_ref, b_ref,
                       cw_ref, cb_ref, g1_ref, beta1_ref, out_ref):
    """Fused: lstm1 over cond1+cond2 (stacked batch, time-major), then
    relu(condition_mlp(.)), half-average, BatchNorm1d (training stats).
    x_ref is 2D time-major: row t*B2 + b is time step t of batch row b."""
    LN, hid_dim = out_ref.shape
    B2 = 2 * LN
    T = x_ref.shape[0] // B2
    H = whh_ref.shape[0]

    # Hoisted input projection: one (T*B2, D) @ (D, 4H) matmul.
    xw = jnp.dot(x_ref[...].astype(jnp.bfloat16), wih_ref[...],
                 preferred_element_type=jnp.float32)           # (T*B2, 4H) f32
    whh = whh_ref[...]
    bias = b_ref[...]

    h = jnp.zeros((B2, H), jnp.float32)
    c = jnp.zeros((B2, H), jnp.float32)
    for t in range(T):  # T is tiny; static unroll keeps the h@whh dep chain only
        gates = (jnp.dot(h.astype(jnp.bfloat16), whh,
                         preferred_element_type=jnp.float32)
                 + xw[t * B2:(t + 1) * B2, :] + bias)
        i_g, f_g, g_g, o_g = _split_gates(gates, H)
        c = f_g * c + i_g * g_g
        h = o_g * jnp.tanh(c)

    # condition_mlp + relu on both halves in one matmul, average, BatchNorm1d.
    y = jnp.maximum(jnp.dot(h.astype(jnp.bfloat16), cw_ref[...],
                            preferred_element_type=jnp.float32) + cb_ref[...], 0.0)
    y = (y[:LN] + y[LN:]) * 0.5
    mean = jnp.mean(y, axis=0, keepdims=True)
    var = jnp.mean((y - mean) ** 2, axis=0, keepdims=True)
    out_ref[...] = (y - mean) * lax.rsqrt(var + EPS) * g1_ref[...] + beta1_ref[...]


def tree_head_kernel(cnt_ref, feat_ref, oh_ref,
                     wih_ref, whh_ref, b_ref,
                     g2_ref, b2_ref, w2_ref, bb2_ref,
                     g3_ref, b3_ref, w3_ref, bb3_ref,
                     wo_ref, bo_ref,
                     o_ref, hid, cid):
    """One grid step per tree level (processed top level L-1 -> 0).
    hid/cid persist in VMEM scratch; child gather is a one-hot matmul.
    On the last step, runs the task-1 head with BatchNorm over the first
    `count` rows only (masked statistics)."""
    step = pl.program_id(0)
    last = pl.num_programs(0) - 1
    N, H = hid.shape

    @pl.when(step == 0)
    def _():
        hid[...] = jnp.zeros_like(hid)
        cid[...] = jnp.zeros_like(cid)

    @pl.when(step > 0)
    def _():
        # (hid_left + hid_right)/2 with index 0 == zero pad row, as a matmul.
        oh = oh_ref[0]                                        # (N, N) f32
        hid[...] = jnp.dot(oh, hid[...], preferred_element_type=jnp.float32)
        cid[...] = jnp.dot(oh, cid[...], preferred_element_type=jnp.float32)

    # One lstm2 cell step on this level's features.
    gates = (jnp.dot(feat_ref[0].astype(jnp.bfloat16), wih_ref[...],
                     preferred_element_type=jnp.float32)
             + jnp.dot(hid[...].astype(jnp.bfloat16), whh_ref[...],
                       preferred_element_type=jnp.float32)
             + b_ref[...])
    i_g, f_g, g_g, o_g = _split_gates(gates, H)
    c_new = f_g * cid[...] + i_g * g_g
    cid[...] = c_new
    hid[...] = o_g * jnp.tanh(c_new)

    @pl.when(step == last)
    def _():
        count = cnt_ref[0]
        rows = lax.broadcasted_iota(jnp.int32, (N, 1), 0)
        valid = (rows < count).astype(jnp.float32)            # (N, 1)
        denom = jnp.maximum(count, 1).astype(jnp.float32)

        def masked_bn(x, gamma, beta):
            mean = jnp.sum(x * valid, axis=0, keepdims=True) / denom
            d = (x - mean) * valid
            var = jnp.sum(d * d, axis=0, keepdims=True) / denom
            return (x - mean) * lax.rsqrt(var + EPS) * gamma + beta

        x = masked_bn(hid[...], g2_ref[...], b2_ref[...])
        t = jax.nn.sigmoid(jnp.dot(x.astype(jnp.bfloat16), w2_ref[...],
                                   preferred_element_type=jnp.float32) + bb2_ref[...])
        t = masked_bn(t, g3_ref[...], b3_ref[...])
        t = jax.nn.sigmoid(jnp.dot(t.astype(jnp.bfloat16), w3_ref[...],
                                   preferred_element_type=jnp.float32) + bb3_ref[...])
        # (hid_dim -> 1) projection as VPU multiply + lane reduce (no MXU pass).
        logit = jnp.sum(t * wo_ref[...], axis=1, keepdims=True) + bo_ref[...]
        o_ref[...] = jax.nn.sigmoid(logit) * valid


# ----------------------------- parameters -----------------------------

def init_params(key, input_dim, hidden_dim, hid_dim):
    ks = jax.random.split(key, 10)

    def lin(k, din, dout, scale=0.1):
        kw, kb = jax.random.split(k)
        return (jax.random.normal(kw, (din, dout), jnp.float32) * scale,
                jax.random.normal(kb, (1, dout), jnp.float32) * scale)

    d2 = 15 + 7 + 2 + hid_dim  # lstm2 input size
    p = {}
    # LSTM weights stored transposed; bias is the combined (b_ih + b_hh).
    p['lstm1_wih'], _ = lin(ks[0], input_dim, 4 * hidden_dim)
    p['lstm1_whh'], p['lstm1_b'] = lin(ks[1], hidden_dim, 4 * hidden_dim)
    p['lstm2_wih'], _ = lin(ks[2], d2, 4 * hidden_dim)
    p['lstm2_whh'], p['lstm2_b'] = lin(ks[3], hidden_dim, 4 * hidden_dim)
    p['cond_w'], p['cond_b'] = lin(ks[4], hidden_dim, hid_dim)
    p['bn1_g'] = jnp.ones((1, hid_dim), jnp.float32)
    p['bn1_b'] = jnp.zeros((1, hid_dim), jnp.float32)
    p['bn2_g'] = jnp.ones((1, hidden_dim), jnp.float32)
    p['bn2_b'] = jnp.zeros((1, hidden_dim), jnp.float32)
    p['bn3_g'] = jnp.ones((1, hid_dim), jnp.float32)
    p['bn3_b'] = jnp.zeros((1, hid_dim), jnp.float32)
    p['h2t1_w'], p['h2t1_b'] = lin(ks[5], hidden_dim, hid_dim)
    p['h3t1_w'], p['h3t1_b'] = lin(ks[6], hid_dim, hid_dim)
    wo, bo = lin(ks[7], hid_dim, 1)
    p['o_t1_w'] = wo.T            # stored as (1, hid_dim) row vector for lane reduce
    p['o_t1_b'] = bo              # (1, 1)
    # sample_mlp (Linear(1000, hid_dim)) exists in __init__ but is unused in forward.
    return p


# ----------------------------- forward -----------------------------

@jax.jit
def representation_forward(p, operators, extra_infos, cardinalities,
                           condition1s, condition2s, mapping):
    hidden_dim = p['lstm1_whh'].shape[0]
    hid_dim = p['cond_w'].shape[1]
    L, N, C, D = condition1s.shape
    LN = L * N

    # On-device batch_size: count of leading level-0 nodes with non-zero operator
    # rows (no host sync; consumed inside the kernel via SMEM scalar prefetch).
    nonzero = (jnp.sum(operators[0], axis=1) != 0).astype(jnp.int32)   # (N,)
    cnt = jnp.sum(jnp.cumprod(nonzero)).astype(jnp.int32).reshape(1)

    # bf16 copies of matmul weights (f32 accumulation inside the kernels).
    wih1 = p['lstm1_wih'].astype(jnp.bfloat16)
    whh1 = p['lstm1_whh'].astype(jnp.bfloat16)
    cond_w = p['cond_w'].astype(jnp.bfloat16)
    wih2 = p['lstm2_wih'].astype(jnp.bfloat16)
    whh2 = p['lstm2_whh'].astype(jnp.bfloat16)
    w2 = p['h2t1_w'].astype(jnp.bfloat16)
    w3 = p['h3t1_w'].astype(jnp.bfloat16)

    # --- fused lstm1 (cond1 & cond2 stacked on batch axis) + cond MLP + BN1 ---
    x1 = condition1s.reshape(LN, C, D)
    x2 = condition2s.reshape(LN, C, D)
    xb = jnp.concatenate([x1, x2], axis=0)          # (2LN, T, D)
    x2d = jnp.transpose(xb, (1, 0, 2)).reshape(C * 2 * LN, D)   # time-major rows

    last_output = pl.pallas_call(
        lstm1_fused_kernel,
        out_shape=jax.ShapeDtypeStruct((LN, hid_dim), jnp.float32),
        in_specs=[VMEM] * 8,
        out_specs=VMEM,
    )(x2d, wih1, whh1, p['lstm1_b'], cond_w, p['cond_b'], p['bn1_g'], p['bn1_b'])

    feats = jnp.concatenate(
        (operators, extra_infos, cardinalities, last_output.reshape(L, N, hid_dim)),
        axis=2)                                      # (L, N, D2)
    D2 = feats.shape[2]

    # Precompute per-level child-gather one-hot: index 0 is the zero pad row,
    # index k>0 selects state row k-1; averaging left/right folds into 0.5.
    mp = mapping.astype(jnp.int32)
    col = jnp.arange(1, N + 1, dtype=jnp.int32)
    onehot = ((mp[..., 0:1] == col).astype(jnp.float32)
              + (mp[..., 1:2] == col).astype(jnp.float32)) * 0.5   # (L, N, N)

    lvl = lambda i, c: (L - 1 - i, 0, 0)   # grid step i processes level L-1-i
    cst = lambda i, c: (0, 0)              # weights: resident, fetched once

    grid_spec = pltpu.PrefetchScalarGridSpec(
        num_scalar_prefetch=1,
        grid=(L,),
        in_specs=[
            pl.BlockSpec((1, N, D2), lvl),               # feats, one level
            pl.BlockSpec((1, N, N), lvl),                # one-hot gather, one level
            pl.BlockSpec(wih2.shape, cst),
            pl.BlockSpec(whh2.shape, cst),
            pl.BlockSpec(p['lstm2_b'].shape, cst),
            pl.BlockSpec(p['bn2_g'].shape, cst),
            pl.BlockSpec(p['bn2_b'].shape, cst),
            pl.BlockSpec(w2.shape, cst),
            pl.BlockSpec(p['h2t1_b'].shape, cst),
            pl.BlockSpec(p['bn3_g'].shape, cst),
            pl.BlockSpec(p['bn3_b'].shape, cst),
            pl.BlockSpec(w3.shape, cst),
            pl.BlockSpec(p['h3t1_b'].shape, cst),
            pl.BlockSpec(p['o_t1_w'].shape, cst),
            pl.BlockSpec(p['o_t1_b'].shape, cst),
        ],
        out_specs=pl.BlockSpec((N, 1), lambda i, c: (0, 0)),
        scratch_shapes=[pltpu.VMEM((N, hidden_dim), jnp.float32),
                        pltpu.VMEM((N, hidden_dim), jnp.float32)],
    )

    out_task1 = pl.pallas_call(
        tree_head_kernel,
        out_shape=jax.ShapeDtypeStruct((N, 1), jnp.float32),
        grid_spec=grid_spec,
        compiler_params=pltpu.CompilerParams(dimension_semantics=("arbitrary",)),
    )(cnt, feats, onehot, wih2, whh2, p['lstm2_b'],
      p['bn2_g'], p['bn2_b'], w2, p['h2t1_b'],
      p['bn3_g'], p['bn3_b'], w3, p['h3t1_b'],
      p['o_t1_w'], p['o_t1_b'])

    # TODO(synk): PyTorch returns only the first batch_size rows; here the output
    # is fixed-shape (N, 1) with rows >= batch_size zeroed (head BN statistics are
    # still computed over the first batch_size rows only). Slice with a static
    # batch_size on the host if the torch shape is required.
    # TODO(synk): the task2 branch in the PyTorch forward is computed but its
    # result is discarded (only out_task1 is returned), so it is omitted here.
    return out_task1


# ----------------------------- demo -----------------------------

if __name__ == "__main__":
    key = jax.random.PRNGKey(0)
    L, N, C = 4, 8, 5                      # num_level, nodes_per_level, conditions_per_node
    input_dim, hidden_dim, hid_dim = 16, 32, 32

    k = jax.random.split(key, 8)
    params = init_params(k[0], input_dim, hidden_dim, hid_dim)

    # operators strictly positive so the batch_size prefix count finds all N nodes.
    operators = jnp.abs(jax.random.normal(k[1], (L, N, 15), jnp.float32)) + 0.1
    extra_infos = jax.random.normal(k[2], (L, N, 7), jnp.float32)
    cardinalities = jax.random.normal(k[3], (L, N, 2), jnp.float32)
    condition1s = jax.random.normal(k[4], (L, N, C, input_dim), jnp.float32)
    condition2s = jax.random.normal(k[5], (L, N, C, input_dim), jnp.float32)
    mapping = jax.random.randint(k[6], (L, N, 2), 0, N + 1, dtype=jnp.int32)

    out_task1 = representation_forward(params, operators, extra_infos, cardinalities,
                                       condition1s, condition2s, mapping)
    jax.block_until_ready(out_task1)
    assert out_task1.shape == (N, 1)
    assert bool(jnp.all(jnp.isfinite(out_task1)))
    print("KERNEL_OK")
</pallas_src>

<mosaic_0001>
module attributes {stable_mosaic.version = 11 : i64} {
  func.func @lstm1_fused_kernel(%arg0: memref<320x16xf32, #tpu.memory_space<vmem>>, %arg1: memref<16x128xbf16, #tpu.memory_space<vmem>>, %arg2: memref<32x128xbf16, #tpu.memory_space<vmem>>, %arg3: memref<1x128xf32, #tpu.memory_space<vmem>>, %arg4: memref<32x32xbf16, #tpu.memory_space<vmem>>, %arg5: memref<1x32xf32, #tpu.memory_space<vmem>>, %arg6: memref<1x32xf32, #tpu.memory_space<vmem>>, %arg7: memref<1x32xf32, #tpu.memory_space<vmem>>, %arg8: memref<32x32xf32, #tpu.memory_space<vmem>>) attributes {dimension_semantics = [], scalar_prefetch = 0 : i64, scratch_operands = 0 : i64, tpu.core_type = #tpu.core_type<tc>} {
    %c0 = arith.constant 0 : index
    %c0_0 = arith.constant 0 : index
    %0 = vector.load %arg0[%c0, %c0_0] : memref<320x16xf32, #tpu.memory_space<vmem>>, vector<320x16xf32>
    %1 = arith.truncf %0 : vector<320x16xf32> to vector<320x16xbf16>
    %c0_1 = arith.constant 0 : index
    %c0_2 = arith.constant 0 : index
    %2 = vector.load %arg1[%c0_1, %c0_2] : memref<16x128xbf16, #tpu.memory_space<vmem>>, vector<16x128xbf16>
    %cst = arith.constant dense<0.000000e+00> : vector<320x128xf32>
    %3 = tpu.matmul %1, %2, %cst {dimension_numbers = #tpu.dot_dimension_numbers<[1], [0], [0], [1], [0, 0, 1, 1], [], []>} : vector<320x16xbf16>, vector<16x128xbf16>, vector<320x128xf32> -> vector<320x128xf32>
    %c0_3 = arith.constant 0 : index
    %c0_4 = arith.constant 0 : index
    %4 = vector.load %arg2[%c0_3, %c0_4] : memref<32x128xbf16, #tpu.memory_space<vmem>>, vector<32x128xbf16>
    %c0_5 = arith.constant 0 : index
    %c0_6 = arith.constant 0 : index
    %5 = vector.load %arg3[%c0_5, %c0_6] : memref<1x128xf32, #tpu.memory_space<vmem>>, vector<1x128xf32>
    %cst_7 = arith.constant 0.000000e+00 : f32
    %6 = vector.broadcast %cst_7 : f32 to vector<64x32xf32>
    %cst_8 = arith.constant 0.000000e+00 : f32
    %7 = vector.broadcast %cst_8 : f32 to vector<64x32xf32>
    %8 = arith.truncf %6 : vector<64x32xf32> to vector<64x32xbf16>
    %cst_9 = arith.constant dense<0.000000e+00> : vector<64x128xf32>
    %9 = tpu.matmul %8, %4, %cst_9 {dimension_numbers = #tpu.dot_dimension_numbers<[1], [0], [0], [1], [0, 0, 1, 1], [], []>} : vector<64x32xbf16>, vector<32x128xbf16>, vector<64x128xf32> -> vector<64x128xf32>
    %10 = vector.extract_strided_slice %3 {offsets = [0, 0], sizes = [64, 128], strides = [1, 1]} : vector<320x128xf32> to vector<64x128xf32>
    %11 = arith.addf %9, %10 : vector<64x128xf32>
    %12 = vector.broadcast %5 : vector<1x128xf32> to vector<64x128xf32>
    %13 = arith.addf %11, %12 : vector<64x128xf32>
    %14 = arith.negf %13 : vector<64x128xf32>
    %15 = math.exp %14 : vector<64x128xf32>
    %cst_10 = arith.constant 1.000000e+00 : f32
    %16 = vector.broadcast %cst_10 : f32 to vector<64x128xf32>
    %17 = arith.addf %16, %15 : vector<64x128xf32>
    %18 = arith.divf %16, %17 : vector<64x128xf32>
    %19 = math.tanh %13 : vector<64x128xf32>
    %20 = vector.extract_strided_slice %18 {offsets = [0, 0], sizes = [64, 32], strides = [1, 1]} : vector<64x128xf32> to vector<64x32xf32>
    %21 = vector.extract_strided_slice %18 {offsets = [0, 32], sizes = [64, 32], strides = [1, 1]} : vector<64x128xf32> to vector<64x32xf32>
    %22 = vector.extract_strided_slice %19 {offsets = [0, 64], sizes = [64, 32], strides = [1, 1]} : vector<64x128xf32> to vector<64x32xf32>
    %23 = vector.extract_strided_slice %18 {offsets = [0, 96], sizes = [64, 32], strides = [1, 1]} : vector<64x128xf32> to vector<64x32xf32>
    %24 = arith.mulf %21, %7 : vector<64x32xf32>
    %25 = arith.mulf %20, %22 : vector<64x32xf32>
    %26 = arith.addf %24, %25 : vector<64x32xf32>
    %27 = math.tanh %26 : vector<64x32xf32>
    %28 = arith.mulf %23, %27 : vector<64x32xf32>
    %29 = arith.truncf %28 : vector<64x32xf32> to vector<64x32xbf16>
    %cst_11 = arith.constant dense<0.000000e+00> : vector<64x128xf32>
    %30 = tpu.matmul %29, %4, %cst_11 {dimension_numbers = #tpu.dot_dimension_numbers<[1], [0], [0], [1], [0, 0, 1, 1], [], []>} : vector<64x32xbf16>, vector<32x128xbf16>, vector<64x128xf32> -> vector<64x128xf32>
    %31 = vector.extract_strided_slice %3 {offsets = [64, 0], sizes = [64, 128], strides = [1, 1]} : vector<320x128xf32> to vector<64x128xf32>
    %32 = arith.addf %30, %31 : vector<64x128xf32>
    %33 = vector.broadcast %5 : vector<1x128xf32> to vector<64x128xf32>
    %34 = arith.addf %32, %33 : vector<64x128xf32>
    %35 = arith.negf %34 : vector<64x128xf32>
    %36 = math.exp %35 : vector<64x128xf32>
    %cst_12 = arith.constant 1.000000e+00 : f32
    %37 = vector.broadcast %cst_12 : f32 to vector<64x128xf32>
    %38 = arith.addf %37, %36 : vector<64x128xf32>
    %39 = arith.divf %37, %38 : vector<64x128xf32>
    %40 = math.tanh %34 : vector<64x128xf32>
    %41 = vector.extract_strided_slice %39 {offsets = [0, 0], sizes = [64, 32], strides = [1, 1]} : vector<64x128xf32> to vector<64x32xf32>
    %42 = vector.extract_strided_slice %39 {offsets = [0, 32], sizes = [64, 32], strides = [1, 1]} : vector<64x128xf32> to vector<64x32xf32>
    %43 = vector.extract_strided_slice %40 {offsets = [0, 64], sizes = [64, 32], strides = [1, 1]} : vector<64x128xf32> to vector<64x32xf32>
    %44 = vector.extract_strided_slice %39 {offsets = [0, 96], sizes = [64, 32], strides = [1, 1]} : vector<64x128xf32> to vector<64x32xf32>
    %45 = arith.mulf %42, %26 : vector<64x32xf32>
    %46 = arith.mulf %41, %43 : vector<64x32xf32>
    %47 = arith.addf %45, %46 : vector<64x32xf32>
    %48 = math.tanh %47 : vector<64x32xf32>
    %49 = arith.mulf %44, %48 : vector<64x32xf32>
    %50 = arith.truncf %49 : vector<64x32xf32> to vector<64x32xbf16>
    %cst_13 = arith.constant dense<0.000000e+00> : vector<64x128xf32>
    %51 = tpu.matmul %50, %4, %cst_13 {dimension_numbers = #tpu.dot_dimension_numbers<[1], [0], [0], [1], [0, 0, 1, 1], [], []>} : vector<64x32xbf16>, vector<32x128xbf16>, vector<64x128xf32> -> vector<64x128xf32>
    %52 = vector.extract_strided_slice %3 {offsets = [128, 0], sizes = [64, 128], strides = [1, 1]} : vector<320x128xf32> to vector<64x128xf32>
    %53 = arith.addf %51, %52 : vector<64x128xf32>
    %54 = vector.broadcast %5 : vector<1x128xf32> to vector<64x128xf32>
    %55 = arith.addf %53, %54 : vector<64x128xf32>
    %56 = arith.negf %55 : vector<64x128xf32>
    %57 = math.exp %56 : vector<64x128xf32>
    %cst_14 = arith.constant 1.000000e+00 : f32
    %58 = vector.broadcast %cst_14 : f32 to vector<64x128xf32>
    %59 = arith.addf %58, %57 : vector<64x128xf32>
    %60 = arith.divf %58, %59 : vector<64x128xf32>
    %61 = math.tanh %55 : vector<64x128xf32>
    %62 = vector.extract_strided_slice %60 {offsets = [0, 0], sizes = [64, 32], strides = [1, 1]} : vector<64x128xf32> to vector<64x32xf32>
    %63 = vector.extract_strided_slice %60 {offsets = [0, 32], sizes = [64, 32], strides = [1, 1]} : vector<64x128xf32> to vector<64x32xf32>
    %64 = vector.extract_strided_slice %61 {offsets = [0, 64], sizes = [64, 32], strides = [1, 1]} : vector<64x128xf32> to vector<64x32xf32>
    %65 = vector.extract_strided_slice %60 {offsets = [0, 96], sizes = [64, 32], strides = [1, 1]} : vector<64x128xf32> to vector<64x32xf32>
    %66 = arith.mulf %63, %47 : vector<64x32xf32>
    %67 = arith.mulf %62, %64 : vector<64x32xf32>
    %68 = arith.addf %66, %67 : vector<64x32xf32>
    %69 = math.tanh %68 : vector<64x32xf32>
    %70 = arith.mulf %65, %69 : vector<64x32xf32>
    %71 = arith.truncf %70 : vector<64x32xf32> to vector<64x32xbf16>
    %cst_15 = arith.constant dense<0.000000e+00> : vector<64x128xf32>
    %72 = tpu.matmul %71, %4, %cst_15 {dimension_numbers = #tpu.dot_dimension_numbers<[1], [0], [0], [1], [0, 0, 1, 1], [], []>} : vector<64x32xbf16>, vector<32x128xbf16>, vector<64x128xf32> -> vector<64x128xf32>
    %73 = vector.extract_strided_slice %3 {offsets = [192, 0], sizes = [64, 128], strides = [1, 1]} : vector<320x128xf32> to vector<64x128xf32>
    %74 = arith.addf %72, %73 : vector<64x128xf32>
    %75 = vector.broadcast %5 : vector<1x128xf32> to vector<64x128xf32>
    %76 = arith.addf %74, %75 : vector<64x128xf32>
    %77 = arith.negf %76 : vector<64x128xf32>
    %78 = math.exp %77 : vector<64x128xf32>
    %cst_16 = arith.constant 1.000000e+00 : f32
    %79 = vector.broadcast %cst_16 : f32 to vector<64x128xf32>
    %80 = arith.addf %79, %78 : vector<64x128xf32>
    %81 = arith.divf %79, %80 : vector<64x128xf32>
    %82 = math.tanh %76 : vector<64x128xf32>
    %83 = vector.extract_strided_slice %81 {offsets = [0, 0], sizes = [64, 32], strides = [1, 1]} : vector<64x128xf32> to vector<64x32xf32>
    %84 = vector.extract_strided_slice %81 {offsets = [0, 32], sizes = [64, 32], strides = [1, 1]} : vector<64x128xf32> to vector<64x32xf32>
    %85 = vector.extract_strided_slice %82 {offsets = [0, 64], sizes = [64, 32], strides = [1, 1]} : vector<64x128xf32> to vector<64x32xf32>
    %86 = vector.extract_strided_slice %81 {offsets = [0, 96], sizes = [64, 32], strides = [1, 1]} : vector<64x128xf32> to vector<64x32xf32>
    %87 = arith.mulf %84, %68 : vector<64x32xf32>
    %88 = arith.mulf %83, %85 : vector<64x32xf32>
    %89 = arith.addf %87, %88 : vector<64x32xf32>
    %90 = math.tanh %89 : vector<64x32xf32>
    %91 = arith.mulf %86, %90 : vector<64x32xf32>
    %92 = arith.truncf %91 : vector<64x32xf32> to vector<64x32xbf16>
    %cst_17 = arith.constant dense<0.000000e+00> : vector<64x128xf32>
    %93 = tpu.matmul %92, %4, %cst_17 {dimension_numbers = #tpu.dot_dimension_numbers<[1], [0], [0], [1], [0, 0, 1, 1], [], []>} : vector<64x32xbf16>, vector<32x128xbf16>, vector<64x128xf32> -> vector<64x128xf32>
    %94 = vector.extract_strided_slice %3 {offsets = [256, 0], sizes = [64, 128], strides = [1, 1]} : vector<320x128xf32> to vector<64x128xf32>
    %95 = arith.addf %93, %94 : vector<64x128xf32>
    %96 = vector.broadcast %5 : vector<1x128xf32> to vector<64x128xf32>
    %97 = arith.addf %95, %96 : vector<64x128xf32>
    %98 = arith.negf %97 : vector<64x128xf32>
    %99 = math.exp %98 : vector<64x128xf32>
    %cst_18 = arith.constant 1.000000e+00 : f32
    %100 = vector.broadcast %cst_18 : f32 to vector<64x128xf32>
    %101 = arith.addf %100, %99 : vector<64x128xf32>
    %102 = arith.divf %100, %101 : vector<64x128xf32>
    %103 = math.tanh %97 : vector<64x128xf32>
    %104 = vector.extract_strided_slice %102 {offsets = [0, 0], sizes = [64, 32], strides = [1, 1]} : vector<64x128xf32> to vector<64x32xf32>
    %105 = vector.extract_strided_slice %102 {offsets = [0, 32], sizes = [64, 32], strides = [1, 1]} : vector<64x128xf32> to vector<64x32xf32>
    %106 = vector.extract_strided_slice %103 {offsets = [0, 64], sizes = [64, 32], strides = [1, 1]} : vector<64x128xf32> to vector<64x32xf32>
    %107 = vector.extract_strided_slice %102 {offsets = [0, 96], sizes = [64, 32], strides = [1, 1]} : vector<64x128xf32> to vector<64x32xf32>
    %108 = arith.mulf %105, %89 : vector<64x32xf32>
    %109 = arith.mulf %104, %106 : vector<64x32xf32>
    %110 = arith.addf %108, %109 : vector<64x32xf32>
    %111 = math.tanh %110 : vector<64x32xf32>
    %112 = arith.mulf %107, %111 : vector<64x32xf32>
    %113 = arith.truncf %112 : vector<64x32xf32> to vector<64x32xbf16>
    %c0_19 = arith.constant 0 : index
    %c0_20 = arith.constant 0 : index
    %114 = vector.load %arg4[%c0_19, %c0_20] : memref<32x32xbf16, #tpu.memory_space<vmem>>, vector<32x32xbf16>
    %cst_21 = arith.constant dense<0.000000e+00> : vector<64x32xf32>
    %115 = tpu.matmul %113, %114, %cst_21 {dimension_numbers = #tpu.dot_dimension_numbers<[1], [0], [0], [1], [0, 0, 1, 1], [], []>} : vector<64x32xbf16>, vector<32x32xbf16>, vector<64x32xf32> -> vector<64x32xf32>
    %c0_22 = arith.constant 0 : index
    %c0_23 = arith.constant 0 : index
    %116 = vector.load %arg5[%c0_22, %c0_23] : memref<1x32xf32, #tpu.memory_space<vmem>>, vector<1x32xf32>
    %117 = vector.broadcast %116 : vector<1x32xf32> to vector<64x32xf32>
    %118 = arith.addf %115, %117 : vector<64x32xf32>
    %cst_24 = arith.constant 0.000000e+00 : f32
    %119 = vector.broadcast %cst_24 : f32 to vector<64x32xf32>
    %120 = arith.maximumf %118, %119 : vector<64x32xf32>
    %121 = vector.extract_strided_slice %120 {offsets = [0, 0], sizes = [32, 32], strides = [1, 1]} : vector<64x32xf32> to vector<32x32xf32>
    %122 = vector.extract_strided_slice %120 {offsets = [32, 0], sizes = [32, 32], strides = [1, 1]} : vector<64x32xf32> to vector<32x32xf32>
    %123 = arith.addf %121, %122 : vector<32x32xf32>
    %cst_25 = arith.constant 5.000000e-01 : f32
    %124 = vector.broadcast %cst_25 : f32 to vector<32x32xf32>
    %125 = arith.mulf %123, %124 : vector<32x32xf32>
    %cst_26 = arith.constant dense<0.000000e+00> : vector<32xf32>
    %126 = vector.multi_reduction <add>, %125, %cst_26 [0] : vector<32x32xf32> to vector<32xf32>
    %127 = vector.shape_cast %126 : vector<32xf32> to vector<1x32xf32>
    %cst_27 = arith.constant 3.200000e+01 : f32
    %128 = vector.broadcast %cst_27 : f32 to vector<1x32xf32>
    %129 = arith.divf %127, %128 : vector<1x32xf32>
    %130 = vector.broadcast %129 : vector<1x32xf32> to vector<32x32xf32>
    %131 = arith.subf %125, %130 : vector<32x32xf32>
    %132 = arith.mulf %131, %131 : vector<32x32xf32>
    %cst_28 = arith.constant dense<0.000000e+00> : vector<32xf32>
    %133 = vector.multi_reduction <add>, %132, %cst_28 [0] : vector<32x32xf32> to vector<32xf32>
    %134 = vector.shape_cast %133 : vector<32xf32> to vector<1x32xf32>
    %cst_29 = arith.constant 3.200000e+01 : f32
    %135 = vector.broadcast %cst_29 : f32 to vector<1x32xf32>
    %136 = arith.divf %134, %135 : vector<1x32xf32>
    %137 = vector.broadcast %129 : vector<1x32xf32> to vector<32x32xf32>
    %138 = arith.subf %125, %137 : vector<32x32xf32>
    %cst_30 = arith.constant 9.99999974E-6 : f32
    %139 = vector.broadcast %cst_30 : f32 to vector<1x32xf32>
    %140 = arith.addf %136, %139 : vector<1x32xf32>
    %141 = math.rsqrt %140 : vector<1x32xf32>
    %142 = vector.broadcast %141 : vector<1x32xf32> to vector<32x32xf32>
    %143 = arith.mulf %138, %142 : vector<32x32xf32>
    %c0_31 = arith.constant 0 : index
    %c0_32 = arith.constant 0 : index
    %144 = vector.load %arg6[%c0_31, %c0_32] : memref<1x32xf32, #tpu.memory_space<vmem>>, vector<1x32xf32>
    %145 = vector.broadcast %144 : vector<1x32xf32> to vector<32x32xf32>
    %146 = arith.mulf %143, %145 : vector<32x32xf32>
    %c0_33 = arith.constant 0 : index
    %c0_34 = arith.constant 0 : index
    %147 = vector.load %arg7[%c0_33, %c0_34] : memref<1x32xf32, #tpu.memory_space<vmem>>, vector<1x32xf32>
    %148 = vector.broadcast %147 : vector<1x32xf32> to vector<32x32xf32>
    %149 = arith.addf %146, %148 : vector<32x32xf32>
    %c0_35 = arith.constant 0 : index
    %c0_36 = arith.constant 0 : index
    %150 = vector.load %arg8[%c0_35, %c0_36] : memref<32x32xf32, #tpu.memory_space<vmem>>, vector<32x32xf32>
    tpu.vector_store %arg8[%c0_35, %c0_36], %149 {strides = array<i32>} : memref<32x32xf32, #tpu.memory_space<vmem>>, vector<32x32xf32>,
    return
  }
}

module attributes {stable_mosaic.version = 11 : i64} {
  func.func @tree_head_kernel(%arg0: i32, %arg1: memref<1xi32, #tpu.memory_space<smem>>, %arg2: memref<1x8x56xf32, #tpu.memory_space<vmem>>, %arg3: memref<1x8x8xf32, #tpu.memory_space<vmem>>, %arg4: memref<56x128xbf16, #tpu.memory_space<vmem>>, %arg5: memref<32x128xbf16, #tpu.memory_space<vmem>>, %arg6: memref<1x128xf32, #tpu.memory_space<vmem>>, %arg7: memref<1x32xf32, #tpu.memory_space<vmem>>, %arg8: memref<1x32xf32, #tpu.memory_space<vmem>>, %arg9: memref<32x32xbf16, #tpu.memory_space<vmem>>, %arg10: memref<1x32xf32, #tpu.memory_space<vmem>>, %arg11: memref<1x32xf32, #tpu.memory_space<vmem>>, %arg12: memref<1x32xf32, #tpu.memory_space<vmem>>, %arg13: memref<32x32xbf16, #tpu.memory_space<vmem>>, %arg14: memref<1x32xf32, #tpu.memory_space<vmem>>, %arg15: memref<1x32xf32, #tpu.memory_space<vmem>>, %arg16: memref<1x1xf32, #tpu.memory_space<vmem>>, %arg17: memref<8x1xf32, #tpu.memory_space<vmem>>, %arg18: memref<8x32xf32, #tpu.memory_space<vmem>>, %arg19: memref<8x32xf32, #tpu.memory_space<vmem>>) attributes {dimension_semantics = [#tpu.dimension_semantics<arbitrary>], iteration_bounds = array<i64: 4>, scalar_prefetch = 1 : i64, scratch_operands = 2 : i64, tpu.core_type = #tpu.core_type<tc>, window_params = [{transform_indices = @transform_0, window_bounds = array<i64: 1, 8, 56>}, {transform_indices = @transform_1, window_bounds = array<i64: 1, 8, 8>}, {pipeline_mode = #tpu.pipeline_mode<synchronous>, transform_indices = @transform_2, window_bounds = array<i64: 56, 128>}, {pipeline_mode = #tpu.pipeline_mode<synchronous>, transform_indices = @transform_3, window_bounds = array<i64: 32, 128>}, {pipeline_mode = #tpu.pipeline_mode<synchronous>, transform_indices = @transform_4, window_bounds = array<i64: 1, 128>}, {pipeline_mode = #tpu.pipeline_mode<synchronous>, transform_indices = @transform_5, window_bounds = array<i64: 1, 32>}, {pipeline_mode = #tpu.pipeline_mode<synchronous>, transform_indices = @transform_6, window_bounds = array<i64: 1, 32>}, {pipeline_mode = #tpu.pipeline_mode<synchronous>, transform_indices = @transform_7, window_bounds = array<i64: 32, 32>}, {pipeline_mode = #tpu.pipeline_mode<synchronous>, transform_indices = @transform_8, window_bounds = array<i64: 1, 32>}, {pipeline_mode = #tpu.pipeline_mode<synchronous>, transform_indices = @transform_9, window_bounds = array<i64: 1, 32>}, {pipeline_mode = #tpu.pipeline_mode<synchronous>, transform_indices = @transform_10, window_bounds = array<i64: 1, 32>}, {pipeline_mode = #tpu.pipeline_mode<synchronous>, transform_indices = @transform_11, window_bounds = array<i64: 32, 32>}, {pipeline_mode = #tpu.pipeline_mode<synchronous>, transform_indices = @transform_12, window_bounds = array<i64: 1, 32>}, {pipeline_mode = #tpu.pipeline_mode<synchronous>, transform_indices = @transform_13, window_bounds = array<i64: 1, 32>}, {pipeline_mode = #tpu.pipeline_mode<synchronous>, transform_indices = @transform_14, window_bounds = array<i64: 1, 1>}, {pipeline_mode = #tpu.pipeline_mode<synchronous>, transform_indices = @transform_15, window_bounds = array<i64: 8, 1>}]} {
    %c0_i32 = arith.constant 0 : i32
    %0 = arith.cmpi eq, %arg0, %c0_i32 : i32
    %1 = arith.extui %0 : i1 to i32
    %c0_i32_0 = arith.constant 0 : i32
    %2 = arith.cmpi ne, %1, %c0_i32_0 : i32
    scf.if %2 {
      %cst_22 = arith.constant 0.000000e+00 : f32
      %40 = vector.broadcast %cst_22 : f32 to vector<8x32xf32>
      %c0_23 = arith.constant 0 : index
      %c0_24 = arith.constant 0 : index
      %41 = vector.load %arg18[%c0_23, %c0_24] : memref<8x32xf32, #tpu.memory_space<vmem>>, vector<8x32xf32>
      tpu.vector_store %arg18[%c0_23, %c0_24], %40 {strides = array<i32>} : memref<8x32xf32, #tpu.memory_space<vmem>>, vector<8x32xf32>,
      %cst_25 = arith.constant 0.000000e+00 : f32
      %42 = vector.broadcast %cst_25 : f32 to vector<8x32xf32>
      %c0_26 = arith.constant 0 : index
      %c0_27 = arith.constant 0 : index
      %43 = vector.load %arg19[%c0_26, %c0_27] : memref<8x32xf32, #tpu.memory_space<vmem>>, vector<8x32xf32>
      tpu.vector_store %arg19[%c0_26, %c0_27], %42 {strides = array<i32>} : memref<8x32xf32, #tpu.memory_space<vmem>>, vector<8x32xf32>,
    } else {
    }
    %c0_i32_1 = arith.constant 0 : i32
    %3 = arith.cmpi sgt, %arg0, %c0_i32_1 : i32
    %4 = arith.extui %3 : i1 to i32
    %c0_i32_2 = arith.constant 0 : i32
    %5 = arith.cmpi ne, %4, %c0_i32_2 : i32
    scf.if %5 {
      %c0_22 = arith.constant 0 : index
      %c0_23 = arith.constant 0 : index
      %c0_24 = arith.constant 0 : index
      %40 = vector.load %arg3[%c0_22, %c0_23, %c0_24] : memref<1x8x8xf32, #tpu.memory_space<vmem>>, vector<1x8x8xf32>
      %41 = vector.shape_cast %40 : vector<1x8x8xf32> to vector<8x8xf32>
      %c0_25 = arith.constant 0 : index
      %c0_26 = arith.constant 0 : index
      %42 = vector.load %arg18[%c0_25, %c0_26] : memref<8x32xf32, #tpu.memory_space<vmem>>, vector<8x32xf32>
      %cst_27 = arith.constant dense<0.000000e+00> : vector<8x32xf32>
      %43 = tpu.matmul %41, %42, %cst_27 {dimension_numbers = #tpu.dot_dimension_numbers<[1], [0], [0], [1], [0, 0, 1, 1], [], []>} : vector<8x8xf32>, vector<8x32xf32>, vector<8x32xf32> -> vector<8x32xf32>
      %c0_28 = arith.constant 0 : index
      %c0_29 = arith.constant 0 : index
      %44 = vector.load %arg18[%c0_28, %c0_29] : memref<8x32xf32, #tpu.memory_space<vmem>>, vector<8x32xf32>
      tpu.vector_store %arg18[%c0_28, %c0_29], %43 {strides = array<i32>} : memref<8x32xf32, #tpu.memory_space<vmem>>, vector<8x32xf32>,
      %c0_30 = arith.constant 0 : index
      %c0_31 = arith.constant 0 : index
      %45 = vector.load %arg19[%c0_30, %c0_31] : memref<8x32xf32, #tpu.memory_space<vmem>>, vector<8x32xf32>
      %cst_32 = arith.constant dense<0.000000e+00> : vector<8x32xf32>
      %46 = tpu.matmul %41, %45, %cst_32 {dimension_numbers = #tpu.dot_dimension_numbers<[1], [0], [0], [1], [0, 0, 1, 1], [], []>} : vector<8x8xf32>, vector<8x32xf32>, vector<8x32xf32> -> vector<8x32xf32>
      %c0_33 = arith.constant 0 : index
      %c0_34 = arith.constant 0 : index
      %47 = vector.load %arg19[%c0_33, %c0_34] : memref<8x32xf32, #tpu.memory_space<vmem>>, vector<8x32xf32>
      tpu.vector_store %arg19[%c0_33, %c0_34], %46 {strides = array<i32>} : memref<8x32xf32, #tpu.memory_space<vmem>>, vector<8x32xf32>,
    } else {
    }
    %c0 = arith.constant 0 : index
    %c0_3 = arith.constant 0 : index
    %c0_4 = arith.constant 0 : index
    %6 = vector.load %arg2[%c0, %c0_3, %c0_4] : memref<1x8x56xf32, #tpu.memory_space<vmem>>, vector<1x8x56xf32>
    %7 = vector.shape_cast %6 : vector<1x8x56xf32> to vector<8x56xf32>
    %8 = arith.truncf %7 : vector<8x56xf32> to vector<8x56xbf16>
    %c0_5 = arith.constant 0 : index
    %c0_6 = arith.constant 0 : index
    %9 = vector.load %arg4[%c0_5, %c0_6] : memref<56x128xbf16, #tpu.memory_space<vmem>>, vector<56x128xbf16>
    %cst = arith.constant dense<0.000000e+00> : vector<8x128xf32>
    %10 = tpu.matmul %8, %9, %cst {dimension_numbers = #tpu.dot_dimension_numbers<[1], [0], [0], [1], [0, 0, 1, 1], [], []>} : vector<8x56xbf16>, vector<56x128xbf16>, vector<8x128xf32> -> vector<8x128xf32>
    %c0_7 = arith.constant 0 : index
    %c0_8 = arith.constant 0 : index
    %11 = vector.load %arg18[%c0_7, %c0_8] : memref<8x32xf32, #tpu.memory_space<vmem>>, vector<8x32xf32>
    %12 = arith.truncf %11 : vector<8x32xf32> to vector<8x32xbf16>
    %c0_9 = arith.constant 0 : index
    %c0_10 = arith.constant 0 : index
    %13 = vector.load %arg5[%c0_9, %c0_10] : memref<32x128xbf16, #tpu.memory_space<vmem>>, vector<32x128xbf16>
    %cst_11 = arith.constant dense<0.000000e+00> : vector<8x128xf32>
    %14 = tpu.matmul %12, %13, %cst_11 {dimension_numbers = #tpu.dot_dimension_numbers<[1], [0], [0], [1], [0, 0, 1, 1], [], []>} : vector<8x32xbf16>, vector<32x128xbf16>, vector<8x128xf32> -> vector<8x128xf32>
    %15 = arith.addf %10, %14 : vector<8x128xf32>
    %c0_12 = arith.constant 0 : index
    %c0_13 = arith.constant 0 : index
    %16 = vector.load %arg6[%c0_12, %c0_13] : memref<1x128xf32, #tpu.memory_space<vmem>>, vector<1x128xf32>
    %17 = vector.broadcast %16 : vector<1x128xf32> to vector<8x128xf32>
    %18 = arith.addf %15, %17 : vector<8x128xf32>
    %19 = arith.negf %18 : vector<8x128xf32>
    %20 = math.exp %19 : vector<8x128xf32>
    %cst_14 = arith.constant 1.000000e+00 : f32
    %21 = vector.broadcast %cst_14 : f32 to vector<8x128xf32>
    %22 = arith.addf %21, %20 : vector<8x128xf32>
    %23 = arith.divf %21, %22 : vector<8x128xf32>
    %24 = math.tanh %18 : vector<8x128xf32>
    %25 = vector.extract_strided_slice %23 {offsets = [0, 0], sizes = [8, 32], strides = [1, 1]} : vector<8x128xf32> to vector<8x32xf32>
    %26 = vector.extract_strided_slice %23 {offsets = [0, 32], sizes = [8, 32], strides = [1, 1]} : vector<8x128xf32> to vector<8x32xf32>
    %27 = vector.extract_strided_slice %24 {offsets = [0, 64], sizes = [8, 32], strides = [1, 1]} : vector<8x128xf32> to vector<8x32xf32>
    %28 = vector.extract_strided_slice %23 {offsets = [0, 96], sizes = [8, 32], strides = [1, 1]} : vector<8x128xf32> to vector<8x32xf32>
    %c0_15 = arith.constant 0 : index
    %c0_16 = arith.constant 0 : index
    %29 = vector.load %arg19[%c0_15, %c0_16] : memref<8x32xf32, #tpu.memory_space<vmem>>, vector<8x32xf32>
    %30 = arith.mulf %26, %29 : vector<8x32xf32>
    %31 = arith.mulf %25, %27 : vector<8x32xf32>
    %32 = arith.addf %30, %31 : vector<8x32xf32>
    %c0_17 = arith.constant 0 : index
    %c0_18 = arith.constant 0 : index
    %33 = vector.load %arg19[%c0_17, %c0_18] : memref<8x32xf32, #tpu.memory_space<vmem>>, vector<8x32xf32>
    tpu.vector_store %arg19[%c0_17, %c0_18], %32 {strides = array<i32>} : memref<8x32xf32, #tpu.memory_space<vmem>>, vector<8x32xf32>,
    %34 = math.tanh %32 : vector<8x32xf32>
    %35 = arith.mulf %28, %34 : vector<8x32xf32>
    %c0_19 = arith.constant 0 : index
    %c0_20 = arith.constant 0 : index
    %36 = vector.load %arg18[%c0_19, %c0_20] : memref<8x32xf32, #tpu.memory_space<vmem>>, vector<8x32xf32>
    tpu.vector_store %arg18[%c0_19, %c0_20], %35 {strides = array<i32>} : memref<8x32xf32, #tpu.memory_space<vmem>>, vector<8x32xf32>,
    %c3_i32 = arith.constant 3 : i32
    %37 = arith.cmpi eq, %arg0, %c3_i32 : i32
    %38 = arith.extui %37 : i1 to i32
    %c0_i32_21 = arith.constant 0 : i32
    %39 = arith.cmpi ne, %38, %c0_i32_21 : i32
    scf.if %39 {
      %c0_22 = arith.constant 0 : index
      %40 = memref.load %arg1[%c0_22] : memref<1xi32, #tpu.memory_space<smem>>
      %41 = tpu.iota {dimensions = array<i32: 0>} : vector<8x1xi32>
      %42 = vector.broadcast %40 : i32 to vector<8x1xi32>
      %43 = arith.cmpi slt, %41, %42 : vector<8x1xi32>
      %44 = arith.extui %43 : vector<8x1xi1> to vector<8x1xi32>
      %45 = arith.sitofp %44 : vector<8x1xi32> to vector<8x1xf32>
      %c1_i32 = arith.constant 1 : i32
      %46 = arith.maxsi %40, %c1_i32 : i32
      %47 = arith.sitofp %46 : i32 to f32
      %c0_23 = arith.constant 0 : index
      %c0_24 = arith.constant 0 : index
      %48 = vector.load %arg18[%c0_23, %c0_24] : memref<8x32xf32, #tpu.memory_space<vmem>>, vector<8x32xf32>
      %c0_25 = arith.constant 0 : index
      %c0_26 = arith.constant 0 : index
      %49 = vector.load %arg7[%c0_25, %c0_26] : memref<1x32xf32, #tpu.memory_space<vmem>>, vector<1x32xf32>
      %c0_27 = arith.constant 0 : index
      %c0_28 = arith.constant 0 : index
      %50 = vector.load %arg8[%c0_27, %c0_28] : memref<1x32xf32, #tpu.memory_space<vmem>>, vector<1x32xf32>
      %51 = vector.broadcast %45 : vector<8x1xf32> to vector<8x32xf32>
      %52 = arith.mulf %48, %51 : vector<8x32xf32>
      %cst_29 = arith.constant dense<0.000000e+00> : vector<32xf32>
      %53 = vector.multi_reduction <add>, %52, %cst_29 [0] : vector<8x32xf32> to vector<32xf32>
      %54 = vector.shape_cast %53 : vector<32xf32> to vector<1x32xf32>
      %55 = vector.broadcast %47 : f32 to vector<1x32xf32>
      %56 = arith.divf %54, %55 : vector<1x32xf32>
      %57 = vector.broadcast %56 : vector<1x32xf32> to vector<8x32xf32>
      %58 = arith.subf %48, %57 : vector<8x32xf32>
      %59 = vector.broadcast %45 : vector<8x1xf32> to vector<8x32xf32>
      %60 = arith.mulf %58, %59 : vector<8x32xf32>
      %61 = arith.mulf %60, %60 : vector<8x32xf32>
      %cst_30 = arith.constant dense<0.000000e+00> : vector<32xf32>
      %62 = vector.multi_reduction <add>, %61, %cst_30 [0] : vector<8x32xf32> to vector<32xf32>
      %63 = vector.shape_cast %62 : vector<32xf32> to vector<1x32xf32>
      %64 = vector.broadcast %47 : f32 to vector<1x32xf32>
      %65 = arith.divf %63, %64 : vector<1x32xf32>
      %66 = vector.broadcast %56 : vector<1x32xf32> to vector<8x32xf32>
      %67 = arith.subf %48, %66 : vector<8x32xf32>
      %cst_31 = arith.constant 9.99999974E-6 : f32
      %68 = vector.broadcast %cst_31 : f32 to vector<1x32xf32>
      %69 = arith.addf %65, %68 : vector<1x32xf32>
      %70 = math.rsqrt %69 : vector<1x32xf32>
      %71 = vector.broadcast %70 : vector<1x32xf32> to vector<8x32xf32>
      %72 = arith.mulf %67, %71 : vector<8x32xf32>
      %73 = vector.broadcast %49 : vector<1x32xf32> to vector<8x32xf32>
      %74 = arith.mulf %72, %73 : vector<8x32xf32>
      %75 = vector.broadcast %50 : vector<1x32xf32> to vector<8x32xf32>
      %76 = arith.addf %74, %75 : vector<8x32xf32>
      %77 = arith.truncf %76 : vector<8x32xf32> to vector<8x32xbf16>
      %c0_32 = arith.constant 0 : index
      %c0_33 = arith.constant 0 : index
      %78 = vector.load %arg9[%c0_32, %c0_33] : memref<32x32xbf16, #tpu.memory_space<vmem>>, vector<32x32xbf16>
      %cst_34 = arith.constant dense<0.000000e+00> : vector<8x32xf32>
      %79 = tpu.matmul %77, %78, %cst_34 {dimension_numbers = #tpu.dot_dimension_numbers<[1], [0], [0], [1], [0, 0, 1, 1], [], []>} : vector<8x32xbf16>, vector<32x32xbf16>, vector<8x32xf32> -> vector<8x32xf32>
      %c0_35 = arith.constant 0 : index
      %c0_36 = arith.constant 0 : index
      %80 = vector.load %arg10[%c0_35, %c0_36] : memref<1x32xf32, #tpu.memory_space<vmem>>, vector<1x32xf32>
      %81 = vector.broadcast %80 : vector<1x32xf32> to vector<8x32xf32>
      %82 = arith.addf %79, %81 : vector<8x32xf32>
      %83 = arith.negf %82 : vector<8x32xf32>
      %84 = math.exp %83 : vector<8x32xf32>
      %cst_37 = arith.constant 1.000000e+00 : f32
      %85 = vector.broadcast %cst_37 : f32 to vector<8x32xf32>
      %86 = arith.addf %85, %84 : vector<8x32xf32>
      %87 = arith.divf %85, %86 : vector<8x32xf32>
      %c0_38 = arith.constant 0 : index
      %c0_39 = arith.constant 0 : index
      %88 = vector.load %arg11[%c0_38, %c0_39] : memref<1x32xf32, #tpu.memory_space<vmem>>, vector<1x32xf32>
      %c0_40 = arith.constant 0 : index
      %c0_41 = arith.constant 0 : index
      %89 = vector.load %arg12[%c0_40, %c0_41] : memref<1x32xf32, #tpu.memory_space<vmem>>, vector<1x32xf32>
      %90 = vector.broadcast %45 : vector<8x1xf32> to vector<8x32xf32>
      %91 = arith.mulf %87, %90 : vector<8x32xf32>
      %cst_42 = arith.constant dense<0.000000e+00> : vector<32xf32>
      %92 = vector.multi_reduction <add>, %91, %cst_42 [0] : vector<8x32xf32> to vector<32xf32>
      %93 = vector.shape_cast %92 : vector<32xf32> to vector<1x32xf32>
      %94 = vector.broadcast %47 : f32 to vector<1x32xf32>
      %95 = arith.divf %93, %94 : vector<1x32xf32>
      %96 = vector.broadcast %95 : vector<1x32xf32> to vector<8x32xf32>
      %97 = arith.subf %87, %96 : vector<8x32xf32>
      %98 = vector.broadcast %45 : vector<8x1xf32> to vector<8x32xf32>
      %99 = arith.mulf %97, %98 : vector<8x32xf32>
      %100 = arith.mulf %99, %99 : vector<8x32xf32>
      %cst_43 = arith.constant dense<0.000000e+00> : vector<32xf32>
      %101 = vector.multi_reduction <add>, %100, %cst_43 [0] : vector<8x32xf32> to vector<32xf32>
      %102 = vector.shape_cast %101 : vector<32xf32> to vector<1x32xf32>
      %103 = vector.broadcast %47 : f32 to vector<1x32xf32>
      %104 = arith.divf %102, %103 : vector<1x32xf32>
      %105 = vector.broadcast %95 : vector<1x32xf32> to vector<8x32xf32>
      %106 = arith.subf %87, %105 : vector<8x32xf32>
      %cst_44 = arith.constant 9.99999974E-6 : f32
      %107 = vector.broadcast %cst_44 : f32 to vector<1x32xf32>
      %108 = arith.addf %104, %107 : vector<1x32xf32>
      %109 = math.rsqrt %108 : vector<1x32xf32>
      %110 = vector.broadcast %109 : vector<1x32xf32> to vector<8x32xf32>
      %111 = arith.mulf %106, %110 : vector<8x32xf32>
      %112 = vector.broadcast %88 : vector<1x32xf32> to vector<8x32xf32>
      %113 = arith.mulf %111, %112 : vector<8x32xf32>
      %114 = vector.broadcast %89 : vector<1x32xf32> to vector<8x32xf32>
      %115 = arith.addf %113, %114 : vector<8x32xf32>
      %116 = arith.truncf %115 : vector<8x32xf32> to vector<8x32xbf16>
      %c0_45 = arith.constant 0 : index
      %c0_46 = arith.constant 0 : index
      %117 = vector.load %arg13[%c0_45, %c0_46] : memref<32x32xbf16, #tpu.memory_space<vmem>>, vector<32x32xbf16>
      %cst_47 = arith.constant dense<0.000000e+00> : vector<8x32xf32>
      %118 = tpu.matmul %116, %117, %cst_47 {dimension_numbers = #tpu.dot_dimension_numbers<[1], [0], [0], [1], [0, 0, 1, 1], [], []>} : vector<8x32xbf16>, vector<32x32xbf16>, vector<8x32xf32> -> vector<8x32xf32>
      %c0_48 = arith.constant 0 : index
      %c0_49 = arith.constant 0 : index
      %119 = vector.load %arg14[%c0_48, %c0_49] : memref<1x32xf32, #tpu.memory_space<vmem>>, vector<1x32xf32>
      %120 = vector.broadcast %119 : vector<1x32xf32> to vector<8x32xf32>
      %121 = arith.addf %118, %120 : vector<8x32xf32>
      %122 = arith.negf %121 : vector<8x32xf32>
      %123 = math.exp %122 : vector<8x32xf32>
      %cst_50 = arith.constant 1.000000e+00 : f32
      %124 = vector.broadcast %cst_50 : f32 to vector<8x32xf32>
      %125 = arith.addf %124, %123 : vector<8x32xf32>
      %126 = arith.divf %124, %125 : vector<8x32xf32>
      %c0_51 = arith.constant 0 : index
      %c0_52 = arith.constant 0 : index
      %127 = vector.load %arg15[%c0_51, %c0_52] : memref<1x32xf32, #tpu.memory_space<vmem>>, vector<1x32xf32>
      %128 = vector.broadcast %127 : vector<1x32xf32> to vector<8x32xf32>
      %129 = arith.mulf %126, %128 : vector<8x32xf32>
      %cst_53 = arith.constant dense<0.000000e+00> : vector<8xf32>
      %130 = vector.multi_reduction <add>, %129, %cst_53 [1] : vector<8x32xf32> to vector<8xf32>
      %131 = vector.shape_cast %130 : vector<8xf32> to vector<8x1xf32>
      %c0_54 = arith.constant 0 : index
      %c0_55 = arith.constant 0 : index
      %132 = vector.load %arg16[%c0_54, %c0_55] : memref<1x1xf32, #tpu.memory_space<vmem>>, vector<1x1xf32>
      %133 = vector.broadcast %132 : vector<1x1xf32> to vector<8x1xf32>
      %134 = arith.addf %131, %133 : vector<8x1xf32>
      %135 = arith.negf %134 : vector<8x1xf32>
      %136 = math.exp %135 : vector<8x1xf32>
      %cst_56 = arith.constant 1.000000e+00 : f32
      %137 = vector.broadcast %cst_56 : f32 to vector<8x1xf32>
      %138 = arith.addf %137, %136 : vector<8x1xf32>
      %139 = arith.divf %137, %138 : vector<8x1xf32>
      %140 = arith.mulf %139, %45 : vector<8x1xf32>
      %c0_57 = arith.constant 0 : index
      %c0_58 = arith.constant 0 : index
      %141 = vector.load %arg17[%c0_57, %c0_58] : memref<8x1xf32, #tpu.memory_space<vmem>>, vector<8x1xf32>
      tpu.vector_store %arg17[%c0_57, %c0_58], %140 {strides = array<i32>} : memref<8x1xf32, #tpu.memory_space<vmem>>, vector<8x1xf32>,
    } else {
    }
    return
  }
  func.func @transform_0(%arg0: i32, %arg1: memref<1xi32, #tpu.memory_space<smem>>) -> (i32, i32, i32) {
    %c3_i32 = arith.constant 3 : i32
    %0 = arith.subi %c3_i32, %arg0 : i32
    %c0_i32 = arith.constant 0 : i32
    %c0_i32_0 = arith.constant 0 : i32
    %c0_i32_1 = arith.constant 0 : i32
    return %0, %c0_i32, %c0_i32_0 : i32, i32, i32
  }
  func.func @transform_1(%arg0: i32, %arg1: memref<1xi32, #tpu.memory_space<smem>>) -> (i32, i32, i32) {
    %c3_i32 = arith.constant 3 : i32
    %0 = arith.subi %c3_i32, %arg0 : i32
    %c0_i32 = arith.constant 0 : i32
    %c0_i32_0 = arith.constant 0 : i32
    %c0_i32_1 = arith.constant 0 : i32
    return %0, %c0_i32, %c0_i32_0 : i32, i32, i32
  }
  func.func @transform_2(%arg0: i32, %arg1: memref<1xi32, #tpu.memory_space<smem>>) -> (i32, i32) {
    %c0_i32 = arith.constant 0 : i32
    %c0_i32_0 = arith.constant 0 : i32
    %c0_i32_1 = arith.constant 0 : i32
    return %c0_i32, %c0_i32_0 : i32, i32
  }
  func.func @transform_3(%arg0: i32, %arg1: memref<1xi32, #tpu.memory_space<smem>>) -> (i32, i32) {
    %c0_i32 = arith.constant 0 : i32
    %c0_i32_0 = arith.constant 0 : i32
    %c0_i32_1 = arith.constant 0 : i32
    return %c0_i32, %c0_i32_0 : i32, i32
  }
  func.func @transform_4(%arg0: i32, %arg1: memref<1xi32, #tpu.memory_space<smem>>) -> (i32, i32) {
    %c0_i32 = arith.constant 0 : i32
    %c0_i32_0 = arith.constant 0 : i32
    %c0_i32_1 = arith.constant 0 : i32
    return %c0_i32, %c0_i32_0 : i32, i32
  }
  func.func @transform_5(%arg0: i32, %arg1: memref<1xi32, #tpu.memory_space<smem>>) -> (i32, i32) {
    %c0_i32 = arith.constant 0 : i32
    %c0_i32_0 = arith.constant 0 : i32
    %c0_i32_1 = arith.constant 0 : i32
    return %c0_i32, %c0_i32_0 : i32, i32
  }
  func.func @transform_6(%arg0: i32, %arg1: memref<1xi32, #tpu.memory_space<smem>>) -> (i32, i32) {
    %c0_i32 = arith.constant 0 : i32
    %c0_i32_0 = arith.constant 0 : i32
    %c0_i32_1 = arith.constant 0 : i32
    return %c0_i32, %c0_i32_0 : i32, i32
  }
  func.func @transform_7(%arg0: i32, %arg1: memref<1xi32, #tpu.memory_space<smem>>) -> (i32, i32) {
    %c0_i32 = arith.constant 0 : i32
    %c0_i32_0 = arith.constant 0 : i32
    %c0_i32_1 = arith.constant 0 : i32
    return %c0_i32, %c0_i32_0 : i32, i32
  }
  func.func @transform_8(%arg0: i32, %arg1: memref<1xi32, #tpu.memory_space<smem>>) -> (i32, i32) {
    %c0_i32 = arith.constant 0 : i32
    %c0_i32_0 = arith.constant 0 : i32
    %c0_i32_1 = arith.constant 0 : i32
    return %c0_i32, %c0_i32_0 : i32, i32
  }
  func.func @transform_9(%arg0: i32, %arg1: memref<1xi32, #tpu.memory_space<smem>>) -> (i32, i32) {
    %c0_i32 = arith.constant 0 : i32
    %c0_i32_0 = arith.constant 0 : i32
    %c0_i32_1 = arith.constant 0 : i32
    return %c0_i32, %c0_i32_0 : i32, i32
  }
  func.func @transform_10(%arg0: i32, %arg1: memref<1xi32, #tpu.memory_space<smem>>) -> (i32, i32) {
    %c0_i32 = arith.constant 0 : i32
    %c0_i32_0 = arith.constant 0 : i32
    %c0_i32_1 = arith.constant 0 : i32
    return %c0_i32, %c0_i32_0 : i32, i32
  }
  func.func @transform_11(%arg0: i32, %arg1: memref<1xi32, #tpu.memory_space<smem>>) -> (i32, i32) {
    %c0_i32 = arith.constant 0 : i32
    %c0_i32_0 = arith.constant 0 : i32
    %c0_i32_1 = arith.constant 0 : i32
    return %c0_i32, %c0_i32_0 : i32, i32
  }
  func.func @transform_12(%arg0: i32, %arg1: memref<1xi32, #tpu.memory_space<smem>>) -> (i32, i32) {
    %c0_i32 = arith.constant 0 : i32
    %c0_i32_0 = arith.constant 0 : i32
    %c0_i32_1 = arith.constant 0 : i32
    return %c0_i32, %c0_i32_0 : i32, i32
  }
  func.func @transform_13(%arg0: i32, %arg1: memref<1xi32, #tpu.memory_space<smem>>) -> (i32, i32) {
    %c0_i32 = arith.constant 0 : i32
    %c0_i32_0 = arith.constant 0 : i32
    %c0_i32_1 = arith.constant 0 : i32
    return %c0_i32, %c0_i32_0 : i32, i32
  }
  func.func @transform_14(%arg0: i32, %arg1: memref<1xi32, #tpu.memory_space<smem>>) -> (i32, i32) {
    %c0_i32 = arith.constant 0 : i32
    %c0_i32_0 = arith.constant 0 : i32
    %c0_i32_1 = arith.constant 0 : i32
    return %c0_i32, %c0_i32_0 : i32, i32
  }
  func.func @transform_15(%arg0: i32, %arg1: memref<1xi32, #tpu.memory_space<smem>>) -> (i32, i32) {
    %c0_i32 = arith.constant 0 : i32
    %c0_i32_0 = arith.constant 0 : i32
    %c0_i32_1 = arith.constant 0 : i32
    return %c0_i32, %c0_i32_0 : i32, i32
  }
}

</mosaic_0001>

<llo_original>
// kernel: representation_forward.3
$region0: #{representation_forward.3}
  #allocation0 [shape = 'u32[]', space=smem, size = 0x4, offset = 0x4, fixed_abs, tag = 'smem constant byte address 0x4 - core index']
  #allocation1 [shape = 'u32[144,128]{1,0:T(1,128)}', space=vmem, size = 0x12000, scoped, tag = 'internal scratch']
  #allocation2 [shape = 'f32[8,32]{1,0:T(8,128)}', space=vmem, size = 0x1000, scoped, tag = 'scratch operand']
  #allocation3 [shape = 'f32[8,32]{1,0:T(8,128)}', space=vmem, size = 0x1000, scoped, tag = 'scratch operand']
  #allocation4 [shape = 's32[1]{0}', space=sflag, size = 0x4, scoped, tag = 'scoped memory for representation_forward.3']
  #allocation5 [shape = 's32[1]{0:T(128)S(6)}', space=smem, size = 0x200, scoped, tag = 'prefetched SMEM operand 0']
  #allocation6 [shape = 'f32[1,1]{1,0:T(1,128)S(1)}', space=vmem, size = 0x200, scoped, tag = 'scoped memory for representation_forward.3']
  %s0 = inlined_call_operand.<no memory space> [shape: s32[1], index: 0, kind: input, shape index: {}]
  %s1 = inlined_call_operand.vmem [shape: f32[4,8,56], index: 1, kind: input, shape index: {}]
  %s2 = inlined_call_operand.vmem [shape: f32[4,8,8], index: 2, kind: input, shape index: {}]
  %s3 = inlined_call_operand.vmem [shape: bf16[56,128], index: 3, kind: input, shape index: {}]
  %s4 = inlined_call_operand.vmem [shape: bf16[32,128], index: 4, kind: input, shape index: {}]
  %s5 = inlined_call_operand.vmem [shape: f32[1,128], index: 5, kind: input, shape index: {}]
  %s6 = inlined_call_operand.vmem [shape: f32[1,32], index: 6, kind: input, shape index: {}]
  %s7 = inlined_call_operand.vmem [shape: f32[1,32], index: 7, kind: input, shape index: {}]
  %s8 = inlined_call_operand.vmem [shape: bf16[32,32], index: 8, kind: input, shape index: {}]
  %s9 = inlined_call_operand.vmem [shape: f32[1,32], index: 9, kind: input, shape index: {}]
  %s10 = inlined_call_operand.vmem [shape: f32[1,32], index: 10, kind: input, shape index: {}]
  %s11 = inlined_call_operand.vmem [shape: f32[1,32], index: 11, kind: input, shape index: {}]
  %s12 = inlined_call_operand.vmem [shape: bf16[32,32], index: 12, kind: input, shape index: {}]
  %s13 = inlined_call_operand.vmem [shape: f32[1,32], index: 13, kind: input, shape index: {}]
  %s14 = inlined_call_operand.vmem [shape: f32[1,32], index: 14, kind: input, shape index: {}]
  %s15 = inlined_call_operand.<no memory space> [shape: f32[1,1], index: 15, kind: input, shape index: {}]
  %s16 = inlined_call_operand.vmem [shape: f32[8,1], index: 16, kind: output, shape index: {}]
  %s17 = sld [smem:[#allocation0]]
  $region105: #{representation_forward.3} parent=0
    _
  %s19 = ssub.s32 1, %s17
  %s20 = scalar_select 0, %s19, %s17
  %21 = sst [smem:[#allocation5]] %s0
  %v22 = vstv %s15
  %23 = vst [vmem:[#allocation6] sm:$0x1] %v22
  loop: start=0, step=1, limit=6
  $region2: #{representation_forward.3} parent=0 // loop_pre_header
    _
  $region3: #{representation_forward.3} parent=0 // loop_header
    %s25 = sphi 0, %s29
    %p26 = scmp.ge.s32.totalorder %s25, 6
    %s37 = sphi 0, %s39
    %s40 = sphi 0, %s37
    %s41 = sphi 0, %s40
    %s57 = sphi 0, %s41
    %s65 = sphi 0, %s67
    %s68 = sphi 0, %s65
    %s69 = sphi 0, %s68
    %s85 = sphi 0, %s69
    %s89 = sphi 0, %s89
    %s91 = sphi 0, %s89
    %s92 = sphi 0, %s91
    %s106 = sphi 0, %s92
    %s110 = sphi 0, %s110
    %s112 = sphi 0, %s110
    %s113 = sphi 0, %s112
    %s127 = sphi 0, %s113
    %s131 = sphi 0, %s131
    %s133 = sphi 0, %s131
    %s134 = sphi 0, %s133
    %s148 = sphi 0, %s134
    %s152 = sphi 0, %s152
    %s154 = sphi 0, %s152
    %s155 = sphi 0, %s154
    %s169 = sphi 0, %s155
    %s173 = sphi 0, %s173
    %s175 = sphi 0, %s173
    %s176 = sphi 0, %s175
    %s190 = sphi 0, %s176
    %s194 = sphi 0, %s194
    %s196 = sphi 0, %s194
    %s197 = sphi 0, %s196
    %s211 = sphi 0, %s197
    %s215 = sphi 0, %s215
    %s217 = sphi 0, %s215
    %s218 = sphi 0, %s217
    %s232 = sphi 0, %s218
    %s236 = sphi 0, %s236
    %s238 = sphi 0, %s236
    %s239 = sphi 0, %s238
    %s253 = sphi 0, %s239
    %s257 = sphi 0, %s257
    %s259 = sphi 0, %s257
    %s260 = sphi 0, %s259
    %s274 = sphi 0, %s260
    %s278 = sphi 0, %s278
    %s280 = sphi 0, %s278
    %s281 = sphi 0, %s280
    %s295 = sphi 0, %s281
    %s299 = sphi 0, %s299
    %s301 = sphi 0, %s299
    %s302 = sphi 0, %s301
    %s316 = sphi 0, %s302
    %s320 = sphi 0, %s320
    %s322 = sphi 0, %s320
    %s323 = sphi 0, %s322
    %s337 = sphi 0, %s323
    %s341 = sphi 0, %s341
    %s343 = sphi 0, %s341
    %s344 = sphi 0, %s343
    %s358 = sphi 0, %s344
    %s362 = sphi 0, %s362
    %s364 = sphi 0, %s362
    %s365 = sphi 0, %s364
    %s379 = sphi 0, %s365
  $region4: #{representation_forward.3} parent=0 // loop_header_branch
    %28 = sbr.rel (%p26) target = $region8
  $region5: #{representation_forward.3} parent=0 // loop_body
    %s30 = ssub.s32 %s25, 1
    %s31 = ssub.s32 %s25, 2
    %s32 = sadd.s32 %s25, 1
    %s33 = ssub.s32 3, %s25
    %s34 = ssub.s32 3, %s32
    %s35 = ssub.s32 %s33, %s34
    %p36 = scmp.eq.s32.totalorder %s35, 0
    %s38 = sadd.s32 %s37, 1
    %s39 = scalar_select %p36, %s37, %s38
    %p42 = pneg %p36
    %p43 = scmp.eq.s32.totalorder %s25, 3
    %p44 = por %p42, %p43
    %p45 = scmp.ne.s32.totalorder %s37, %s40
    %p46 = scmp.eq.s32.totalorder %s25, 0
    %p47 = por %p45, %p46
    %p48 = scmp.ne.s32.totalorder %s37, %s40
    %p49 = scmp.eq.s32.totalorder %s30, 3
    %p50 = por %p48, %p49
    %p51 = scmp.ne.s32.totalorder %s40, %s41
    %p52 = scmp.eq.s32.totalorder %s30, 0
    %p53 = por %p51, %p52
    %p54 = scmp.ne.s32.totalorder %s40, %s41
    %p55 = scmp.eq.s32.totalorder %s31, 3
    %p56 = por %p54, %p55
    %p58 = scmp.ne.s32.totalorder %s41, %s57
    %p59 = scmp.eq.s32.totalorder %s31, 0
    %p60 = por %p58, %p59
    %s61 = ssub.s32 3, %s25
    %s62 = ssub.s32 3, %s32
    %s63 = ssub.s32 %s61, %s62
    %p64 = scmp.eq.s32.totalorder %s63, 0
    %s66 = sadd.s32 %s65, 1
    %s67 = scalar_select %p64, %s65, %s66
    %p70 = pneg %p64
    %p71 = scmp.eq.s32.totalorder %s25, 3
    %p72 = por %p70, %p71
    %p73 = scmp.ne.s32.totalorder %s65, %s68
    %p74 = scmp.eq.s32.totalorder %s25, 0
    %p75 = por %p73, %p74
    %p76 = scmp.ne.s32.totalorder %s65, %s68
    %p77 = scmp.eq.s32.totalorder %s30, 3
    %p78 = por %p76, %p77
    %p79 = scmp.ne.s32.totalorder %s68, %s69
    %p80 = scmp.eq.s32.totalorder %s30, 0
    %p81 = por %p79, %p80
    %p82 = scmp.ne.s32.totalorder %s68, %s69
    %p83 = scmp.eq.s32.totalorder %s31, 3
    %p84 = por %p82, %p83
    %p86 = scmp.ne.s32.totalorder %s69, %s85
    %p87 = scmp.eq.s32.totalorder %s31, 0
    %p88 = por %p86, %p87
    %s90 = sadd.s32 %s89, 1
    %p93 = scmp.eq.s32.totalorder %s25, 3
    %p94 = scmp.ne.s32.totalorder %s89, %s91
    %p95 = scmp.eq.s32.totalorder %s25, 0
    %p96 = por %p94, %p95
    %p97 = scmp.ne.s32.totalorder %s89, %s91
    %p98 = scmp.eq.s32.totalorder %s30, 3
    %p99 = por %p97, %p98
    %p100 = scmp.ne.s32.totalorder %s91, %s92
    %p101 = scmp.eq.s32.totalorder %s30, 0
    %p102 = por %p100, %p101
    %p103 = scmp.ne.s32.totalorder %s91, %s92
    %p104 = scmp.eq.s32.totalorder %s31, 3
    %p105 = por %p103, %p104
    %p107 = scmp.ne.s32.totalorder %s92, %s106
    %p108 = scmp.eq.s32.totalorder %s31, 0
    %p109 = por %p107, %p108
    %s111 = sadd.s32 %s110, 1
    %p114 = scmp.eq.s32.totalorder %s25, 3
    %p115 = scmp.ne.s32.totalorder %s110, %s112
    %p116 = scmp.eq.s32.totalorder %s25, 0
    %p117 = por %p115, %p116
    %p118 = scmp.ne.s32.totalorder %s110, %s112
    %p119 = scmp.eq.s32.totalorder %s30, 3
    %p120 = por %p118, %p119
    %p121 = scmp.ne.s32.totalorder %s112, %s113
    %p122 = scmp.eq.s32.totalorder %s30, 0
    %p123 = por %p121, %p122
    %p124 = scmp.ne.s32.totalorder %s112, %s113
    %p125 = scmp.eq.s32.totalorder %s31, 3
    %p126 = por %p124, %p125
    %p128 = scmp.ne.s32.totalorder %s113, %s127
    %p129 = scmp.eq.s32.totalorder %s31, 0
    %p130 = por %p128, %p129
    %s132 = sadd.s32 %s131, 1
    %p135 = scmp.eq.s32.totalorder %s25, 3
    %p136 = scmp.ne.s32.totalorder %s131, %s133
    %p137 = scmp.eq.s32.totalorder %s25, 0
    %p138 = por %p136, %p137
    %p139 = scmp.ne.s32.totalorder %s131, %s133
    %p140 = scmp.eq.s32.totalorder %s30, 3
    %p141 = por %p139, %p140
    %p142 = scmp.ne.s32.totalorder %s133, %s134
    %p143 = scmp.eq.s32.totalorder %s30, 0
    %p144 = por %p142, %p143
    %p145 = scmp.ne.s32.totalorder %s133, %s134
    %p146 = scmp.eq.s32.totalorder %s31, 3
    %p147 = por %p145, %p146
    %p149 = scmp.ne.s32.totalorder %s134, %s148
    %p150 = scmp.eq.s32.totalorder %s31, 0
    %p151 = por %p149, %p150
    %s153 = sadd.s32 %s152, 1
    %p156 = scmp.eq.s32.totalorder %s25, 3
    %p157 = scmp.ne.s32.totalorder %s152, %s154
    %p158 = scmp.eq.s32.totalorder %s25, 0
    %p159 = por %p157, %p158
    %p160 = scmp.ne.s32.totalorder %s152, %s154
    %p161 = scmp.eq.s32.totalorder %s30, 3
    %p162 = por %p160, %p161
    %p163 = scmp.ne.s32.totalorder %s154, %s155
    %p164 = scmp.eq.s32.totalorder %s30, 0
    %p165 = por %p163, %p164
    %p166 = scmp.ne.s32.totalorder %s154, %s155
    %p167 = scmp.eq.s32.totalorder %s31, 3
    %p168 = por %p166, %p167
    %p170 = scmp.ne.s32.totalorder %s155, %s169
    %p171 = scmp.eq.s32.totalorder %s31, 0
    %p172 = por %p170, %p171
    %s174 = sadd.s32 %s173, 1
    %p177 = scmp.eq.s32.totalorder %s25, 3
    %p178 = scmp.ne.s32.totalorder %s173, %s175
    %p179 = scmp.eq.s32.totalorder %s25, 0
    %p180 = por %p178, %p179
    %p181 = scmp.ne.s32.totalorder %s173, %s175
    %p182 = scmp.eq.s32.totalorder %s30, 3
    %p183 = por %p181, %p182
    %p184 = scmp.ne.s32.totalorder %s175, %s176
    %p185 = scmp.eq.s32.totalorder %s30, 0
    %p186 = por %p184, %p185
    %p187 = scmp.ne.s32.totalorder %s175, %s176
    %p188 = scmp.eq.s32.totalorder %s31, 3
    %p189 = por %p187, %p188
    %p191 = scmp.ne.s32.totalorder %s176, %s190
    %p192 = scmp.eq.s32.totalorder %s31, 0
    %p193 = por %p191, %p192
    %s195 = sadd.s32 %s194, 1
    %p198 = scmp.eq.s32.totalorder %s25, 3
    %p199 = scmp.ne.s32.totalorder %s194, %s196
    %p200 = scmp.eq.s32.totalorder %s25, 0
    %p201 = por %p199, %p200
    %p202 = scmp.ne.s32.totalorder %s194, %s196
    %p203 = scmp.eq.s32.totalorder %s30, 3
    %p204 = por %p202, %p203
    %p205 = scmp.ne.s32.totalorder %s196, %s197
    %p206 = scmp.eq.s32.totalorder %s30, 0
    %p207 = por %p205, %p206
    %p208 = scmp.ne.s32.totalorder %s196, %s197
    %p209 = scmp.eq.s32.totalorder %s31, 3
    %p210 = por %p208, %p209
    %p212 = scmp.ne.s32.totalorder %s197, %s211
    %p213 = scmp.eq.s32.totalorder %s31, 0
    %p214 = por %p212, %p213
    %s216 = sadd.s32 %s215, 1
    %p219 = scmp.eq.s32.totalorder %s25, 3
    %p220 = scmp.ne.s32.totalorder %s215, %s217
    %p221 = scmp.eq.s32.totalorder %s25, 0
    %p222 = por %p220, %p221
    %p223 = scmp.ne.s32.totalorder %s215, %s217
    %p224 = scmp.eq.s32.totalorder %s30, 3
    %p225 = por %p223, %p224
    %p226 = scmp.ne.s32.totalorder %s217, %s218
    %p227 = scmp.eq.s32.totalorder %s30, 0
    %p228 = por %p226, %p227
    %p229 = scmp.ne.s32.totalorder %s217, %s218
    %p230 = scmp.eq.s32.totalorder %s31, 3
    %p231 = por %p229, %p230
    %p233 = scmp.ne.s32.totalorder %s218, %s232
    %p234 = scmp.eq.s32.totalorder %s31, 0
    %p235 = por %p233, %p234
    %s237 = sadd.s32 %s236, 1
    %p240 = scmp.eq.s32.totalorder %s25, 3
    %p241 = scmp.ne.s32.totalorder %s236, %s238
    %p242 = scmp.eq.s32.totalorder %s25, 0
    %p243 = por %p241, %p242
    %p244 = scmp.ne.s32.totalorder %s236, %s238
    %p245 = scmp.eq.s32.totalorder %s30, 3
    %p246 = por %p244, %p245
    %p247 = scmp.ne.s32.totalorder %s238, %s239
    %p248 = scmp.eq.s32.totalorder %s30, 0
    %p249 = por %p247, %p248
    %p250 = scmp.ne.s32.totalorder %s238, %s239
    %p251 = scmp.eq.s32.totalorder %s31, 3
    %p252 = por %p250, %p251
    %p254 = scmp.ne.s32.totalorder %s239, %s253
    %p255 = scmp.eq.s32.totalorder %s31, 0
    %p256 = por %p254, %p255
    %s258 = sadd.s32 %s257, 1
    %p261 = scmp.eq.s32.totalorder %s25, 3
    %p262 = scmp.ne.s32.totalorder %s257, %s259
    %p263 = scmp.eq.s32.totalorder %s25, 0
    %p264 = por %p262, %p263
    %p265 = scmp.ne.s32.totalorder %s257, %s259
    %p266 = scmp.eq.s32.totalorder %s30, 3
    %p267 = por %p265, %p266
    %p268 = scmp.ne.s32.totalorder %s259, %s260
    %p269 = scmp.eq.s32.totalorder %s30, 0
    %p270 = por %p268, %p269
    %p271 = scmp.ne.s32.totalorder %s259, %s260
    %p272 = scmp.eq.s32.totalorder %s31, 3
    %p273 = por %p271, %p272
    %p275 = scmp.ne.s32.totalorder %s260, %s274
    %p276 = scmp.eq.s32.totalorder %s31, 0
    %p277 = por %p275, %p276
    %s279 = sadd.s32 %s278, 1
    %p282 = scmp.eq.s32.totalorder %s25, 3
    %p283 = scmp.ne.s32.totalorder %s278, %s280
    %p284 = scmp.eq.s32.totalorder %s25, 0
    %p285 = por %p283, %p284
    %p286 = scmp.ne.s32.totalorder %s278, %s280
    %p287 = scmp.eq.s32.totalorder %s30, 3
    %p288 = por %p286, %p287
    %p289 = scmp.ne.s32.totalorder %s280, %s281
    %p290 = scmp.eq.s32.totalorder %s30, 0
    %p291 = por %p289, %p290
    %p292 = scmp.ne.s32.totalorder %s280, %s281
    %p293 = scmp.eq.s32.totalorder %s31, 3
    %p294 = por %p292, %p293
    %p296 = scmp.ne.s32.totalorder %s281, %s295
    %p297 = scmp.eq.s32.totalorder %s31, 0
    %p298 = por %p296, %p297
    %s300 = sadd.s32 %s299, 1
    %p303 = scmp.eq.s32.totalorder %s25, 3
    %p304 = scmp.ne.s32.totalorder %s299, %s301
    %p305 = scmp.eq.s32.totalorder %s25, 0
    %p306 = por %p304, %p305
    %p307 = scmp.ne.s32.totalorder %s299, %s301
    %p308 = scmp.eq.s32.totalorder %s30, 3
    %p309 = por %p307, %p308
    %p310 = scmp.ne.s32.totalorder %s301, %s302
    %p311 = scmp.eq.s32.totalorder %s30, 0
    %p312 = por %p310, %p311
    %p313 = scmp.ne.s32.totalorder %s301, %s302
    %p314 = scmp.eq.s32.totalorder %s31, 3
    %p315 = por %p313, %p314
    %p317 = scmp.ne.s32.totalorder %s302, %s316
    %p318 = scmp.eq.s32.totalorder %s31, 0
    %p319 = por %p317, %p318
    %s321 = sadd.s32 %s320, 1
    %p324 = scmp.eq.s32.totalorder %s25, 3
    %p325 = scmp.ne.s32.totalorder %s320, %s322
    %p326 = scmp.eq.s32.totalorder %s25, 0
    %p327 = por %p325, %p326
    %p328 = scmp.ne.s32.totalorder %s320, %s322
    %p329 = scmp.eq.s32.totalorder %s30, 3
    %p330 = por %p328, %p329
    %p331 = scmp.ne.s32.totalorder %s322, %s323
    %p332 = scmp.eq.s32.totalorder %s30, 0
    %p333 = por %p331, %p332
    %p334 = scmp.ne.s32.totalorder %s322, %s323
    %p335 = scmp.eq.s32.totalorder %s31, 3
    %p336 = por %p334, %p335
    %p338 = scmp.ne.s32.totalorder %s323, %s337
    %p339 = scmp.eq.s32.totalorder %s31, 0
    %p340 = por %p338, %p339
    %s342 = sadd.s32 %s341, 1
    %p345 = scmp.eq.s32.totalorder %s25, 3
    %p346 = scmp.ne.s32.totalorder %s341, %s343
    %p347 = scmp.eq.s32.totalorder %s25, 0
    %p348 = por %p346, %p347
    %p349 = scmp.ne.s32.totalorder %s341, %s343
    %p350 = scmp.eq.s32.totalorder %s30, 3
    %p351 = por %p349, %p350
    %p352 = scmp.ne.s32.totalorder %s343, %s344
    %p353 = scmp.eq.s32.totalorder %s30, 0
    %p354 = por %p352, %p353
    %p355 = scmp.ne.s32.totalorder %s343, %s344
    %p356 = scmp.eq.s32.totalorder %s31, 3
    %p357 = por %p355, %p356
    %p359 = scmp.ne.s32.totalorder %s344, %s358
    %p360 = scmp.eq.s32.totalorder %s31, 0
    %p361 = por %p359, %p360
    %s363 = sadd.s32 %s362, 1
    %p366 = scmp.eq.s32.totalorder %s25, 3
    %p367 = scmp.ne.s32.totalorder %s362, %s364
    %p368 = scmp.eq.s32.totalorder %s25, 0
    %p369 = por %p367, %p368
    %p370 = scmp.ne.s32.totalorder %s362, %s364
    %p371 = scmp.eq.s32.totalorder %s30, 3
    %p372 = por %p370, %p371
    %p373 = scmp.ne.s32.totalorder %s364, %s365
    %p374 = scmp.eq.s32.totalorder %s30, 0
    %p375 = por %p373, %p374
    %p376 = scmp.ne.s32.totalorder %s364, %s365
    %p377 = scmp.eq.s32.totalorder %s31, 3
    %p378 = por %p376, %p377
    %p380 = scmp.ne.s32.totalorder %s365, %s379
    %p381 = scmp.eq.s32.totalorder %s31, 0
    %p382 = por %p380, %p381
    %p383 = scmp.le.s32.totalorder 1, %s25
    %p384 = scmp.lt.s32.totalorder %s25, 5
    %p385 = pnand %p383, %p384
    %p386 = pneg %p385
    // Predicated region
    $region9: #{representation_forward.3} parent=5 // pred_check
      _
    $region10: #{representation_forward.3} parent=5 // pred_check_branch
      %388 = sbr.rel (%p385) target = $region12
    $region11: #{representation_forward.3} parent=5 // pred_region
      %s389 = ssub.s32 %s25, 1
      // Predicated region
      $region13: #{representation_forward.3} parent=11 // pred_check
        %p390 = pneg %p102
      $region14: #{representation_forward.3} parent=11 // pred_check_branch
        %392 = sbr.rel (%p390) target = $region16
      $region15: #{representation_forward.3} parent=11 // pred_region
        _
      $region16: #{representation_forward.3} parent=11 // pred_fallthru
        _
      // Predicated region
      $region17: #{representation_forward.3} parent=11 // pred_check
        %p393 = pneg %p123
      $region18: #{representation_forward.3} parent=11 // pred_check_branch
        %395 = sbr.rel (%p393) target = $region20
      $region19: #{representation_forward.3} parent=11 // pred_region
        _
      $region20: #{representation_forward.3} parent=11 // pred_fallthru
        _
      // Predicated region
      $region21: #{representation_forward.3} parent=11 // pred_check
        %p396 = pneg %p144
      $region22: #{representation_forward.3} parent=11 // pred_check_branch
        %398 = sbr.rel (%p396) target = $region24
      $region23: #{representation_forward.3} parent=11 // pred_region
        _
      $region24: #{representation_forward.3} parent=11 // pred_fallthru
        _
      // Predicated region
      $region25: #{representation_forward.3} parent=11 // pred_check
        %p399 = pneg %p165
      $region26: #{representation_forward.3} parent=11 // pred_check_branch
        %401 = sbr.rel (%p399) target = $region28
      $region27: #{representation_forward.3} parent=11 // pred_region
        _
      $region28: #{representation_forward.3} parent=11 // pred_fallthru
        _
      // Predicated region
      $region29: #{representation_forward.3} parent=11 // pred_check
        %p402 = pneg %p186
      $region30: #{representation_forward.3} parent=11 // pred_check_branch
        %404 = sbr.rel (%p402) target = $region32
      $region31: #{representation_forward.3} parent=11 // pred_region
        _
      $region32: #{representation_forward.3} parent=11 // pred_fallthru
        _
      // Predicated region
      $region33: #{representation_forward.3} parent=11 // pred_check
        %p405 = pneg %p207
      $region34: #{representation_forward.3} parent=11 // pred_check_branch
        %407 = sbr.rel (%p405) target = $region36
      $region35: #{representation_forward.3} parent=11 // pred_region
        _
      $region36: #{representation_forward.3} parent=11 // pred_fallthru
        _
      // Predicated region
      $region37: #{representation_forward.3} parent=11 // pred_check
        %p408 = pneg %p228
      $region38: #{representation_forward.3} parent=11 // pred_check_branch
        %410 = sbr.rel (%p408) target = $region40
      $region39: #{representation_forward.3} parent=11 // pred_region
        _
      $region40: #{representation_forward.3} parent=11 // pred_fallthru
        _
      // Predicated region
      $region41: #{representation_forward.3} parent=11 // pred_check
        %p411 = pneg %p249
      $region42: #{representation_forward.3} parent=11 // pred_check_branch
        %413 = sbr.rel (%p411) target = $region44
      $region43: #{representation_forward.3} parent=11 // pred_region
        _
      $region44: #{representation_forward.3} parent=11 // pred_fallthru
        _
      // Predicated region
      $region45: #{representation_forward.3} parent=11 // pred_check
        %p414 = pneg %p270
      $region46: #{representation_forward.3} parent=11 // pred_check_branch
        %416 = sbr.rel (%p414) target = $region48
      $region47: #{representation_forward.3} parent=11 // pred_region
        _
      $region48: #{representation_forward.3} parent=11 // pred_fallthru
        _
      // Predicated region
      $region49: #{representation_forward.3} parent=11 // pred_check
        %p417 = pneg %p291
      $region50: #{representation_forward.3} parent=11 // pred_check_branch
        %419 = sbr.rel (%p417) target = $region52
      $region51: #{representation_forward.3} parent=11 // pred_region
        _
      $region52: #{representation_forward.3} parent=11 // pred_fallthru
        _
      // Predicated region
      $region53: #{representation_forward.3} parent=11 // pred_check
        %p420 = pneg %p312
      $region54: #{representation_forward.3} parent=11 // pred_check_branch
        %422 = sbr.rel (%p420) target = $region56
      $region55: #{representation_forward.3} parent=11 // pred_region
        _
      $region56: #{representation_forward.3} parent=11 // pred_fallthru
        _
      // Predicated region
      $region57: #{representation_forward.3} parent=11 // pred_check
        %p423 = pneg %p333
      $region58: #{representation_forward.3} parent=11 // pred_check_branch
        %425 = sbr.rel (%p423) target = $region60
      $region59: #{representation_forward.3} parent=11 // pred_region
        _
      $region60: #{representation_forward.3} parent=11 // pred_fallthru
        _
      // Predicated region
      $region61: #{representation_forward.3} parent=11 // pred_check
        %p426 = pneg %p354
      $region62: #{representation_forward.3} parent=11 // pred_check_branch
        %428 = sbr.rel (%p426) target = $region64
      $region63: #{representation_forward.3} parent=11 // pred_region
        _
      $region64: #{representation_forward.3} parent=11 // pred_fallthru
        _
    $region12: #{representation_forward.3} parent=5 // pred_fallthru
      _
    %p429 = scmp.lt.s32.totalorder %s25, 4
    // Predicated region
    $region65: #{representation_forward.3} parent=5 // pred_check
      %p430 = pneg %p429
    $region66: #{representation_forward.3} parent=5 // pred_check_branch
      %432 = sbr.rel (%p430) target = $region68
    $region67: #{representation_forward.3} parent=5 // pred_region
      // Predicated region
      $region69: #{representation_forward.3} parent=67 // pred_check
        %p433 = pneg %p47
      $region70: #{representation_forward.3} parent=67 // pred_check_branch
        %435 = sbr.rel (%p433) target = $region72
      $region71: #{representation_forward.3} parent=67 // pred_region
        %s436 = ssub.s32 3, %s25
        %p437 = scmp.lt.s32.totalorder %s436, 3
        %s438 = scalar_select %p437, %s436, 3
        %s439 = smul.addr %s438, 8
        %s440 = scalar_lea.vmem %s1, %s439
        %s441 = ssub.s32 3, %s25
      $region72: #{representation_forward.3} parent=67 // pred_fallthru
        _
      // Predicated region
      $region73: #{representation_forward.3} parent=67 // pred_check
        %p442 = pneg %p75
      $region74: #{representation_forward.3} parent=67 // pred_check_branch
        %444 = sbr.rel (%p442) target = $region76
      $region75: #{representation_forward.3} parent=67 // pred_region
        %s445 = ssub.s32 3, %s25
        %p446 = scmp.lt.s32.totalorder %s445, 3
        %s447 = scalar_select %p446, %s445, 3
        %s448 = smul.addr %s447, 8
        %s449 = scalar_lea.vmem %s2, %s448
        %s450 = ssub.s32 3, %s25
      $region76: #{representation_forward.3} parent=67 // pred_fallthru
        _
    $region68: #{representation_forward.3} parent=5 // pred_fallthru
      _
    %p451 = scmp.le.s32.totalorder 1, %s25
    %p452 = scmp.lt.s32.totalorder %s25, 5
    %p453 = pnand %p451, %p452
    %p454 = pneg %p453
    // Predicated region
    $region77: #{representation_forward.3} parent=5 // pred_check
      _
    $region78: #{representation_forward.3} parent=5 // pred_check_branch
      %456 = sbr.rel (%p453) target = $region80
    $region79: #{representation_forward.3} parent=5 // pred_region
      %s457 = ssub.s32 %s25, 1
      %s458 = ssub.s32 3, %s30
      %p459 = scmp.lt.s32.totalorder %s458, 3
      %s460 = scalar_select %p459, %s458, 3
      %s461 = smul.addr %s460, 8
      %s462 = scalar_lea.vmem %s1, %s461
      %p463 = pneg %p53
      %p464 = pneg %p50
      %s465 = ssub.s32 3, %s30
      %p466 = scmp.lt.s32.totalorder %s465, 3
      %s467 = scalar_select %p466, %s465, 3
      %s468 = smul.addr %s467, 8
      %s469 = scalar_lea.vmem %s2, %s468
      %p470 = pneg %p81
      %p471 = pneg %p78
      %p472 = pneg %p102
      %p473 = pneg %p99
      %p474 = pneg %p123
      %p475 = pneg %p120
      %p476 = pneg %p144
      %p477 = pneg %p141
      %p478 = pneg %p165
      %p479 = pneg %p162
      %p480 = pneg %p186
      %p481 = pneg %p183
      %p482 = pneg %p207
      %p483 = pneg %p204
      %p484 = pneg %p228
      %p485 = pneg %p225
      %p486 = pneg %p249
      %p487 = pneg %p246
      %p488 = pneg %p270
      %p489 = pneg %p267
      %p490 = pneg %p291
      %p491 = pneg %p288
      %p492 = pneg %p312
      %p493 = pneg %p309
      %p494 = pneg %p333
      %p495 = pneg %p330
      %p496 = pneg %p354
      %p497 = pneg %p351
      %p498 = pneg %p375
      %p499 = pneg %p372
      %s500 = ssub.s32 3, %s30
      %p501 = scmp.lt.s32.totalorder %s500, 3
      %s502 = scalar_select %p501, %s500, 3
      %s503 = smul.addr %s502, 8
      %s504 = scalar_lea.vmem %s1, %s503
      %s505 = ssub.s32 3, %s30
      %s506 = ssub.s32 3, %s30
      %p507 = scmp.lt.s32.totalorder %s506, 3
      %s508 = scalar_select %p507, %s506, 3
      %s509 = smul.addr %s508, 8
      %s510 = scalar_lea.vmem %s2, %s509
      %s511 = ssub.s32 3, %s30
      %p513 = scmp.eq.s32.totalorder %s30, 0
      // Predicated region
      $region81: #{representation_forward.3} parent=79 // pred_check
        %p514 = pneg %p513
      $region82: #{representation_forward.3} parent=79 // pred_check_branch
        %516 = sbr.rel (%p514) target = $region84
      $region83: #{representation_forward.3} parent=79 // pred_region
        %vm517 = vcmask 261120
        %518 = vst.msk [vmem:[#allocation2] sm:$0xff] %vm517, 0.0
        %519 = vst.msk [vmem:[#allocation3] sm:$0xff] %vm517, 0.0
      $region84: #{representation_forward.3} parent=79 // pred_fallthru
        _
      %p520 = scmp.gt.s32.totalorder %s30, 0
      // Predicated region
      $region85: #{representation_forward.3} parent=79 // pred_check
        %p521 = pneg %p520
      $region86: #{representation_forward.3} parent=79 // pred_check_branch
        %523 = sbr.rel (%p521) target = $region88
      $region87: #{representation_forward.3} parent=79 // pred_region
        %v524 = vld [vmem:[%s510] sm:$0xff]
        %v525 = vld [vmem:[#allocation2] sm:$0xff]
        %vm526 = vcmask 64512
        %v528 = vsel %vm526, %v524, 0
        %530 = vmatprep.subr.mxu0 0.0
        %531 = vmatpush1.msra.mxu0 0.0
        %532 = vmatprep.subr.mxu0 0.0
        %533 = vmatpush1.msra.mxu0 0.0
        %534 = vmatprep.subr.mxu0 0.0
        %535 = vmatpush1.msra.mxu0 0.0
        %536 = vmatprep.subr.mxu0 0.0
        %537 = vmatpush1.msra.mxu0 0.0
        %538 = vmatprep.subr.mxu0 0.0
        %539 = vmatpush1.msra.mxu0 0.0
        %540 = vmatprep.subr.mxu0 0.0
        %541 = vmatpush1.msra.mxu0 0.0
        %542 = vmatprep.subr.mxu0 0.0
        %543 = vmatpush1.msra.mxu0 0.0
        %544 = vmatprep.subr.mxu0 0.0
        %545 = vmatpush1.msra.mxu0 0.0
        %546 = vmatprep.subr.mxu0 0.0
        %547 = vmatpush1.msra.mxu0 0.0
        %548 = vmatprep.subr.mxu0 0.0
        %549 = vmatpush1.msra.mxu0 0.0
        %550 = vmatprep.subr.mxu0 0.0
        %551 = vmatpush1.msra.mxu0 0.0
        %552 = vmatprep.subr.mxu0 0.0
        %553 = vmatpush1.msra.mxu0 0.0
        %554 = vmatprep.subr.mxu0 0.0
        %555 = vmatpush1.msra.mxu0 0.0
        %556 = vmatprep.subr.mxu0 0.0
        %557 = vmatpush1.msra.mxu0 0.0
        %558 = vmatprep.subr.mxu0 0.0
        %559 = vmatpush1.msra.mxu0 0.0
        %560 = vmatprep.subr.mxu0 0.0
        %561 = vmatpush1.msra.mxu0 %v525
        %562 = vmatprep.subr.mxu0 0.0
        %563 = vmatpush2.msra.mxu0 0.0
        %564 = vmatprep.subr.mxu0 0.0
        %565 = vmatpush2.msra.mxu0 0.0
        %566 = vmatprep.subr.mxu0 0.0
        %567 = vmatpush2.msra.mxu0 0.0
        %568 = vmatprep.subr.mxu0 0.0
        %569 = vmatpush2.msra.mxu0 0.0
        %570 = vmatprep.subr.mxu0 0.0
        %571 = vmatpush2.msra.mxu0 0.0
        %572 = vmatprep.subr.mxu0 0.0
        %573 = vmatpush2.msra.mxu0 0.0
        %574 = vmatprep.subr.mxu0 0.0
        %575 = vmatpush2.msra.mxu0 0.0
        %576 = vmatprep.subr.mxu0 0.0
        %577 = vmatpush2.msra.mxu0 0.0
        %578 = vmatprep.subr.mxu0 0.0
        %579 = vmatpush2.msra.mxu0 0.0
        %580 = vmatprep.subr.mxu0 0.0
        %581 = vmatpush2.msra.mxu0 0.0
        %582 = vmatprep.subr.mxu0 0.0
        %583 = vmatpush2.msra.mxu0 0.0
        %584 = vmatprep.subr.mxu0 0.0
        %585 = vmatpush2.msra.mxu0 0.0
        %586 = vmatprep.subr.mxu0 0.0
        %587 = vmatpush2.msra.mxu0 0.0
        %588 = vmatprep.subr.mxu0 0.0
        %589 = vmatpush2.msra.mxu0 0.0
        %590 = vmatprep.subr.mxu0 0.0
        %591 = vmatpush2.msra.mxu0 0.0
        %592 = vmatprep.subr.mxu0 0.0
        %593 = vmatpush2.msra.mxu0 0.0
        %594 = vmatprep.mubr.f32.mxu0 0.0
        %595 = vmatmul.mubr.f32.gmra.mxu0 %v528
        %v596 = vpop.f32.mrf.mxu0
        %v597 = vadd.f32 0.0, %v596
        %v598 = vpop.f32.mrf.mxu0
        %599 = vdwg.mxu0
        %vm600 = vcmask 261120
        %601 = vst.msk [vmem:[#allocation2] sm:$0xff] %vm600, %v597
        %v602 = vld [vmem:[#allocation3] sm:$0xff]
        %603 = vmatprep.subr.mxu0 0.0
        %604 = vmatpush1.msra.mxu0 0.0
        %605 = vmatprep.subr.mxu0 0.0
        %606 = vmatpush1.msra.mxu0 0.0
        %607 = vmatprep.subr.mxu0 0.0
        %608 = vmatpush1.msra.mxu0 0.0
        %609 = vmatprep.subr.mxu0 0.0
        %610 = vmatpush1.msra.mxu0 0.0
        %611 = vmatprep.subr.mxu0 0.0
        %612 = vmatpush1.msra.mxu0 0.0
        %613 = vmatprep.subr.mxu0 0.0
        %614 = vmatpush1.msra.mxu0 0.0
        %615 = vmatprep.subr.mxu0 0.0
        %616 = vmatpush1.msra.mxu0 0.0
        %617 = vmatprep.subr.mxu0 0.0
        %618 = vmatpush1.msra.mxu0 0.0
        %619 = vmatprep.subr.mxu0 0.0
        %620 = vmatpush1.msra.mxu0 0.0
        %621 = vmatprep.subr.mxu0 0.0
        %622 = vmatpush1.msra.mxu0 0.0
        %623 = vmatprep.subr.mxu0 0.0
        %624 = vmatpush1.msra.mxu0 0.0
        %625 = vmatprep.subr.mxu0 0.0
        %626 = vmatpush1.msra.mxu0 0.0
        %627 = vmatprep.subr.mxu0 0.0
        %628 = vmatpush1.msra.mxu0 0.0
        %629 = vmatprep.subr.mxu0 0.0
        %630 = vmatpush1.msra.mxu0 0.0
        %631 = vmatprep.subr.mxu0 0.0
        %632 = vmatpush1.msra.mxu0 0.0
        %633 = vmatprep.subr.mxu0 0.0
        %634 = vmatpush1.msra.mxu0 %v602
        %635 = vmatprep.subr.mxu0 0.0
        %636 = vmatpush2.msra.mxu0 0.0
        %637 = vmatprep.subr.mxu0 0.0
        %638 = vmatpush2.msra.mxu0 0.0
        %639 = vmatprep.subr.mxu0 0.0
        %640 = vmatpush2.msra.mxu0 0.0
        %641 = vmatprep.subr.mxu0 0.0
        %642 = vmatpush2.msra.mxu0 0.0
        %643 = vmatprep.subr.mxu0 0.0
        %644 = vmatpush2.msra.mxu0 0.0
        %645 = vmatprep.subr.mxu0 0.0
        %646 = vmatpush2.msra.mxu0 0.0
        %647 = vmatprep.subr.mxu0 0.0
        %648 = vmatpush2.msra.mxu0 0.0
        %649 = vmatprep.subr.mxu0 0.0
        %650 = vmatpush2.msra.mxu0 0.0
        %651 = vmatprep.subr.mxu0 0.0
        %652 = vmatpush2.msra.mxu0 0.0
        %653 = vmatprep.subr.mxu0 0.0
        %654 = vmatpush2.msra.mxu0 0.0
        %655 = vmatprep.subr.mxu0 0.0
        %656 = vmatpush2.msra.mxu0 0.0
        %657 = vmatprep.subr.mxu0 0.0
        %658 = vmatpush2.msra.mxu0 0.0
        %659 = vmatprep.subr.mxu0 0.0
        %660 = vmatpush2.msra.mxu0 0.0
        %661 = vmatprep.subr.mxu0 0.0
        %662 = vmatpush2.msra.mxu0 0.0
        %663 = vmatprep.subr.mxu0 0.0
        %664 = vmatpush2.msra.mxu0 0.0
        %665 = vmatprep.subr.mxu0 0.0
        %666 = vmatpush2.msra.mxu0 0.0
        %667 = vmatprep.mubr.f32.mxu0 0.0
        %668 = vmatmul.mubr.f32.gmra.mxu0 %v528
        %v669 = vpop.f32.mrf.mxu0
        %v670 = vadd.f32 0.0, %v669
        %v671 = vpop.f32.mrf.mxu0
        %672 = vdwg.mxu0
        %673 = vst.msk [vmem:[#allocation3] sm:$0xff] %vm600, %v670
      $region88: #{representation_forward.3} parent=79 // pred_fallthru
        _
      %v674 = vld [vmem:[%s504] sm:$0xff]
      %v675 = vpack.c.bf16 %v674, %v674
      %v676 = vld [vmem:[%s3] sm:$0xf]
      %v677 = vld [vmem:[%s3 + $0x4] sm:$0xf]
      %v678 = vld [vmem:[%s3 + $0x8] sm:$0xf]
      %v679 = vld [vmem:[%s3 + $0xc] sm:$0xf]
      %v680 = vld [vmem:[%s3 + $0x10] sm:$0xf]
      %v681 = vld [vmem:[%s3 + $0x14] sm:$0xf]
      %v682 = vld [vmem:[%s3 + $0x18] sm:$0xf]
      %v683 = vld [vmem:[#allocation2] sm:$0xff]
      %v684 = vpack.c.bf16 %v683, %v683
      %v685 = vld [vmem:[%s4] sm:$0xf]
      %v686 = vld [vmem:[%s4 + $0x4] sm:$0xf]
      %v687 = vld [vmem:[%s4 + $0x8] sm:$0xf]
      %v688 = vld [vmem:[%s4 + $0xc] sm:$0xf]
      %v693 = vunpack.c.l.b16 %v685
      %v694 = vunpack.c.l.b16 %v686
      %v695 = vunpack.c.l.b16 %v687
      %v696 = vunpack.c.l.b16 %v688
      %v697 = vpack.c.b16 %v694, %v693
      %v698 = vpack.c.b16 %v696, %v695
      %vm701 = vcmask 261120
      %v703 = vsel %vm701, %v684, 0
      %705 = vmatprep.subr.bf16.mxu0 0
      %706 = vmatpush1.bf16.msra.mxu0 0
      %707 = vmatprep.subr.bf16.mxu0 0
      %708 = vmatpush1.bf16.msra.mxu0 0
      %709 = vmatprep.subr.bf16.mxu0 0
      %710 = vmatpush1.bf16.msra.mxu0 0
      %711 = vmatprep.subr.bf16.mxu0 0
      %712 = vmatpush1.bf16.msra.mxu0 0
      %713 = vmatprep.subr.bf16.mxu0 0
      %714 = vmatpush1.bf16.msra.mxu0 0
      %715 = vmatprep.subr.bf16.mxu0 0
      %716 = vmatpush1.bf16.msra.mxu0 0
      %717 = vmatprep.subr.bf16.mxu0 0
      %718 = vmatpush1.bf16.msra.mxu0 %v698
      %719 = vmatprep.subr.bf16.mxu0 0
      %720 = vmatpush1.bf16.msra.mxu0 %v697
      %721 = vmatprep.subr.bf16.mxu0 0
      %722 = vmatpush2.bf16.msra.mxu0 0
      %723 = vmatprep.subr.bf16.mxu0 0
      %724 = vmatpush2.bf16.msra.mxu0 0
      %725 = vmatprep.subr.bf16.mxu0 0
      %726 = vmatpush2.bf16.msra.mxu0 0
      %727 = vmatprep.subr.bf16.mxu0 0
      %728 = vmatpush2.bf16.msra.mxu0 0
      %729 = vmatprep.subr.bf16.mxu0 0
      %730 = vmatpush2.bf16.msra.mxu0 0
      %731 = vmatprep.subr.bf16.mxu0 0
      %732 = vmatpush2.bf16.msra.mxu0 0
      %733 = vmatprep.subr.bf16.mxu0 0
      %734 = vmatpush2.bf16.msra.mxu0 0
      %735 = vmatprep.subr.bf16.mxu0 0
      %736 = vmatpush2.bf16.msra.mxu0 0
      %737 = vmatprep.mubr.bf16.mxu0 0
      %738 = vmatmul.mubr.bf16.gmra.mxu0 %v703
      %v739 = vpop.f32.mrf.mxu0
      %v740 = vadd.f32 0.0, %v739
      %v741 = vpop.f32.mrf.mxu0
      %v742 = vpop.f32.mrf.mxu0
      %v743 = vpop.f32.mrf.mxu0
      %744 = vdwg.mxu0
      %v752 = vunpack.c.l.b16 %v676
      %v753 = vunpack.c.l.b16 %v677
      %v754 = vunpack.c.l.b16 %v678
      %v755 = vunpack.c.l.b16 %v679
      %v756 = vunpack.c.l.b16 %v680
      %v757 = vunpack.c.l.b16 %v681
      %v758 = vunpack.c.l.b16 %v682
      %v759 = vpack.c.b16 %v753, %v752
      %v760 = vpack.c.b16 %v755, %v754
      %v761 = vpack.c.b16 %v757, %v756
      %v762 = vpack.c.b16 %v758, %v758
      %vm766 = vcmask 457728
      %v768 = vsel %vm766, %v675, 0
      %vm770 = vcmask 1043456
      %v772 = vsel %vm770, %v762, 0
      %774 = vmatprep.subr.bf16.mxu0 0
      %775 = vmatpush1.bf16.msra.mxu0 0
      %776 = vmatprep.subr.bf16.mxu0 0
      %777 = vmatpush1.bf16.msra.mxu0 0
      %778 = vmatprep.subr.bf16.mxu0 0
      %779 = vmatpush1.bf16.msra.mxu0 0
      %780 = vmatprep.subr.bf16.mxu0 0
      %781 = vmatpush1.bf16.msra.mxu0 0
      %782 = vmatprep.subr.bf16.mxu0 0
      %783 = vmatpush1.bf16.msra.mxu0 %v772
      %784 = vmatprep.subr.bf16.mxu0 0
      %785 = vmatpush1.bf16.msra.mxu0 %v761
      %786 = vmatprep.subr.bf16.mxu0 0
      %787 = vmatpush1.bf16.msra.mxu0 %v760
      %788 = vmatprep.subr.bf16.mxu0 0
      %789 = vmatpush1.bf16.msra.mxu0 %v759
      %790 = vmatprep.subr.bf16.mxu0 0
      %791 = vmatpush2.bf16.msra.mxu0 0
      %792 = vmatprep.subr.bf16.mxu0 0
      %793 = vmatpush2.bf16.msra.mxu0 0
      %794 = vmatprep.subr.bf16.mxu0 0
      %795 = vmatpush2.bf16.msra.mxu0 0
      %796 = vmatprep.subr.bf16.mxu0 0
      %797 = vmatpush2.bf16.msra.mxu0 0
      %798 = vmatprep.subr.bf16.mxu0 0
      %799 = vmatpush2.bf16.msra.mxu0 0
      %800 = vmatprep.subr.bf16.mxu0 0
      %801 = vmatpush2.bf16.msra.mxu0 0
      %802 = vmatprep.subr.bf16.mxu0 0
      %803 = vmatpush2.bf16.msra.mxu0 0
      %804 = vmatprep.subr.bf16.mxu0 0
      %805 = vmatpush2.bf16.msra.mxu0 0
      %806 = vmatprep.mubr.bf16.mxu0 0
      %807 = vmatmul.mubr.bf16.gmra.mxu0 %v768
      %v808 = vpop.f32.mrf.mxu0
      %v809 = vadd.f32 %v740, %v808
      %v810 = vpop.f32.mrf.mxu0
      %v811 = vpop.f32.mrf.mxu0
      %v812 = vpop.f32.mrf.mxu0
      %813 = vdwg.mxu0
      %v814 = vld [vmem:[%s5] sm:$0x1]
      %v816 = vlaneseq
      %v817 = vshrl.u32 %v816, 7
      %v818 = vsub.s32 0, %v817
      %v819 = vrot.slane %v814, %v818
      %v821 = vadd.f32 %v809, %v819
      %v822 = vxor.u32 %v821, 2147483648
      %v823 = vmul.f32 %v822, 1.442695
      %v824 = vpow.pop %v823
      %v825 = vadd.f32 %v824, 1.0
      %v826 = vrcp.pop %v825
      %v827 = vmul.f32 1.0, %v826
      %v828 = vtanh.pop %v821
      %v829 = vld [vmem:[#allocation3] sm:$0xff]
      %831 = vrot.lane.b32.xlu0 %v829, 32
      %v832 = vpop.permute.xlu0 %831
      %v834 = vmul.f32 %v827, %v832
      %836 = vrot.lane.b32.xlu0 %v828, 64
      %v837 = vpop.permute.xlu0 %836
      %v839 = vmul.f32 %v827, %v837
      %841 = vrot.lane.b32.xlu0 %v839, 32
      %v842 = vpop.permute.xlu0 %841
      %v844 = vadd.f32 %v834, %v842
      %846 = vrot.lane.b32.xlu0 %v844, 96
      %v847 = vpop.permute.xlu0 %846
      %849 = vst.msk [vmem:[#allocation3] sm:$0xff] %vm701, %v847
      %v850 = vtanh.pop %v844
      %852 = vrot.lane.b32.xlu0 %v850, 64
      %v853 = vpop.permute.xlu0 %852
      %v855 = vmul.f32 %v827, %v853
      %857 = vrot.lane.b32.xlu0 %v855, 32
      %v858 = vpop.permute.xlu0 %857
      %860 = vst.msk [vmem:[#allocation2] sm:$0xff] %vm701, %v858
      %p861 = scmp.eq.s32.totalorder %s30, 3
      // Predicated region
      $region89: #{representation_forward.3} parent=79 // pred_check
        %p862 = pneg %p861
      $region90: #{representation_forward.3} parent=79 // pred_check_branch
        %864 = sbr.rel (%p862) target = $region92
      $region91: #{representation_forward.3} parent=79 // pred_region
        %s865 = sld [smem:[#allocation5]]
        %v866 = vlaneseq
        %v867 = vshrl.u32 %v866, 7
        %v868 = vstv %s865
        %vm869 = vcmp.lt.s32.totalorder %v867, %v868
        %v870 = vsel %vm869, 1, 0
        %v871 = vcvt.s32.f32 %v870
        %p872 = scmp.gt.s32.totalorder %s865, 1
        %s873 = scalar_select %p872, %s865, 1
        %s874 = scvt.s32.f32 %s873
        %v875 = vld [vmem:[#allocation2] sm:$0xff]
        %v876 = vld [vmem:[%s6] sm:$0x1]
        %v877 = vld [vmem:[%s7] sm:$0x1]
        %v878 = vmul.f32 %v875, %v871
        %v879 = vsel %vm701, %v878, 0.0
        %v880 = vrot.slane %v879, 4
        %v881 = vadd.f32 %v879, %v880
        %v882 = vrot.slane %v881, 2
        %v883 = vadd.f32 %v881, %v882
        %v884 = vrot.slane %v883, 1
        %v885 = vadd.f32 %v883, %v884
        %v886 = vstv %s874
        %v887 = vrcp.pop %v886
        %v888 = vmul.f32 %v885, %v887
        %v889 = vsub.f32 %v875, %v888
        %v890 = vmul.f32 %v889, %v871
        %v891 = vmul.f32 %v890, %v890
        %v892 = vsel %vm701, %v891, 0.0
        %v893 = vrot.slane %v892, 4
        %v894 = vadd.f32 %v892, %v893
        %v895 = vrot.slane %v894, 2
        %v896 = vadd.f32 %v894, %v895
        %v897 = vrot.slane %v896, 1
        %v898 = vadd.f32 %v896, %v897
        %v899 = vmul.f32 %v898, %v887
        %v900 = vadd.f32 %v899, 1e-05
        %v901 = vrsqrt.pop %v900
        %v902 = vmul.f32 %v889, %v901
        %v904 = vlaneseq
        %v905 = vshrl.u32 %v904, 7
        %v906 = vsub.s32 0, %v905
        %v907 = vrot.slane %v876, %v906
        %v909 = vmul.f32 %v902, %v907
        %v911 = vlaneseq
        %v912 = vshrl.u32 %v911, 7
        %v913 = vsub.s32 0, %v912
        %v914 = vrot.slane %v877, %v913
        %v916 = vadd.f32 %v909, %v914
        %v917 = vpack.c.bf16 %v916, %v916
        %v918 = vld [vmem:[%s8] sm:$0xf]
        %v919 = vld [vmem:[%s8 + $0x4] sm:$0xf]
        %v920 = vld [vmem:[%s8 + $0x8] sm:$0xf]
        %v921 = vld [vmem:[%s8 + $0xc] sm:$0xf]
        %v922 = vld [vmem:[%s9] sm:$0x1]
        %v924 = vlaneseq
        %v925 = vshrl.u32 %v924, 7
        %v926 = vsub.s32 0, %v925
        %v927 = vrot.slane %v922, %v926
        %v933 = vunpack.c.l.b16 %v918
        %v934 = vunpack.c.l.b16 %v919
        %v935 = vunpack.c.l.b16 %v920
        %v936 = vunpack.c.l.b16 %v921
        %v937 = vpack.c.b16 %v934, %v933
        %v938 = vpack.c.b16 %v936, %v935
        %v942 = vsel %vm701, %v917, 0
        %944 = vmatprep.subr.bf16.mxu0 0
        %945 = vmatpush1.bf16.msra.mxu0 0
        %946 = vmatprep.subr.bf16.mxu0 0
        %947 = vmatpush1.bf16.msra.mxu0 0
        %948 = vmatprep.subr.bf16.mxu0 0
        %949 = vmatpush1.bf16.msra.mxu0 0
        %950 = vmatprep.subr.bf16.mxu0 0
        %951 = vmatpush1.bf16.msra.mxu0 0
        %952 = vmatprep.subr.bf16.mxu0 0
        %953 = vmatpush1.bf16.msra.mxu0 0
        %954 = vmatprep.subr.bf16.mxu0 0
        %955 = vmatpush1.bf16.msra.mxu0 0
        %956 = vmatprep.subr.bf16.mxu0 0
        %957 = vmatpush1.bf16.msra.mxu0 %v938
        %958 = vmatprep.subr.bf16.mxu0 0
        %959 = vmatpush1.bf16.msra.mxu0 %v937
        %960 = vmatprep.subr.bf16.mxu0 0
        %961 = vmatpush2.bf16.msra.mxu0 0
        %962 = vmatprep.subr.bf16.mxu0 0
        %963 = vmatpush2.bf16.msra.mxu0 0
        %964 = vmatprep.subr.bf16.mxu0 0
        %965 = vmatpush2.bf16.msra.mxu0 0
        %966 = vmatprep.subr.bf16.mxu0 0
        %967 = vmatpush2.bf16.msra.mxu0 0
        %968 = vmatprep.subr.bf16.mxu0 0
        %969 = vmatpush2.bf16.msra.mxu0 0
        %970 = vmatprep.subr.bf16.mxu0 0
        %971 = vmatpush2.bf16.msra.mxu0 0
        %972 = vmatprep.subr.bf16.mxu0 0
        %973 = vmatpush2.bf16.msra.mxu0 0
        %974 = vmatprep.subr.bf16.mxu0 0
        %975 = vmatpush2.bf16.msra.mxu0 0
        %976 = vmatprep.mubr.bf16.mxu0 0
        %977 = vmatmul.mubr.bf16.gmra.mxu0 %v942
        %v978 = vpop.f32.mrf.mxu0
        %v979 = vadd.f32 %v927, %v978
        %v980 = vpop.f32.mrf.mxu0
        %v981 = vpop.f32.mrf.mxu0
        %v982 = vpop.f32.mrf.mxu0
        %983 = vdwg.mxu0
        %v984 = vxor.u32 %v979, 2147483648
        %v985 = vmul.f32 %v984, 1.442695
        %v986 = vpow.pop %v985
        %v987 = vadd.f32 %v986, 1.0
        %v988 = vrcp.pop %v987
        %v989 = vmul.f32 1.0, %v988
        %v990 = vld [vmem:[%s10] sm:$0x1]
        %v991 = vld [vmem:[%s11] sm:$0x1]
        %v992 = vmul.f32 %v989, %v871
        %v993 = vsel %vm701, %v992, 0.0
        %v994 = vrot.slane %v993, 4
        %v995 = vadd.f32 %v993, %v994
        %v996 = vrot.slane %v995, 2
        %v997 = vadd.f32 %v995, %v996
        %v998 = vrot.slane %v997, 1
        %v999 = vadd.f32 %v997, %v998
        %v1000 = vmul.f32 %v999, %v887
        %v1001 = vsub.f32 %v989, %v1000
        %v1002 = vmul.f32 %v1001, %v871
        %v1003 = vmul.f32 %v1002, %v1002
        %v1004 = vsel %vm701, %v1003, 0.0
        %v1005 = vrot.slane %v1004, 4
        %v1006 = vadd.f32 %v1004, %v1005
        %v1007 = vrot.slane %v1006, 2
        %v1008 = vadd.f32 %v1006, %v1007
        %v1009 = vrot.slane %v1008, 1
        %v1010 = vadd.f32 %v1008, %v1009
        %v1011 = vmul.f32 %v1010, %v887
        %v1012 = vadd.f32 %v1011, 1e-05
        %v1013 = vrsqrt.pop %v1012
        %v1014 = vmul.f32 %v1001, %v1013
        %v1016 = vlaneseq
        %v1017 = vshrl.u32 %v1016, 7
        %v1018 = vsub.s32 0, %v1017
        %v1019 = vrot.slane %v990, %v1018
        %v1021 = vmul.f32 %v1014, %v1019
        %v1023 = vlaneseq
        %v1024 = vshrl.u32 %v1023, 7
        %v1025 = vsub.s32 0, %v1024
        %v1026 = vrot.slane %v991, %v1025
        %v1028 = vadd.f32 %v1021, %v1026
        %v1029 = vpack.c.bf16 %v1028, %v1028
        %v1030 = vld [vmem:[%s12] sm:$0xf]
        %v1031 = vld [vmem:[%s12 + $0x4] sm:$0xf]
        %v1032 = vld [vmem:[%s12 + $0x8] sm:$0xf]
        %v1033 = vld [vmem:[%s12 + $0xc] sm:$0xf]
        %v1034 = vld [vmem:[%s13] sm:$0x1]
        %v1036 = vlaneseq
        %v1037 = vshrl.u32 %v1036, 7
        %v1038 = vsub.s32 0, %v1037
        %v1039 = vrot.slane %v1034, %v1038
        %v1045 = vunpack.c.l.b16 %v1030
        %v1046 = vunpack.c.l.b16 %v1031
        %v1047 = vunpack.c.l.b16 %v1032
        %v1048 = vunpack.c.l.b16 %v1033
        %v1049 = vpack.c.b16 %v1046, %v1045
        %v1050 = vpack.c.b16 %v1048, %v1047
        %v1054 = vsel %vm701, %v1029, 0
        %1056 = vmatprep.subr.bf16.mxu0 0
        %1057 = vmatpush1.bf16.msra.mxu0 0
        %1058 = vmatprep.subr.bf16.mxu0 0
        %1059 = vmatpush1.bf16.msra.mxu0 0
        %1060 = vmatprep.subr.bf16.mxu0 0
        %1061 = vmatpush1.bf16.msra.mxu0 0
        %1062 = vmatprep.subr.bf16.mxu0 0
        %1063 = vmatpush1.bf16.msra.mxu0 0
        %1064 = vmatprep.subr.bf16.mxu0 0
        %1065 = vmatpush1.bf16.msra.mxu0 0
        %1066 = vmatprep.subr.bf16.mxu0 0
        %1067 = vmatpush1.bf16.msra.mxu0 0
        %1068 = vmatprep.subr.bf16.mxu0 0
        %1069 = vmatpush1.bf16.msra.mxu0 %v1050
        %1070 = vmatprep.subr.bf16.mxu0 0
        %1071 = vmatpush1.bf16.msra.mxu0 %v1049
        %1072 = vmatprep.subr.bf16.mxu0 0
        %1073 = vmatpush2.bf16.msra.mxu0 0
        %1074 = vmatprep.subr.bf16.mxu0 0
        %1075 = vmatpush2.bf16.msra.mxu0 0
        %1076 = vmatprep.subr.bf16.mxu0 0
        %1077 = vmatpush2.bf16.msra.mxu0 0
        %1078 = vmatprep.subr.bf16.mxu0 0
        %1079 = vmatpush2.bf16.msra.mxu0 0
        %1080 = vmatprep.subr.bf16.mxu0 0
        %1081 = vmatpush2.bf16.msra.mxu0 0
        %1082 = vmatprep.subr.bf16.mxu0 0
        %1083 = vmatpush2.bf16.msra.mxu0 0
        %1084 = vmatprep.subr.bf16.mxu0 0
        %1085 = vmatpush2.bf16.msra.mxu0 0
        %1086 = vmatprep.subr.bf16.mxu0 0
        %1087 = vmatpush2.bf16.msra.mxu0 0
        %1088 = vmatprep.mubr.bf16.mxu0 0
        %1089 = vmatmul.mubr.bf16.gmra.mxu0 %v1054
        %v1090 = vpop.f32.mrf.mxu0
        %v1091 = vadd.f32 %v1039, %v1090
        %v1092 = vpop.f32.mrf.mxu0
        %v1093 = vpop.f32.mrf.mxu0
        %v1094 = vpop.f32.mrf.mxu0
        %1095 = vdwg.mxu0
        %v1096 = vxor.u32 %v1091, 2147483648
        %v1097 = vmul.f32 %v1096, 1.442695
        %v1098 = vpow.pop %v1097
        %v1099 = vadd.f32 %v1098, 1.0
        %v1100 = vrcp.pop %v1099
        %v1101 = vmul.f32 1.0, %v1100
        %v1102 = vld [vmem:[%s14] sm:$0x1]
        %v1104 = vlaneseq
        %v1105 = vshrl.u32 %v1104, 7
        %v1106 = vsub.s32 0, %v1105
        %v1107 = vrot.slane %v1102, %v1106
        %v1109 = vmul.f32 %v1101, %v1107
        %v1110 = vsel %vm701, %v1109, 0.0
        %1111 = vadd.xlane.f32.xlu0 %v1110
        %v1112 = vpop.xlane.xlu0 %1111
        %v1113 = vld [vmem:[#allocation6] sm:$0x1]
        %v1115 = vlaneseq
        %v1116 = vshrl.u32 %v1115, 7
        %v1117 = vsub.s32 0, %v1116
        %v1118 = vrot.slane %v1113, %v1117
        %v1120 = vadd.f32 %v1112, %v1118
        %v1121 = vxor.u32 %v1120, 2147483648
        %v1122 = vmul.f32 %v1121, 1.442695
        %v1123 = vpow.pop %v1122
        %v1124 = vadd.f32 %v1123, 1.0
        %v1125 = vrcp.pop %v1124
        %v1126 = vmul.f32 1.0, %v1125
        %v1127 = vmul.f32 %v1126, %v871
        %vm1128 = vcmask 7168
        %1129 = vst.msk [vmem:[%s16] sm:$0xff] %vm1128, %v1127
      $region92: #{representation_forward.3} parent=79 // pred_fallthru
        _
      // Predicated region
      $region93: #{representation_forward.3} parent=79 // pred_check
        %p1130 = pneg %p372
      $region94: #{representation_forward.3} parent=79 // pred_check_branch
        %1132 = sbr.rel (%p1130) target = $region96
      $region95: #{representation_forward.3} parent=79 // pred_region
        _
      $region96: #{representation_forward.3} parent=79 // pred_fallthru
        _
      // Predicated region
      $region97: #{representation_forward.3} parent=79 // pred_check
        %p1133 = pneg %p372
      $region98: #{representation_forward.3} parent=79 // pred_check_branch
        %1135 = sbr.rel (%p1133) target = $region100
      $region99: #{representation_forward.3} parent=79 // pred_region
        _
      $region100: #{representation_forward.3} parent=79 // pred_fallthru
        _
    $region80: #{representation_forward.3} parent=5 // pred_fallthru
      _
    %p1136 = scmp.le.s32.totalorder 2, %s25
    // Predicated region
    $region101: #{representation_forward.3} parent=5 // pred_check
      %p1137 = pneg %p1136
    $region102: #{representation_forward.3} parent=5 // pred_check_branch
      %1139 = sbr.rel (%p1137) target = $region104
    $region103: #{representation_forward.3} parent=5 // pred_region
      %s1140 = ssub.s32 %s25, 2
    $region104: #{representation_forward.3} parent=5 // pred_fallthru
      _
  $region6: #{representation_forward.3} parent=0 // loop_footer
    %s29 = sadd.s32 1, %s25
  $region7: #{representation_forward.3} parent=0 // loop_footer_branch
    %24 = sbr.rel target = $region3
  $region8: #{representation_forward.3} parent=0 // loop_exit
    _

// kernel: representation_forward.2
$region0: #{representation_forward.2}
  #allocation0 [shape = 'u32[]', space=smem, size = 0x4, offset = 0x4, fixed_abs, tag = 'smem constant byte address 0x4 - core index']
  #allocation1 [shape = 'u32[144,128]{1,0:T(1,128)}', space=vmem, size = 0x12000, scoped, tag = 'internal scratch']
  %s0 = inlined_call_operand.vmem [shape: f32[320,16], index: 0, kind: input, shape index: {}]
  %s1 = inlined_call_operand.vmem [shape: bf16[16,128], index: 1, kind: input, shape index: {}]
  %s2 = inlined_call_operand.vmem [shape: bf16[32,128], index: 2, kind: input, shape index: {}]
  %s3 = inlined_call_operand.vmem [shape: f32[1,128], index: 3, kind: input, shape index: {}]
  %s4 = inlined_call_operand.vmem [shape: bf16[32,32], index: 4, kind: input, shape index: {}]
  %s5 = inlined_call_operand.vmem [shape: f32[1,32], index: 5, kind: input, shape index: {}]
  %s6 = inlined_call_operand.vmem [shape: f32[1,32], index: 6, kind: input, shape index: {}]
  %s7 = inlined_call_operand.vmem [shape: f32[1,32], index: 7, kind: input, shape index: {}]
  %s8 = inlined_call_operand.vmem [shape: f32[32,32], index: 8, kind: output, shape index: {}]
  %s9 = sld [smem:[#allocation0]]
  $region42: #{representation_forward.2} parent=0
    _
  %s11 = ssub.s32 1, %s9
  %s12 = scalar_select 0, %s11, %s9
  // Predicated region
  $region2: #{representation_forward.2} parent=0 // pred_check
    _
  $region3: #{representation_forward.2} parent=0 // pred_check_branch
    %14 = sbr.rel (0) target = $region5
  $region4: #{representation_forward.2} parent=0 // pred_region
    _
  $region5: #{representation_forward.2} parent=0 // pred_fallthru
    _
  // Predicated region
  $region6: #{representation_forward.2} parent=0 // pred_check
    _
  $region7: #{representation_forward.2} parent=0 // pred_check_branch
    %16 = sbr.rel (0) target = $region9
  $region8: #{representation_forward.2} parent=0 // pred_region
    _
  $region9: #{representation_forward.2} parent=0 // pred_fallthru
    _
  // Predicated region
  $region10: #{representation_forward.2} parent=0 // pred_check
    _
  $region11: #{representation_forward.2} parent=0 // pred_check_branch
    %18 = sbr.rel (0) target = $region13
  $region12: #{representation_forward.2} parent=0 // pred_region
    _
  $region13: #{representation_forward.2} parent=0 // pred_fallthru
    _
  // Predicated region
  $region14: #{representation_forward.2} parent=0 // pred_check
    _
  $region15: #{representation_forward.2} parent=0 // pred_check_branch
    %20 = sbr.rel (0) target = $region17
  $region16: #{representation_forward.2} parent=0 // pred_region
    _
  $region17: #{representation_forward.2} parent=0 // pred_fallthru
    _
  // Predicated region
  $region18: #{representation_forward.2} parent=0 // pred_check
    _
  $region19: #{representation_forward.2} parent=0 // pred_check_branch
    %22 = sbr.rel (0) target = $region21
  $region20: #{representation_forward.2} parent=0 // pred_region
    _
  $region21: #{representation_forward.2} parent=0 // pred_fallthru
    _
  // Predicated region
  $region22: #{representation_forward.2} parent=0 // pred_check
    _
  $region23: #{representation_forward.2} parent=0 // pred_check_branch
    %24 = sbr.rel (0) target = $region25
  $region24: #{representation_forward.2} parent=0 // pred_region
    _
  $region25: #{representation_forward.2} parent=0 // pred_fallthru
    _
  // Predicated region
  $region26: #{representation_forward.2} parent=0 // pred_check
    _
  $region27: #{representation_forward.2} parent=0 // pred_check_branch
    %26 = sbr.rel (0) target = $region29
  $region28: #{representation_forward.2} parent=0 // pred_region
    _
  $region29: #{representation_forward.2} parent=0 // pred_fallthru
    _
  // Predicated region
  $region30: #{representation_forward.2} parent=0 // pred_check
    _
  $region31: #{representation_forward.2} parent=0 // pred_check_branch
    %28 = sbr.rel (0) target = $region33
  $region32: #{representation_forward.2} parent=0 // pred_region
    _
  $region33: #{representation_forward.2} parent=0 // pred_fallthru
    _
  %v30 = vld [vmem:[%s0] sm:$0xff]
  %v31 = vld [vmem:[%s0 + $0x8] sm:$0xff]
  %v32 = vld [vmem:[%s0 + $0x10] sm:$0xff]
  %v33 = vld [vmem:[%s0 + $0x18] sm:$0xff]
  %v34 = vld [vmem:[%s0 + $0x20] sm:$0xff]
  %v35 = vld [vmem:[%s0 + $0x28] sm:$0xff]
  %v36 = vld [vmem:[%s0 + $0x30] sm:$0xff]
  %v37 = vld [vmem:[%s0 + $0x38] sm:$0xff]
  %v38 = vld [vmem:[%s0 + $0x40] sm:$0xff]
  %v39 = vld [vmem:[%s0 + $0x48] sm:$0xff]
  %v40 = vld [vmem:[%s0 + $0x50] sm:$0xff]
  %v41 = vld [vmem:[%s0 + $0x58] sm:$0xff]
  %v42 = vld [vmem:[%s0 + $0x60] sm:$0xff]
  %v43 = vld [vmem:[%s0 + $0x68] sm:$0xff]
  %v44 = vld [vmem:[%s0 + $0x70] sm:$0xff]
  %v45 = vld [vmem:[%s0 + $0x78] sm:$0xff]
  %v46 = vld [vmem:[%s0 + $0x80] sm:$0xff]
  %v47 = vld [vmem:[%s0 + $0x88] sm:$0xff]
  %v48 = vld [vmem:[%s0 + $0x90] sm:$0xff]
  %v49 = vld [vmem:[%s0 + $0x98] sm:$0xff]
  %v50 = vld [vmem:[%s0 + $0xa0] sm:$0xff]
  %v51 = vld [vmem:[%s0 + $0xa8] sm:$0xff]
  %v52 = vld [vmem:[%s0 + $0xb0] sm:$0xff]
  %v53 = vld [vmem:[%s0 + $0xb8] sm:$0xff]
  %v54 = vld [vmem:[%s0 + $0xc0] sm:$0xff]
  %v55 = vld [vmem:[%s0 + $0xc8] sm:$0xff]
  %v56 = vld [vmem:[%s0 + $0xd0] sm:$0xff]
  %v57 = vld [vmem:[%s0 + $0xd8] sm:$0xff]
  %v58 = vld [vmem:[%s0 + $0xe0] sm:$0xff]
  %v59 = vld [vmem:[%s0 + $0xe8] sm:$0xff]
  %v60 = vld [vmem:[%s0 + $0xf0] sm:$0xff]
  %v61 = vld [vmem:[%s0 + $0xf8] sm:$0xff]
  %v62 = vld [vmem:[%s0 + $0x100] sm:$0xff]
  %v63 = vld [vmem:[%s0 + $0x108] sm:$0xff]
  %v64 = vld [vmem:[%s0 + $0x110] sm:$0xff]
  %v65 = vld [vmem:[%s0 + $0x118] sm:$0xff]
  %v66 = vld [vmem:[%s0 + $0x120] sm:$0xff]
  %v67 = vld [vmem:[%s0 + $0x128] sm:$0xff]
  %v68 = vld [vmem:[%s0 + $0x130] sm:$0xff]
  %v69 = vld [vmem:[%s0 + $0x138] sm:$0xff]
  %v70 = vpack.c.bf16 %v31, %v30
  %v71 = vpack.c.bf16 %v33, %v32
  %v72 = vpack.c.bf16 %v35, %v34
  %v73 = vpack.c.bf16 %v37, %v36
  %v74 = vpack.c.bf16 %v39, %v38
  %v75 = vpack.c.bf16 %v41, %v40
  %v76 = vpack.c.bf16 %v43, %v42
  %v77 = vpack.c.bf16 %v45, %v44
  %v78 = vpack.c.bf16 %v47, %v46
  %v79 = vpack.c.bf16 %v49, %v48
  %v80 = vpack.c.bf16 %v51, %v50
  %v81 = vpack.c.bf16 %v53, %v52
  %v82 = vpack.c.bf16 %v55, %v54
  %v83 = vpack.c.bf16 %v57, %v56
  %v84 = vpack.c.bf16 %v59, %v58
  %v85 = vpack.c.bf16 %v61, %v60
  %v86 = vpack.c.bf16 %v63, %v62
  %v87 = vpack.c.bf16 %v65, %v64
  %v88 = vpack.c.bf16 %v67, %v66
  %v89 = vpack.c.bf16 %v69, %v68
  %v90 = vld [vmem:[%s1] sm:$0xf]
  %v91 = vld [vmem:[%s1 + $0x4] sm:$0xf]
  %v94 = vunpack.c.l.b16 %v90
  %v95 = vunpack.c.l.b16 %v91
  %v96 = vpack.c.b16 %v95, %v94
  %vm98 = vcmask 130048
  %v100 = vsel %vm98, %v70, 0
  %v103 = vsel %vm98, %v71, 0
  %v106 = vsel %vm98, %v72, 0
  %v109 = vsel %vm98, %v73, 0
  %v112 = vsel %vm98, %v74, 0
  %v115 = vsel %vm98, %v75, 0
  %v118 = vsel %vm98, %v76, 0
  %v121 = vsel %vm98, %v77, 0
  %v124 = vsel %vm98, %v78, 0
  %v127 = vsel %vm98, %v79, 0
  %v130 = vsel %vm98, %v80, 0
  %v133 = vsel %vm98, %v81, 0
  %v136 = vsel %vm98, %v82, 0
  %v139 = vsel %vm98, %v83, 0
  %v142 = vsel %vm98, %v84, 0
  %v145 = vsel %vm98, %v85, 0
  %v148 = vsel %vm98, %v86, 0
  %v151 = vsel %vm98, %v87, 0
  %v154 = vsel %vm98, %v88, 0
  %v157 = vsel %vm98, %v89, 0
  %159 = vmatprep.subr.bf16.mxu0 0
  %160 = vmatpush1.bf16.msra.mxu0 0
  %161 = vmatprep.subr.bf16.mxu0 0
  %162 = vmatpush1.bf16.msra.mxu0 0
  %163 = vmatprep.subr.bf16.mxu0 0
  %164 = vmatpush1.bf16.msra.mxu0 0
  %165 = vmatprep.subr.bf16.mxu0 0
  %166 = vmatpush1.bf16.msra.mxu0 0
  %167 = vmatprep.subr.bf16.mxu0 0
  %168 = vmatpush1.bf16.msra.mxu0 0
  %169 = vmatprep.subr.bf16.mxu0 0
  %170 = vmatpush1.bf16.msra.mxu0 0
  %171 = vmatprep.subr.bf16.mxu0 0
  %172 = vmatpush1.bf16.msra.mxu0 0
  %173 = vmatprep.subr.bf16.mxu0 0
  %174 = vmatpush1.bf16.msra.mxu0 %v96
  %175 = vmatprep.subr.bf16.mxu0 0
  %176 = vmatpush2.bf16.msra.mxu0 0
  %177 = vmatprep.subr.bf16.mxu0 0
  %178 = vmatpush2.bf16.msra.mxu0 0
  %179 = vmatprep.subr.bf16.mxu0 0
  %180 = vmatpush2.bf16.msra.mxu0 0
  %181 = vmatprep.subr.bf16.mxu0 0
  %182 = vmatpush2.bf16.msra.mxu0 0
  %183 = vmatprep.subr.bf16.mxu0 0
  %184 = vmatpush2.bf16.msra.mxu0 0
  %185 = vmatprep.subr.bf16.mxu0 0
  %186 = vmatpush2.bf16.msra.mxu0 0
  %187 = vmatprep.subr.bf16.mxu0 0
  %188 = vmatpush2.bf16.msra.mxu0 0
  %189 = vmatprep.subr.bf16.mxu0 0
  %190 = vmatpush2.bf16.msra.mxu0 0
  %191 = vmatprep.mubr.bf16.mxu0 0
  %192 = vmatmul.mubr.bf16.gmra.mxu0 %v100
  %v193 = vpop.f32.mrf.mxu0
  %v194 = vadd.f32 0.0, %v193
  %v195 = vpop.f32.mrf.mxu0
  %v196 = vpop.f32.mrf.mxu0
  %v197 = vadd.f32 0.0, %v196
  %v198 = vpop.f32.mrf.mxu0
  %199 = vmatprep.mubr.bf16.mxu0 0
  %200 = vmatmul.mubr.bf16.gmra.mxu0 %v103
  %v201 = vpop.f32.mrf.mxu0
  %v202 = vadd.f32 0.0, %v201
  %v203 = vpop.f32.mrf.mxu0
  %v204 = vpop.f32.mrf.mxu0
  %v205 = vadd.f32 0.0, %v204
  %v206 = vpop.f32.mrf.mxu0
  %207 = vmatprep.mubr.bf16.mxu0 0
  %208 = vmatmul.mubr.bf16.gmra.mxu0 %v106
  %v209 = vpop.f32.mrf.mxu0
  %v210 = vadd.f32 0.0, %v209
  %v211 = vpop.f32.mrf.mxu0
  %v212 = vpop.f32.mrf.mxu0
  %v213 = vadd.f32 0.0, %v212
  %v214 = vpop.f32.mrf.mxu0
  %215 = vmatprep.mubr.bf16.mxu0 0
  %216 = vmatmul.mubr.bf16.gmra.mxu0 %v109
  %v217 = vpop.f32.mrf.mxu0
  %v218 = vadd.f32 0.0, %v217
  %v219 = vpop.f32.mrf.mxu0
  %v220 = vpop.f32.mrf.mxu0
  %v221 = vadd.f32 0.0, %v220
  %v222 = vpop.f32.mrf.mxu0
  %223 = vmatprep.mubr.bf16.mxu0 0
  %224 = vmatmul.mubr.bf16.gmra.mxu0 %v112
  %v225 = vpop.f32.mrf.mxu0
  %v226 = vadd.f32 0.0, %v225
  %v227 = vpop.f32.mrf.mxu0
  %v228 = vpop.f32.mrf.mxu0
  %v229 = vadd.f32 0.0, %v228
  %v230 = vpop.f32.mrf.mxu0
  %231 = vmatprep.mubr.bf16.mxu0 0
  %232 = vmatmul.mubr.bf16.gmra.mxu0 %v115
  %v233 = vpop.f32.mrf.mxu0
  %v234 = vadd.f32 0.0, %v233
  %v235 = vpop.f32.mrf.mxu0
  %v236 = vpop.f32.mrf.mxu0
  %v237 = vadd.f32 0.0, %v236
  %v238 = vpop.f32.mrf.mxu0
  %239 = vmatprep.mubr.bf16.mxu0 0
  %240 = vmatmul.mubr.bf16.gmra.mxu0 %v118
  %v241 = vpop.f32.mrf.mxu0
  %v242 = vadd.f32 0.0, %v241
  %v243 = vpop.f32.mrf.mxu0
  %v244 = vpop.f32.mrf.mxu0
  %v245 = vadd.f32 0.0, %v244
  %v246 = vpop.f32.mrf.mxu0
  %247 = vmatprep.mubr.bf16.mxu0 0
  %248 = vmatmul.mubr.bf16.gmra.mxu0 %v121
  %v249 = vpop.f32.mrf.mxu0
  %v250 = vadd.f32 0.0, %v249
  %v251 = vpop.f32.mrf.mxu0
  %v252 = vpop.f32.mrf.mxu0
  %v253 = vadd.f32 0.0, %v252
  %v254 = vpop.f32.mrf.mxu0
  %255 = vmatprep.mubr.bf16.mxu0 0
  %256 = vmatmul.mubr.bf16.gmra.mxu0 %v124
  %v257 = vpop.f32.mrf.mxu0
  %v258 = vadd.f32 0.0, %v257
  %v259 = vpop.f32.mrf.mxu0
  %v260 = vpop.f32.mrf.mxu0
  %v261 = vadd.f32 0.0, %v260
  %v262 = vpop.f32.mrf.mxu0
  %263 = vmatprep.mubr.bf16.mxu0 0
  %264 = vmatmul.mubr.bf16.gmra.mxu0 %v127
  %v265 = vpop.f32.mrf.mxu0
  %v266 = vadd.f32 0.0, %v265
  %v267 = vpop.f32.mrf.mxu0
  %v268 = vpop.f32.mrf.mxu0
  %v269 = vadd.f32 0.0, %v268
  %v270 = vpop.f32.mrf.mxu0
  %271 = vmatprep.mubr.bf16.mxu0 0
  %272 = vmatmul.mubr.bf16.gmra.mxu0 %v130
  %v273 = vpop.f32.mrf.mxu0
  %v274 = vadd.f32 0.0, %v273
  %v275 = vpop.f32.mrf.mxu0
  %v276 = vpop.f32.mrf.mxu0
  %v277 = vadd.f32 0.0, %v276
  %v278 = vpop.f32.mrf.mxu0
  %279 = vmatprep.mubr.bf16.mxu0 0
  %280 = vmatmul.mubr.bf16.gmra.mxu0 %v133
  %v281 = vpop.f32.mrf.mxu0
  %v282 = vadd.f32 0.0, %v281
  %v283 = vpop.f32.mrf.mxu0
  %v284 = vpop.f32.mrf.mxu0
  %v285 = vadd.f32 0.0, %v284
  %v286 = vpop.f32.mrf.mxu0
  %287 = vmatprep.mubr.bf16.mxu0 0
  %288 = vmatmul.mubr.bf16.gmra.mxu0 %v136
  %v289 = vpop.f32.mrf.mxu0
  %v290 = vadd.f32 0.0, %v289
  %v291 = vpop.f32.mrf.mxu0
  %v292 = vpop.f32.mrf.mxu0
  %v293 = vadd.f32 0.0, %v292
  %v294 = vpop.f32.mrf.mxu0
  %295 = vmatprep.mubr.bf16.mxu0 0
  %296 = vmatmul.mubr.bf16.gmra.mxu0 %v139
  %v297 = vpop.f32.mrf.mxu0
  %v298 = vadd.f32 0.0, %v297
  %v299 = vpop.f32.mrf.mxu0
  %v300 = vpop.f32.mrf.mxu0
  %v301 = vadd.f32 0.0, %v300
  %v302 = vpop.f32.mrf.mxu0
  %303 = vmatprep.mubr.bf16.mxu0 0
  %304 = vmatmul.mubr.bf16.gmra.mxu0 %v142
  %v305 = vpop.f32.mrf.mxu0
  %v306 = vadd.f32 0.0, %v305
  %v307 = vpop.f32.mrf.mxu0
  %v308 = vpop.f32.mrf.mxu0
  %v309 = vadd.f32 0.0, %v308
  %v310 = vpop.f32.mrf.mxu0
  %311 = vmatprep.mubr.bf16.mxu0 0
  %312 = vmatmul.mubr.bf16.gmra.mxu0 %v145
  %v313 = vpop.f32.mrf.mxu0
  %v314 = vadd.f32 0.0, %v313
  %v315 = vpop.f32.mrf.mxu0
  %v316 = vpop.f32.mrf.mxu0
  %v317 = vadd.f32 0.0, %v316
  %v318 = vpop.f32.mrf.mxu0
  %319 = vmatprep.mubr.bf16.mxu0 0
  %320 = vmatmul.mubr.bf16.gmra.mxu0 %v148
  %v321 = vpop.f32.mrf.mxu0
  %v322 = vadd.f32 0.0, %v321
  %v323 = vpop.f32.mrf.mxu0
  %v324 = vpop.f32.mrf.mxu0
  %v325 = vadd.f32 0.0, %v324
  %v326 = vpop.f32.mrf.mxu0
  %327 = vmatprep.mubr.bf16.mxu0 0
  %328 = vmatmul.mubr.bf16.gmra.mxu0 %v151
  %v329 = vpop.f32.mrf.mxu0
  %v330 = vadd.f32 0.0, %v329
  %v331 = vpop.f32.mrf.mxu0
  %v332 = vpop.f32.mrf.mxu0
  %v333 = vadd.f32 0.0, %v332
  %v334 = vpop.f32.mrf.mxu0
  %335 = vmatprep.mubr.bf16.mxu0 0
  %336 = vmatmul.mubr.bf16.gmra.mxu0 %v154
  %v337 = vpop.f32.mrf.mxu0
  %v338 = vadd.f32 0.0, %v337
  %v339 = vpop.f32.mrf.mxu0
  %v340 = vpop.f32.mrf.mxu0
  %v341 = vadd.f32 0.0, %v340
  %v342 = vpop.f32.mrf.mxu0
  %343 = vmatprep.mubr.bf16.mxu0 0
  %344 = vmatmul.mubr.bf16.gmra.mxu0 %v157
  %v345 = vpop.f32.mrf.mxu0
  %v346 = vadd.f32 0.0, %v345
  %v347 = vpop.f32.mrf.mxu0
  %v348 = vpop.f32.mrf.mxu0
  %v349 = vadd.f32 0.0, %v348
  %v350 = vpop.f32.mrf.mxu0
  %351 = vdwg.mxu0
  %v352 = vld [vmem:[%s2] sm:$0xf]
  %v353 = vld [vmem:[%s2 + $0x4] sm:$0xf]
  %v354 = vld [vmem:[%s2 + $0x8] sm:$0xf]
  %v355 = vld [vmem:[%s2 + $0xc] sm:$0xf]
  %v356 = vld [vmem:[%s3] sm:$0x1]
  %v361 = vunpack.c.l.b16 %v352
  %v362 = vunpack.c.l.b16 %v353
  %v363 = vunpack.c.l.b16 %v354
  %v364 = vunpack.c.l.b16 %v355
  %v365 = vpack.c.b16 %v362, %v361
  %v366 = vpack.c.b16 %v364, %v363
  %vm369 = vcmask 261120
  %v371 = vsel %vm369, 0, 0
  %373 = vmatprep.subr.bf16.mxu0 0
  %374 = vmatpush1.bf16.msra.mxu0 0
  %375 = vmatprep.subr.bf16.mxu0 0
  %376 = vmatpush1.bf16.msra.mxu0 0
  %377 = vmatprep.subr.bf16.mxu0 0
  %378 = vmatpush1.bf16.msra.mxu0 0
  %379 = vmatprep.subr.bf16.mxu0 0
  %380 = vmatpush1.bf16.msra.mxu0 0
  %381 = vmatprep.subr.bf16.mxu0 0
  %382 = vmatpush1.bf16.msra.mxu0 0
  %383 = vmatprep.subr.bf16.mxu0 0
  %384 = vmatpush1.bf16.msra.mxu0 0
  %385 = vmatprep.subr.bf16.mxu0 0
  %386 = vmatpush1.bf16.msra.mxu0 %v366
  %387 = vmatprep.subr.bf16.mxu0 0
  %388 = vmatpush1.bf16.msra.mxu0 %v365
  %389 = vmatprep.subr.bf16.mxu0 0
  %390 = vmatpush2.bf16.msra.mxu0 0
  %391 = vmatprep.subr.bf16.mxu0 0
  %392 = vmatpush2.bf16.msra.mxu0 0
  %393 = vmatprep.subr.bf16.mxu0 0
  %394 = vmatpush2.bf16.msra.mxu0 0
  %395 = vmatprep.subr.bf16.mxu0 0
  %396 = vmatpush2.bf16.msra.mxu0 0
  %397 = vmatprep.subr.bf16.mxu0 0
  %398 = vmatpush2.bf16.msra.mxu0 0
  %399 = vmatprep.subr.bf16.mxu0 0
  %400 = vmatpush2.bf16.msra.mxu0 0
  %401 = vmatprep.subr.bf16.mxu0 0
  %402 = vmatpush2.bf16.msra.mxu0 0
  %403 = vmatprep.subr.bf16.mxu0 0
  %404 = vmatpush2.bf16.msra.mxu0 0
  %405 = vmatprep.mubr.bf16.mxu0 0
  %406 = vmatmul.mubr.bf16.gmra.mxu0 %v371
  %v407 = vpop.f32.mrf.mxu0
  %v408 = vadd.f32 %v194, %v407
  %v409 = vpop.f32.mrf.mxu0
  %v410 = vpop.f32.mrf.mxu0
  %v411 = vadd.f32 %v197, %v410
  %v412 = vpop.f32.mrf.mxu0
  %413 = vmatprep.mubr.bf16.mxu0 0
  %414 = vmatmul.mubr.bf16.gmra.mxu0 %v371
  %v415 = vpop.f32.mrf.mxu0
  %v416 = vadd.f32 %v202, %v415
  %v417 = vpop.f32.mrf.mxu0
  %v418 = vpop.f32.mrf.mxu0
  %v419 = vadd.f32 %v205, %v418
  %v420 = vpop.f32.mrf.mxu0
  %421 = vmatprep.mubr.bf16.mxu0 0
  %422 = vmatmul.mubr.bf16.gmra.mxu0 %v371
  %v423 = vpop.f32.mrf.mxu0
  %v424 = vadd.f32 %v210, %v423
  %v425 = vpop.f32.mrf.mxu0
  %v426 = vpop.f32.mrf.mxu0
  %v427 = vadd.f32 %v213, %v426
  %v428 = vpop.f32.mrf.mxu0
  %429 = vmatprep.mubr.bf16.mxu0 0
  %430 = vmatmul.mubr.bf16.gmra.mxu0 %v371
  %v431 = vpop.f32.mrf.mxu0
  %v432 = vadd.f32 %v218, %v431
  %v433 = vpop.f32.mrf.mxu0
  %v434 = vpop.f32.mrf.mxu0
  %v435 = vadd.f32 %v221, %v434
  %v436 = vpop.f32.mrf.mxu0
  %437 = vdwg.mxu0
  %v439 = vlaneseq
  %v440 = vshrl.u32 %v439, 7
  %v441 = vsub.s32 0, %v440
  %v442 = vrot.slane %v356, %v441
  %v444 = vadd.f32 %v408, %v442
  %v445 = vadd.f32 %v411, %v442
  %v446 = vadd.f32 %v416, %v442
  %v447 = vadd.f32 %v419, %v442
  %v448 = vadd.f32 %v424, %v442
  %v449 = vadd.f32 %v427, %v442
  %v450 = vadd.f32 %v432, %v442
  %v451 = vadd.f32 %v435, %v442
  %v452 = vxor.u32 %v444, 2147483648
  %v453 = vxor.u32 %v445, 2147483648
  %v454 = vxor.u32 %v446, 2147483648
  %v455 = vxor.u32 %v447, 2147483648
  %v456 = vxor.u32 %v448, 2147483648
  %v457 = vxor.u32 %v449, 2147483648
  %v458 = vxor.u32 %v450, 2147483648
  %v459 = vxor.u32 %v451, 2147483648
  %v460 = vmul.f32 %v452, 1.442695
  %v461 = vpow.pop %v460
  %v462 = vmul.f32 %v453, 1.442695
  %v463 = vpow.pop %v462
  %v464 = vmul.f32 %v454, 1.442695
  %v465 = vpow.pop %v464
  %v466 = vmul.f32 %v455, 1.442695
  %v467 = vpow.pop %v466
  %v468 = vmul.f32 %v456, 1.442695
  %v469 = vpow.pop %v468
  %v470 = vmul.f32 %v457, 1.442695
  %v471 = vpow.pop %v470
  %v472 = vmul.f32 %v458, 1.442695
  %v473 = vpow.pop %v472
  %v474 = vmul.f32 %v459, 1.442695
  %v475 = vpow.pop %v474
  %v476 = vadd.f32 %v461, 1.0
  %v477 = vadd.f32 %v463, 1.0
  %v478 = vadd.f32 %v465, 1.0
  %v479 = vadd.f32 %v467, 1.0
  %v480 = vadd.f32 %v469, 1.0
  %v481 = vadd.f32 %v471, 1.0
  %v482 = vadd.f32 %v473, 1.0
  %v483 = vadd.f32 %v475, 1.0
  %v484 = vrcp.pop %v476
  %v485 = vmul.f32 1.0, %v484
  %v486 = vrcp.pop %v477
  %v487 = vmul.f32 1.0, %v486
  %v488 = vrcp.pop %v478
  %v489 = vmul.f32 1.0, %v488
  %v490 = vrcp.pop %v479
  %v491 = vmul.f32 1.0, %v490
  %v492 = vrcp.pop %v480
  %v493 = vmul.f32 1.0, %v492
  %v494 = vrcp.pop %v481
  %v495 = vmul.f32 1.0, %v494
  %v496 = vrcp.pop %v482
  %v497 = vmul.f32 1.0, %v496
  %v498 = vrcp.pop %v483
  %v499 = vmul.f32 1.0, %v498
  %v500 = vtanh.pop %v444
  %v501 = vtanh.pop %v445
  %v502 = vtanh.pop %v446
  %v503 = vtanh.pop %v447
  %v504 = vtanh.pop %v448
  %v505 = vtanh.pop %v449
  %v506 = vtanh.pop %v450
  %v507 = vtanh.pop %v451
  %v508 = vmul.f32 %v485, 0.0
  %v509 = vmul.f32 %v487, 0.0
  %v510 = vmul.f32 %v489, 0.0
  %v511 = vmul.f32 %v491, 0.0
  %v512 = vmul.f32 %v493, 0.0
  %v513 = vmul.f32 %v495, 0.0
  %v514 = vmul.f32 %v497, 0.0
  %v515 = vmul.f32 %v499, 0.0
  %524 = vrot.lane.b32.xlu0 %v500, 64
  %v525 = vpop.permute.xlu0 %524
  %526 = vrot.lane.b32.xlu0 %v501, 64
  %v527 = vpop.permute.xlu0 %526
  %528 = vrot.lane.b32.xlu0 %v502, 64
  %v529 = vpop.permute.xlu0 %528
  %530 = vrot.lane.b32.xlu0 %v503, 64
  %v531 = vpop.permute.xlu0 %530
  %532 = vrot.lane.b32.xlu0 %v504, 64
  %v533 = vpop.permute.xlu0 %532
  %534 = vrot.lane.b32.xlu0 %v505, 64
  %v535 = vpop.permute.xlu0 %534
  %536 = vrot.lane.b32.xlu0 %v506, 64
  %v537 = vpop.permute.xlu0 %536
  %538 = vrot.lane.b32.xlu0 %v507, 64
  %v539 = vpop.permute.xlu0 %538
  %v548 = vmul.f32 %v485, %v525
  %v549 = vmul.f32 %v487, %v527
  %v550 = vmul.f32 %v489, %v529
  %v551 = vmul.f32 %v491, %v531
  %v552 = vmul.f32 %v493, %v533
  %v553 = vmul.f32 %v495, %v535
  %v554 = vmul.f32 %v497, %v537
  %v555 = vmul.f32 %v499, %v539
  %564 = vrot.lane.b32.xlu0 %v548, 32
  %v565 = vpop.permute.xlu0 %564
  %566 = vrot.lane.b32.xlu0 %v549, 32
  %v567 = vpop.permute.xlu0 %566
  %568 = vrot.lane.b32.xlu0 %v550, 32
  %v569 = vpop.permute.xlu0 %568
  %570 = vrot.lane.b32.xlu0 %v551, 32
  %v571 = vpop.permute.xlu0 %570
  %572 = vrot.lane.b32.xlu0 %v552, 32
  %v573 = vpop.permute.xlu0 %572
  %574 = vrot.lane.b32.xlu0 %v553, 32
  %v575 = vpop.permute.xlu0 %574
  %576 = vrot.lane.b32.xlu0 %v554, 32
  %v577 = vpop.permute.xlu0 %576
  %578 = vrot.lane.b32.xlu0 %v555, 32
  %v579 = vpop.permute.xlu0 %578
  %v588 = vadd.f32 %v508, %v565
  %v589 = vadd.f32 %v509, %v567
  %v590 = vadd.f32 %v510, %v569
  %v591 = vadd.f32 %v511, %v571
  %v592 = vadd.f32 %v512, %v573
  %v593 = vadd.f32 %v513, %v575
  %v594 = vadd.f32 %v514, %v577
  %v595 = vadd.f32 %v515, %v579
  %v596 = vtanh.pop %v588
  %v597 = vtanh.pop %v589
  %v598 = vtanh.pop %v590
  %v599 = vtanh.pop %v591
  %v600 = vtanh.pop %v592
  %v601 = vtanh.pop %v593
  %v602 = vtanh.pop %v594
  %v603 = vtanh.pop %v595
  %612 = vrot.lane.b32.xlu0 %v596, 64
  %v613 = vpop.permute.xlu0 %612
  %614 = vrot.lane.b32.xlu0 %v597, 64
  %v615 = vpop.permute.xlu0 %614
  %616 = vrot.lane.b32.xlu0 %v598, 64
  %v617 = vpop.permute.xlu0 %616
  %618 = vrot.lane.b32.xlu0 %v599, 64
  %v619 = vpop.permute.xlu0 %618
  %620 = vrot.lane.b32.xlu0 %v600, 64
  %v621 = vpop.permute.xlu0 %620
  %622 = vrot.lane.b32.xlu0 %v601, 64
  %v623 = vpop.permute.xlu0 %622
  %624 = vrot.lane.b32.xlu0 %v602, 64
  %v625 = vpop.permute.xlu0 %624
  %626 = vrot.lane.b32.xlu0 %v603, 64
  %v627 = vpop.permute.xlu0 %626
  %v636 = vmul.f32 %v485, %v613
  %v637 = vmul.f32 %v487, %v615
  %v638 = vmul.f32 %v489, %v617
  %v639 = vmul.f32 %v491, %v619
  %v640 = vmul.f32 %v493, %v621
  %v641 = vmul.f32 %v495, %v623
  %v642 = vmul.f32 %v497, %v625
  %v643 = vmul.f32 %v499, %v627
  %v644 = vpack.c.bf16 %v637, %v636
  %v645 = vpack.c.bf16 %v639, %v638
  %v646 = vpack.c.bf16 %v641, %v640
  %v647 = vpack.c.bf16 %v643, %v642
  %652 = vrot.lane.b32.xlu0 %v644, 32
  %v653 = vpop.permute.xlu0 %652
  %654 = vrot.lane.b32.xlu0 %v645, 32
  %v655 = vpop.permute.xlu0 %654
  %656 = vrot.lane.b32.xlu0 %v646, 32
  %v657 = vpop.permute.xlu0 %656
  %658 = vrot.lane.b32.xlu0 %v647, 32
  %v659 = vpop.permute.xlu0 %658
  %v661 = vsel %vm369, %v653, 0
  %v664 = vsel %vm369, %v655, 0
  %v667 = vsel %vm369, %v657, 0
  %v670 = vsel %vm369, %v659, 0
  %672 = vmatprep.subr.bf16.mxu0 0
  %673 = vmatpush1.bf16.msra.mxu0 0
  %674 = vmatprep.subr.bf16.mxu0 0
  %675 = vmatpush1.bf16.msra.mxu0 0
  %676 = vmatprep.subr.bf16.mxu0 0
  %677 = vmatpush1.bf16.msra.mxu0 0
  %678 = vmatprep.subr.bf16.mxu0 0
  %679 = vmatpush1.bf16.msra.mxu0 0
  %680 = vmatprep.subr.bf16.mxu0 0
  %681 = vmatpush1.bf16.msra.mxu0 0
  %682 = vmatprep.subr.bf16.mxu0 0
  %683 = vmatpush1.bf16.msra.mxu0 0
  %684 = vmatprep.subr.bf16.mxu0 0
  %685 = vmatpush1.bf16.msra.mxu0 %v366
  %686 = vmatprep.subr.bf16.mxu0 0
  %687 = vmatpush1.bf16.msra.mxu0 %v365
  %688 = vmatprep.subr.bf16.mxu0 0
  %689 = vmatpush2.bf16.msra.mxu0 0
  %690 = vmatprep.subr.bf16.mxu0 0
  %691 = vmatpush2.bf16.msra.mxu0 0
  %692 = vmatprep.subr.bf16.mxu0 0
  %693 = vmatpush2.bf16.msra.mxu0 0
  %694 = vmatprep.subr.bf16.mxu0 0
  %695 = vmatpush2.bf16.msra.mxu0 0
  %696 = vmatprep.subr.bf16.mxu0 0
  %697 = vmatpush2.bf16.msra.mxu0 0
  %698 = vmatprep.subr.bf16.mxu0 0
  %699 = vmatpush2.bf16.msra.mxu0 0
  %700 = vmatprep.subr.bf16.mxu0 0
  %701 = vmatpush2.bf16.msra.mxu0 0
  %702 = vmatprep.subr.bf16.mxu0 0
  %703 = vmatpush2.bf16.msra.mxu0 0
  %704 = vmatprep.mubr.bf16.mxu0 0
  %705 = vmatmul.mubr.bf16.gmra.mxu0 %v661
  %v706 = vpop.f32.mrf.mxu0
  %v707 = vadd.f32 %v226, %v706
  %v708 = vpop.f32.mrf.mxu0
  %v709 = vpop.f32.mrf.mxu0
  %v710 = vadd.f32 %v229, %v709
  %v711 = vpop.f32.mrf.mxu0
  %712 = vmatprep.mubr.bf16.mxu0 0
  %713 = vmatmul.mubr.bf16.gmra.mxu0 %v664
  %v714 = vpop.f32.mrf.mxu0
  %v715 = vadd.f32 %v234, %v714
  %v716 = vpop.f32.mrf.mxu0
  %v717 = vpop.f32.mrf.mxu0
  %v718 = vadd.f32 %v237, %v717
  %v719 = vpop.f32.mrf.mxu0
  %720 = vmatprep.mubr.bf16.mxu0 0
  %721 = vmatmul.mubr.bf16.gmra.mxu0 %v667
  %v722 = vpop.f32.mrf.mxu0
  %v723 = vadd.f32 %v242, %v722
  %v724 = vpop.f32.mrf.mxu0
  %v725 = vpop.f32.mrf.mxu0
  %v726 = vadd.f32 %v245, %v725
  %v727 = vpop.f32.mrf.mxu0
  %728 = vmatprep.mubr.bf16.mxu0 0
  %729 = vmatmul.mubr.bf16.gmra.mxu0 %v670
  %v730 = vpop.f32.mrf.mxu0
  %v731 = vadd.f32 %v250, %v730
  %v732 = vpop.f32.mrf.mxu0
  %v733 = vpop.f32.mrf.mxu0
  %v734 = vadd.f32 %v253, %v733
  %v735 = vpop.f32.mrf.mxu0
  %736 = vdwg.mxu0
  %v737 = vadd.f32 %v707, %v442
  %v738 = vadd.f32 %v710, %v442
  %v739 = vadd.f32 %v715, %v442
  %v740 = vadd.f32 %v718, %v442
  %v741 = vadd.f32 %v723, %v442
  %v742 = vadd.f32 %v726, %v442
  %v743 = vadd.f32 %v731, %v442
  %v744 = vadd.f32 %v734, %v442
  %v745 = vxor.u32 %v737, 2147483648
  %v746 = vxor.u32 %v738, 2147483648
  %v747 = vxor.u32 %v739, 2147483648
  %v748 = vxor.u32 %v740, 2147483648
  %v749 = vxor.u32 %v741, 2147483648
  %v750 = vxor.u32 %v742, 2147483648
  %v751 = vxor.u32 %v743, 2147483648
  %v752 = vxor.u32 %v744, 2147483648
  %v753 = vmul.f32 %v745, 1.442695
  %v754 = vpow.pop %v753
  %v755 = vmul.f32 %v746, 1.442695
  %v756 = vpow.pop %v755
  %v757 = vmul.f32 %v747, 1.442695
  %v758 = vpow.pop %v757
  %v759 = vmul.f32 %v748, 1.442695
  %v760 = vpow.pop %v759
  %v761 = vmul.f32 %v749, 1.442695
  %v762 = vpow.pop %v761
  %v763 = vmul.f32 %v750, 1.442695
  %v764 = vpow.pop %v763
  %v765 = vmul.f32 %v751, 1.442695
  %v766 = vpow.pop %v765
  %v767 = vmul.f32 %v752, 1.442695
  %v768 = vpow.pop %v767
  %v769 = vadd.f32 %v754, 1.0
  %v770 = vadd.f32 %v756, 1.0
  %v771 = vadd.f32 %v758, 1.0
  %v772 = vadd.f32 %v760, 1.0
  %v773 = vadd.f32 %v762, 1.0
  %v774 = vadd.f32 %v764, 1.0
  %v775 = vadd.f32 %v766, 1.0
  %v776 = vadd.f32 %v768, 1.0
  %v777 = vrcp.pop %v769
  %v778 = vmul.f32 1.0, %v777
  %v779 = vrcp.pop %v770
  %v780 = vmul.f32 1.0, %v779
  %v781 = vrcp.pop %v771
  %v782 = vmul.f32 1.0, %v781
  %v783 = vrcp.pop %v772
  %v784 = vmul.f32 1.0, %v783
  %v785 = vrcp.pop %v773
  %v786 = vmul.f32 1.0, %v785
  %v787 = vrcp.pop %v774
  %v788 = vmul.f32 1.0, %v787
  %v789 = vrcp.pop %v775
  %v790 = vmul.f32 1.0, %v789
  %v791 = vrcp.pop %v776
  %v792 = vmul.f32 1.0, %v791
  %v793 = vtanh.pop %v737
  %v794 = vtanh.pop %v738
  %v795 = vtanh.pop %v739
  %v796 = vtanh.pop %v740
  %v797 = vtanh.pop %v741
  %v798 = vtanh.pop %v742
  %v799 = vtanh.pop %v743
  %v800 = vtanh.pop %v744
  %v801 = vmul.f32 %v778, %v588
  %v802 = vmul.f32 %v780, %v589
  %v803 = vmul.f32 %v782, %v590
  %v804 = vmul.f32 %v784, %v591
  %v805 = vmul.f32 %v786, %v592
  %v806 = vmul.f32 %v788, %v593
  %v807 = vmul.f32 %v790, %v594
  %v808 = vmul.f32 %v792, %v595
  %817 = vrot.lane.b32.xlu0 %v793, 64
  %v818 = vpop.permute.xlu0 %817
  %819 = vrot.lane.b32.xlu0 %v794, 64
  %v820 = vpop.permute.xlu0 %819
  %821 = vrot.lane.b32.xlu0 %v795, 64
  %v822 = vpop.permute.xlu0 %821
  %823 = vrot.lane.b32.xlu0 %v796, 64
  %v824 = vpop.permute.xlu0 %823
  %825 = vrot.lane.b32.xlu0 %v797, 64
  %v826 = vpop.permute.xlu0 %825
  %827 = vrot.lane.b32.xlu0 %v798, 64
  %v828 = vpop.permute.xlu0 %827
  %829 = vrot.lane.b32.xlu0 %v799, 64
  %v830 = vpop.permute.xlu0 %829
  %831 = vrot.lane.b32.xlu0 %v800, 64
  %v832 = vpop.permute.xlu0 %831
  %v841 = vmul.f32 %v778, %v818
  %v842 = vmul.f32 %v780, %v820
  %v843 = vmul.f32 %v782, %v822
  %v844 = vmul.f32 %v784, %v824
  %v845 = vmul.f32 %v786, %v826
  %v846 = vmul.f32 %v788, %v828
  %v847 = vmul.f32 %v790, %v830
  %v848 = vmul.f32 %v792, %v832
  %857 = vrot.lane.b32.xlu0 %v841, 32
  %v858 = vpop.permute.xlu0 %857
  %859 = vrot.lane.b32.xlu0 %v842, 32
  %v860 = vpop.permute.xlu0 %859
  %861 = vrot.lane.b32.xlu0 %v843, 32
  %v862 = vpop.permute.xlu0 %861
  %863 = vrot.lane.b32.xlu0 %v844, 32
  %v864 = vpop.permute.xlu0 %863
  %865 = vrot.lane.b32.xlu0 %v845, 32
  %v866 = vpop.permute.xlu0 %865
  %867 = vrot.lane.b32.xlu0 %v846, 32
  %v868 = vpop.permute.xlu0 %867
  %869 = vrot.lane.b32.xlu0 %v847, 32
  %v870 = vpop.permute.xlu0 %869
  %871 = vrot.lane.b32.xlu0 %v848, 32
  %v872 = vpop.permute.xlu0 %871
  %v881 = vadd.f32 %v801, %v858
  %v882 = vadd.f32 %v802, %v860
  %v883 = vadd.f32 %v803, %v862
  %v884 = vadd.f32 %v804, %v864
  %v885 = vadd.f32 %v805, %v866
  %v886 = vadd.f32 %v806, %v868
  %v887 = vadd.f32 %v807, %v870
  %v888 = vadd.f32 %v808, %v872
  %v889 = vtanh.pop %v881
  %v890 = vtanh.pop %v882
  %v891 = vtanh.pop %v883
  %v892 = vtanh.pop %v884
  %v893 = vtanh.pop %v885
  %v894 = vtanh.pop %v886
  %v895 = vtanh.pop %v887
  %v896 = vtanh.pop %v888
  %905 = vrot.lane.b32.xlu0 %v889, 64
  %v906 = vpop.permute.xlu0 %905
  %907 = vrot.lane.b32.xlu0 %v890, 64
  %v908 = vpop.permute.xlu0 %907
  %909 = vrot.lane.b32.xlu0 %v891, 64
  %v910 = vpop.permute.xlu0 %909
  %911 = vrot.lane.b32.xlu0 %v892, 64
  %v912 = vpop.permute.xlu0 %911
  %913 = vrot.lane.b32.xlu0 %v893, 64
  %v914 = vpop.permute.xlu0 %913
  %915 = vrot.lane.b32.xlu0 %v894, 64
  %v916 = vpop.permute.xlu0 %915
  %917 = vrot.lane.b32.xlu0 %v895, 64
  %v918 = vpop.permute.xlu0 %917
  %919 = vrot.lane.b32.xlu0 %v896, 64
  %v920 = vpop.permute.xlu0 %919
  %v929 = vmul.f32 %v778, %v906
  %v930 = vmul.f32 %v780, %v908
  %v931 = vmul.f32 %v782, %v910
  %v932 = vmul.f32 %v784, %v912
  %v933 = vmul.f32 %v786, %v914
  %v934 = vmul.f32 %v788, %v916
  %v935 = vmul.f32 %v790, %v918
  %v936 = vmul.f32 %v792, %v920
  %v937 = vpack.c.bf16 %v930, %v929
  %v938 = vpack.c.bf16 %v932, %v931
  %v939 = vpack.c.bf16 %v934, %v933
  %v940 = vpack.c.bf16 %v936, %v935
  %945 = vrot.lane.b32.xlu0 %v937, 32
  %v946 = vpop.permute.xlu0 %945
  %947 = vrot.lane.b32.xlu0 %v938, 32
  %v948 = vpop.permute.xlu0 %947
  %949 = vrot.lane.b32.xlu0 %v939, 32
  %v950 = vpop.permute.xlu0 %949
  %951 = vrot.lane.b32.xlu0 %v940, 32
  %v952 = vpop.permute.xlu0 %951
  %v954 = vsel %vm369, %v946, 0
  %v957 = vsel %vm369, %v948, 0
  %v960 = vsel %vm369, %v950, 0
  %v963 = vsel %vm369, %v952, 0
  %965 = vmatprep.subr.bf16.mxu0 0
  %966 = vmatpush1.bf16.msra.mxu0 0
  %967 = vmatprep.subr.bf16.mxu0 0
  %968 = vmatpush1.bf16.msra.mxu0 0
  %969 = vmatprep.subr.bf16.mxu0 0
  %970 = vmatpush1.bf16.msra.mxu0 0
  %971 = vmatprep.subr.bf16.mxu0 0
  %972 = vmatpush1.bf16.msra.mxu0 0
  %973 = vmatprep.subr.bf16.mxu0 0
  %974 = vmatpush1.bf16.msra.mxu0 0
  %975 = vmatprep.subr.bf16.mxu0 0
  %976 = vmatpush1.bf16.msra.mxu0 0
  %977 = vmatprep.subr.bf16.mxu0 0
  %978 = vmatpush1.bf16.msra.mxu0 %v366
  %979 = vmatprep.subr.bf16.mxu0 0
  %980 = vmatpush1.bf16.msra.mxu0 %v365
  %981 = vmatprep.subr.bf16.mxu0 0
  %982 = vmatpush2.bf16.msra.mxu0 0
  %983 = vmatprep.subr.bf16.mxu0 0
  %984 = vmatpush2.bf16.msra.mxu0 0
  %985 = vmatprep.subr.bf16.mxu0 0
  %986 = vmatpush2.bf16.msra.mxu0 0
  %987 = vmatprep.subr.bf16.mxu0 0
  %988 = vmatpush2.bf16.msra.mxu0 0
  %989 = vmatprep.subr.bf16.mxu0 0
  %990 = vmatpush2.bf16.msra.mxu0 0
  %991 = vmatprep.subr.bf16.mxu0 0
  %992 = vmatpush2.bf16.msra.mxu0 0
  %993 = vmatprep.subr.bf16.mxu0 0
  %994 = vmatpush2.bf16.msra.mxu0 0
  %995 = vmatprep.subr.bf16.mxu0 0
  %996 = vmatpush2.bf16.msra.mxu0 0
  %997 = vmatprep.mubr.bf16.mxu0 0
  %998 = vmatmul.mubr.bf16.gmra.mxu0 %v954
  %v999 = vpop.f32.mrf.mxu0
  %v1000 = vadd.f32 %v258, %v999
  %v1001 = vpop.f32.mrf.mxu0
  %v1002 = vpop.f32.mrf.mxu0
  %v1003 = vadd.f32 %v261, %v1002
  %v1004 = vpop.f32.mrf.mxu0
  %1005 = vmatprep.mubr.bf16.mxu0 0
  %1006 = vmatmul.mubr.bf16.gmra.mxu0 %v957
  %v1007 = vpop.f32.mrf.mxu0
  %v1008 = vadd.f32 %v266, %v1007
  %v1009 = vpop.f32.mrf.mxu0
  %v1010 = vpop.f32.mrf.mxu0
  %v1011 = vadd.f32 %v269, %v1010
  %v1012 = vpop.f32.mrf.mxu0
  %1013 = vmatprep.mubr.bf16.mxu0 0
  %1014 = vmatmul.mubr.bf16.gmra.mxu0 %v960
  %v1015 = vpop.f32.mrf.mxu0
  %v1016 = vadd.f32 %v274, %v1015
  %v1017 = vpop.f32.mrf.mxu0
  %v1018 = vpop.f32.mrf.mxu0
  %v1019 = vadd.f32 %v277, %v1018
  %v1020 = vpop.f32.mrf.mxu0
  %1021 = vmatprep.mubr.bf16.mxu0 0
  %1022 = vmatmul.mubr.bf16.gmra.mxu0 %v963
  %v1023 = vpop.f32.mrf.mxu0
  %v1024 = vadd.f32 %v282, %v1023
  %v1025 = vpop.f32.mrf.mxu0
  %v1026 = vpop.f32.mrf.mxu0
  %v1027 = vadd.f32 %v285, %v1026
  %v1028 = vpop.f32.mrf.mxu0
  %1029 = vdwg.mxu0
  %v1030 = vadd.f32 %v1000, %v442
  %v1031 = vadd.f32 %v1003, %v442
  %v1032 = vadd.f32 %v1008, %v442
  %v1033 = vadd.f32 %v1011, %v442
  %v1034 = vadd.f32 %v1016, %v442
  %v1035 = vadd.f32 %v1019, %v442
  %v1036 = vadd.f32 %v1024, %v442
  %v1037 = vadd.f32 %v1027, %v442
  %v1038 = vxor.u32 %v1030, 2147483648
  %v1039 = vxor.u32 %v1031, 2147483648
  %v1040 = vxor.u32 %v1032, 2147483648
  %v1041 = vxor.u32 %v1033, 2147483648
  %v1042 = vxor.u32 %v1034, 2147483648
  %v1043 = vxor.u32 %v1035, 2147483648
  %v1044 = vxor.u32 %v1036, 2147483648
  %v1045 = vxor.u32 %v1037, 2147483648
  %v1046 = vmul.f32 %v1038, 1.442695
  %v1047 = vpow.pop %v1046
  %v1048 = vmul.f32 %v1039, 1.442695
  %v1049 = vpow.pop %v1048
  %v1050 = vmul.f32 %v1040, 1.442695
  %v1051 = vpow.pop %v1050
  %v1052 = vmul.f32 %v1041, 1.442695
  %v1053 = vpow.pop %v1052
  %v1054 = vmul.f32 %v1042, 1.442695
  %v1055 = vpow.pop %v1054
  %v1056 = vmul.f32 %v1043, 1.442695
  %v1057 = vpow.pop %v1056
  %v1058 = vmul.f32 %v1044, 1.442695
  %v1059 = vpow.pop %v1058
  %v1060 = vmul.f32 %v1045, 1.442695
  %v1061 = vpow.pop %v1060
  %v1062 = vadd.f32 %v1047, 1.0
  %v1063 = vadd.f32 %v1049, 1.0
  %v1064 = vadd.f32 %v1051, 1.0
  %v1065 = vadd.f32 %v1053, 1.0
  %v1066 = vadd.f32 %v1055, 1.0
  %v1067 = vadd.f32 %v1057, 1.0
  %v1068 = vadd.f32 %v1059, 1.0
  %v1069 = vadd.f32 %v1061, 1.0
  %v1070 = vrcp.pop %v1062
  %v1071 = vmul.f32 1.0, %v1070
  %v1072 = vrcp.pop %v1063
  %v1073 = vmul.f32 1.0, %v1072
  %v1074 = vrcp.pop %v1064
  %v1075 = vmul.f32 1.0, %v1074
  %v1076 = vrcp.pop %v1065
  %v1077 = vmul.f32 1.0, %v1076
  %v1078 = vrcp.pop %v1066
  %v1079 = vmul.f32 1.0, %v1078
  %v1080 = vrcp.pop %v1067
  %v1081 = vmul.f32 1.0, %v1080
  %v1082 = vrcp.pop %v1068
  %v1083 = vmul.f32 1.0, %v1082
  %v1084 = vrcp.pop %v1069
  %v1085 = vmul.f32 1.0, %v1084
  %v1086 = vtanh.pop %v1030
  %v1087 = vtanh.pop %v1031
  %v1088 = vtanh.pop %v1032
  %v1089 = vtanh.pop %v1033
  %v1090 = vtanh.pop %v1034
  %v1091 = vtanh.pop %v1035
  %v1092 = vtanh.pop %v1036
  %v1093 = vtanh.pop %v1037
  %v1094 = vmul.f32 %v1071, %v881
  %v1095 = vmul.f32 %v1073, %v882
  %v1096 = vmul.f32 %v1075, %v883
  %v1097 = vmul.f32 %v1077, %v884
  %v1098 = vmul.f32 %v1079, %v885
  %v1099 = vmul.f32 %v1081, %v886
  %v1100 = vmul.f32 %v1083, %v887
  %v1101 = vmul.f32 %v1085, %v888
  %1110 = vrot.lane.b32.xlu0 %v1086, 64
  %v1111 = vpop.permute.xlu0 %1110
  %1112 = vrot.lane.b32.xlu0 %v1087, 64
  %v1113 = vpop.permute.xlu0 %1112
  %1114 = vrot.lane.b32.xlu0 %v1088, 64
  %v1115 = vpop.permute.xlu0 %1114
  %1116 = vrot.lane.b32.xlu0 %v1089, 64
  %v1117 = vpop.permute.xlu0 %1116
  %1118 = vrot.lane.b32.xlu0 %v1090, 64
  %v1119 = vpop.permute.xlu0 %1118
  %1120 = vrot.lane.b32.xlu0 %v1091, 64
  %v1121 = vpop.permute.xlu0 %1120
  %1122 = vrot.lane.b32.xlu0 %v1092, 64
  %v1123 = vpop.permute.xlu0 %1122
  %1124 = vrot.lane.b32.xlu0 %v1093, 64
  %v1125 = vpop.permute.xlu0 %1124
  %v1134 = vmul.f32 %v1071, %v1111
  %v1135 = vmul.f32 %v1073, %v1113
  %v1136 = vmul.f32 %v1075, %v1115
  %v1137 = vmul.f32 %v1077, %v1117
  %v1138 = vmul.f32 %v1079, %v1119
  %v1139 = vmul.f32 %v1081, %v1121
  %v1140 = vmul.f32 %v1083, %v1123
  %v1141 = vmul.f32 %v1085, %v1125
  %1150 = vrot.lane.b32.xlu0 %v1134, 32
  %v1151 = vpop.permute.xlu0 %1150
  %1152 = vrot.lane.b32.xlu0 %v1135, 32
  %v1153 = vpop.permute.xlu0 %1152
  %1154 = vrot.lane.b32.xlu0 %v1136, 32
  %v1155 = vpop.permute.xlu0 %1154
  %1156 = vrot.lane.b32.xlu0 %v1137, 32
  %v1157 = vpop.permute.xlu0 %1156
  %1158 = vrot.lane.b32.xlu0 %v1138, 32
  %v1159 = vpop.permute.xlu0 %1158
  %1160 = vrot.lane.b32.xlu0 %v1139, 32
  %v1161 = vpop.permute.xlu0 %1160
  %1162 = vrot.lane.b32.xlu0 %v1140, 32
  %v1163 = vpop.permute.xlu0 %1162
  %1164 = vrot.lane.b32.xlu0 %v1141, 32
  %v1165 = vpop.permute.xlu0 %1164
  %v1174 = vadd.f32 %v1094, %v1151
  %v1175 = vadd.f32 %v1095, %v1153
  %v1176 = vadd.f32 %v1096, %v1155
  %v1177 = vadd.f32 %v1097, %v1157
  %v1178 = vadd.f32 %v1098, %v1159
  %v1179 = vadd.f32 %v1099, %v1161
  %v1180 = vadd.f32 %v1100, %v1163
  %v1181 = vadd.f32 %v1101, %v1165
  %v1182 = vtanh.pop %v1174
  %v1183 = vtanh.pop %v1175
  %v1184 = vtanh.pop %v1176
  %v1185 = vtanh.pop %v1177
  %v1186 = vtanh.pop %v1178
  %v1187 = vtanh.pop %v1179
  %v1188 = vtanh.pop %v1180
  %v1189 = vtanh.pop %v1181
  %1198 = vrot.lane.b32.xlu0 %v1182, 64
  %v1199 = vpop.permute.xlu0 %1198
  %1200 = vrot.lane.b32.xlu0 %v1183, 64
  %v1201 = vpop.permute.xlu0 %1200
  %1202 = vrot.lane.b32.xlu0 %v1184, 64
  %v1203 = vpop.permute.xlu0 %1202
  %1204 = vrot.lane.b32.xlu0 %v1185, 64
  %v1205 = vpop.permute.xlu0 %1204
  %1206 = vrot.lane.b32.xlu0 %v1186, 64
  %v1207 = vpop.permute.xlu0 %1206
  %1208 = vrot.lane.b32.xlu0 %v1187, 64
  %v1209 = vpop.permute.xlu0 %1208
  %1210 = vrot.lane.b32.xlu0 %v1188, 64
  %v1211 = vpop.permute.xlu0 %1210
  %1212 = vrot.lane.b32.xlu0 %v1189, 64
  %v1213 = vpop.permute.xlu0 %1212
  %v1222 = vmul.f32 %v1071, %v1199
  %v1223 = vmul.f32 %v1073, %v1201
  %v1224 = vmul.f32 %v1075, %v1203
  %v1225 = vmul.f32 %v1077, %v1205
  %v1226 = vmul.f32 %v1079, %v1207
  %v1227 = vmul.f32 %v1081, %v1209
  %v1228 = vmul.f32 %v1083, %v1211
  %v1229 = vmul.f32 %v1085, %v1213
  %v1230 = vpack.c.bf16 %v1223, %v1222
  %v1231 = vpack.c.bf16 %v1225, %v1224
  %v1232 = vpack.c.bf16 %v1227, %v1226
  %v1233 = vpack.c.bf16 %v1229, %v1228
  %1238 = vrot.lane.b32.xlu0 %v1230, 32
  %v1239 = vpop.permute.xlu0 %1238
  %1240 = vrot.lane.b32.xlu0 %v1231, 32
  %v1241 = vpop.permute.xlu0 %1240
  %1242 = vrot.lane.b32.xlu0 %v1232, 32
  %v1243 = vpop.permute.xlu0 %1242
  %1244 = vrot.lane.b32.xlu0 %v1233, 32
  %v1245 = vpop.permute.xlu0 %1244
  %v1247 = vsel %vm369, %v1239, 0
  %v1250 = vsel %vm369, %v1241, 0
  %v1253 = vsel %vm369, %v1243, 0
  %v1256 = vsel %vm369, %v1245, 0
  %1258 = vmatprep.subr.bf16.mxu0 0
  %1259 = vmatpush1.bf16.msra.mxu0 0
  %1260 = vmatprep.subr.bf16.mxu0 0
  %1261 = vmatpush1.bf16.msra.mxu0 0
  %1262 = vmatprep.subr.bf16.mxu0 0
  %1263 = vmatpush1.bf16.msra.mxu0 0
  %1264 = vmatprep.subr.bf16.mxu0 0
  %1265 = vmatpush1.bf16.msra.mxu0 0
  %1266 = vmatprep.subr.bf16.mxu0 0
  %1267 = vmatpush1.bf16.msra.mxu0 0
  %1268 = vmatprep.subr.bf16.mxu0 0
  %1269 = vmatpush1.bf16.msra.mxu0 0
  %1270 = vmatprep.subr.bf16.mxu0 0
  %1271 = vmatpush1.bf16.msra.mxu0 %v366
  %1272 = vmatprep.subr.bf16.mxu0 0
  %1273 = vmatpush1.bf16.msra.mxu0 %v365
  %1274 = vmatprep.subr.bf16.mxu0 0
  %1275 = vmatpush2.bf16.msra.mxu0 0
  %1276 = vmatprep.subr.bf16.mxu0 0
  %1277 = vmatpush2.bf16.msra.mxu0 0
  %1278 = vmatprep.subr.bf16.mxu0 0
  %1279 = vmatpush2.bf16.msra.mxu0 0
  %1280 = vmatprep.subr.bf16.mxu0 0
  %1281 = vmatpush2.bf16.msra.mxu0 0
  %1282 = vmatprep.subr.bf16.mxu0 0
  %1283 = vmatpush2.bf16.msra.mxu0 0
  %1284 = vmatprep.subr.bf16.mxu0 0
  %1285 = vmatpush2.bf16.msra.mxu0 0
  %1286 = vmatprep.subr.bf16.mxu0 0
  %1287 = vmatpush2.bf16.msra.mxu0 0
  %1288 = vmatprep.subr.bf16.mxu0 0
  %1289 = vmatpush2.bf16.msra.mxu0 0
  %1290 = vmatprep.mubr.bf16.mxu0 0
  %1291 = vmatmul.mubr.bf16.gmra.mxu0 %v1247
  %v1292 = vpop.f32.mrf.mxu0
  %v1293 = vadd.f32 %v290, %v1292
  %v1294 = vpop.f32.mrf.mxu0
  %v1295 = vpop.f32.mrf.mxu0
  %v1296 = vadd.f32 %v293, %v1295
  %v1297 = vpop.f32.mrf.mxu0
  %1298 = vmatprep.mubr.bf16.mxu0 0
  %1299 = vmatmul.mubr.bf16.gmra.mxu0 %v1250
  %v1300 = vpop.f32.mrf.mxu0
  %v1301 = vadd.f32 %v298, %v1300
  %v1302 = vpop.f32.mrf.mxu0
  %v1303 = vpop.f32.mrf.mxu0
  %v1304 = vadd.f32 %v301, %v1303
  %v1305 = vpop.f32.mrf.mxu0
  %1306 = vmatprep.mubr.bf16.mxu0 0
  %1307 = vmatmul.mubr.bf16.gmra.mxu0 %v1253
  %v1308 = vpop.f32.mrf.mxu0
  %v1309 = vadd.f32 %v306, %v1308
  %v1310 = vpop.f32.mrf.mxu0
  %v1311 = vpop.f32.mrf.mxu0
  %v1312 = vadd.f32 %v309, %v1311
  %v1313 = vpop.f32.mrf.mxu0
  %1314 = vmatprep.mubr.bf16.mxu0 0
  %1315 = vmatmul.mubr.bf16.gmra.mxu0 %v1256
  %v1316 = vpop.f32.mrf.mxu0
  %v1317 = vadd.f32 %v314, %v1316
  %v1318 = vpop.f32.mrf.mxu0
  %v1319 = vpop.f32.mrf.mxu0
  %v1320 = vadd.f32 %v317, %v1319
  %v1321 = vpop.f32.mrf.mxu0
  %1322 = vdwg.mxu0
  %v1323 = vadd.f32 %v1293, %v442
  %v1324 = vadd.f32 %v1296, %v442
  %v1325 = vadd.f32 %v1301, %v442
  %v1326 = vadd.f32 %v1304, %v442
  %v1327 = vadd.f32 %v1309, %v442
  %v1328 = vadd.f32 %v1312, %v442
  %v1329 = vadd.f32 %v1317, %v442
  %v1330 = vadd.f32 %v1320, %v442
  %v1331 = vxor.u32 %v1323, 2147483648
  %v1332 = vxor.u32 %v1324, 2147483648
  %v1333 = vxor.u32 %v1325, 2147483648
  %v1334 = vxor.u32 %v1326, 2147483648
  %v1335 = vxor.u32 %v1327, 2147483648
  %v1336 = vxor.u32 %v1328, 2147483648
  %v1337 = vxor.u32 %v1329, 2147483648
  %v1338 = vxor.u32 %v1330, 2147483648
  %v1339 = vmul.f32 %v1331, 1.442695
  %v1340 = vpow.pop %v1339
  %v1341 = vmul.f32 %v1332, 1.442695
  %v1342 = vpow.pop %v1341
  %v1343 = vmul.f32 %v1333, 1.442695
  %v1344 = vpow.pop %v1343
  %v1345 = vmul.f32 %v1334, 1.442695
  %v1346 = vpow.pop %v1345
  %v1347 = vmul.f32 %v1335, 1.442695
  %v1348 = vpow.pop %v1347
  %v1349 = vmul.f32 %v1336, 1.442695
  %v1350 = vpow.pop %v1349
  %v1351 = vmul.f32 %v1337, 1.442695
  %v1352 = vpow.pop %v1351
  %v1353 = vmul.f32 %v1338, 1.442695
  %v1354 = vpow.pop %v1353
  %v1355 = vadd.f32 %v1340, 1.0
  %v1356 = vadd.f32 %v1342, 1.0
  %v1357 = vadd.f32 %v1344, 1.0
  %v1358 = vadd.f32 %v1346, 1.0
  %v1359 = vadd.f32 %v1348, 1.0
  %v1360 = vadd.f32 %v1350, 1.0
  %v1361 = vadd.f32 %v1352, 1.0
  %v1362 = vadd.f32 %v1354, 1.0
  %v1363 = vrcp.pop %v1355
  %v1364 = vmul.f32 1.0, %v1363
  %v1365 = vrcp.pop %v1356
  %v1366 = vmul.f32 1.0, %v1365
  %v1367 = vrcp.pop %v1357
  %v1368 = vmul.f32 1.0, %v1367
  %v1369 = vrcp.pop %v1358
  %v1370 = vmul.f32 1.0, %v1369
  %v1371 = vrcp.pop %v1359
  %v1372 = vmul.f32 1.0, %v1371
  %v1373 = vrcp.pop %v1360
  %v1374 = vmul.f32 1.0, %v1373
  %v1375 = vrcp.pop %v1361
  %v1376 = vmul.f32 1.0, %v1375
  %v1377 = vrcp.pop %v1362
  %v1378 = vmul.f32 1.0, %v1377
  %v1379 = vtanh.pop %v1323
  %v1380 = vtanh.pop %v1324
  %v1381 = vtanh.pop %v1325
  %v1382 = vtanh.pop %v1326
  %v1383 = vtanh.pop %v1327
  %v1384 = vtanh.pop %v1328
  %v1385 = vtanh.pop %v1329
  %v1386 = vtanh.pop %v1330
  %v1387 = vmul.f32 %v1364, %v1174
  %v1388 = vmul.f32 %v1366, %v1175
  %v1389 = vmul.f32 %v1368, %v1176
  %v1390 = vmul.f32 %v1370, %v1177
  %v1391 = vmul.f32 %v1372, %v1178
  %v1392 = vmul.f32 %v1374, %v1179
  %v1393 = vmul.f32 %v1376, %v1180
  %v1394 = vmul.f32 %v1378, %v1181
  %1403 = vrot.lane.b32.xlu0 %v1379, 64
  %v1404 = vpop.permute.xlu0 %1403
  %1405 = vrot.lane.b32.xlu0 %v1380, 64
  %v1406 = vpop.permute.xlu0 %1405
  %1407 = vrot.lane.b32.xlu0 %v1381, 64
  %v1408 = vpop.permute.xlu0 %1407
  %1409 = vrot.lane.b32.xlu0 %v1382, 64
  %v1410 = vpop.permute.xlu0 %1409
  %1411 = vrot.lane.b32.xlu0 %v1383, 64
  %v1412 = vpop.permute.xlu0 %1411
  %1413 = vrot.lane.b32.xlu0 %v1384, 64
  %v1414 = vpop.permute.xlu0 %1413
  %1415 = vrot.lane.b32.xlu0 %v1385, 64
  %v1416 = vpop.permute.xlu0 %1415
  %1417 = vrot.lane.b32.xlu0 %v1386, 64
  %v1418 = vpop.permute.xlu0 %1417
  %v1427 = vmul.f32 %v1364, %v1404
  %v1428 = vmul.f32 %v1366, %v1406
  %v1429 = vmul.f32 %v1368, %v1408
  %v1430 = vmul.f32 %v1370, %v1410
  %v1431 = vmul.f32 %v1372, %v1412
  %v1432 = vmul.f32 %v1374, %v1414
  %v1433 = vmul.f32 %v1376, %v1416
  %v1434 = vmul.f32 %v1378, %v1418
  %1443 = vrot.lane.b32.xlu0 %v1427, 32
  %v1444 = vpop.permute.xlu0 %1443
  %1445 = vrot.lane.b32.xlu0 %v1428, 32
  %v1446 = vpop.permute.xlu0 %1445
  %1447 = vrot.lane.b32.xlu0 %v1429, 32
  %v1448 = vpop.permute.xlu0 %1447
  %1449 = vrot.lane.b32.xlu0 %v1430, 32
  %v1450 = vpop.permute.xlu0 %1449
  %1451 = vrot.lane.b32.xlu0 %v1431, 32
  %v1452 = vpop.permute.xlu0 %1451
  %1453 = vrot.lane.b32.xlu0 %v1432, 32
  %v1454 = vpop.permute.xlu0 %1453
  %1455 = vrot.lane.b32.xlu0 %v1433, 32
  %v1456 = vpop.permute.xlu0 %1455
  %1457 = vrot.lane.b32.xlu0 %v1434, 32
  %v1458 = vpop.permute.xlu0 %1457
  %v1467 = vadd.f32 %v1387, %v1444
  %v1468 = vadd.f32 %v1388, %v1446
  %v1469 = vadd.f32 %v1389, %v1448
  %v1470 = vadd.f32 %v1390, %v1450
  %v1471 = vadd.f32 %v1391, %v1452
  %v1472 = vadd.f32 %v1392, %v1454
  %v1473 = vadd.f32 %v1393, %v1456
  %v1474 = vadd.f32 %v1394, %v1458
  %v1475 = vtanh.pop %v1467
  %v1476 = vtanh.pop %v1468
  %v1477 = vtanh.pop %v1469
  %v1478 = vtanh.pop %v1470
  %v1479 = vtanh.pop %v1471
  %v1480 = vtanh.pop %v1472
  %v1481 = vtanh.pop %v1473
  %v1482 = vtanh.pop %v1474
  %1491 = vrot.lane.b32.xlu0 %v1475, 64
  %v1492 = vpop.permute.xlu0 %1491
  %1493 = vrot.lane.b32.xlu0 %v1476, 64
  %v1494 = vpop.permute.xlu0 %1493
  %1495 = vrot.lane.b32.xlu0 %v1477, 64
  %v1496 = vpop.permute.xlu0 %1495
  %1497 = vrot.lane.b32.xlu0 %v1478, 64
  %v1498 = vpop.permute.xlu0 %1497
  %1499 = vrot.lane.b32.xlu0 %v1479, 64
  %v1500 = vpop.permute.xlu0 %1499
  %1501 = vrot.lane.b32.xlu0 %v1480, 64
  %v1502 = vpop.permute.xlu0 %1501
  %1503 = vrot.lane.b32.xlu0 %v1481, 64
  %v1504 = vpop.permute.xlu0 %1503
  %1505 = vrot.lane.b32.xlu0 %v1482, 64
  %v1506 = vpop.permute.xlu0 %1505
  %v1515 = vmul.f32 %v1364, %v1492
  %v1516 = vmul.f32 %v1366, %v1494
  %v1517 = vmul.f32 %v1368, %v1496
  %v1518 = vmul.f32 %v1370, %v1498
  %v1519 = vmul.f32 %v1372, %v1500
  %v1520 = vmul.f32 %v1374, %v1502
  %v1521 = vmul.f32 %v1376, %v1504
  %v1522 = vmul.f32 %v1378, %v1506
  %v1523 = vpack.c.bf16 %v1516, %v1515
  %v1524 = vpack.c.bf16 %v1518, %v1517
  %v1525 = vpack.c.bf16 %v1520, %v1519
  %v1526 = vpack.c.bf16 %v1522, %v1521
  %1531 = vrot.lane.b32.xlu0 %v1523, 32
  %v1532 = vpop.permute.xlu0 %1531
  %1533 = vrot.lane.b32.xlu0 %v1524, 32
  %v1534 = vpop.permute.xlu0 %1533
  %1535 = vrot.lane.b32.xlu0 %v1525, 32
  %v1536 = vpop.permute.xlu0 %1535
  %1537 = vrot.lane.b32.xlu0 %v1526, 32
  %v1538 = vpop.permute.xlu0 %1537
  %v1540 = vsel %vm369, %v1532, 0
  %v1543 = vsel %vm369, %v1534, 0
  %v1546 = vsel %vm369, %v1536, 0
  %v1549 = vsel %vm369, %v1538, 0
  %1551 = vmatprep.subr.bf16.mxu0 0
  %1552 = vmatpush1.bf16.msra.mxu0 0
  %1553 = vmatprep.subr.bf16.mxu0 0
  %1554 = vmatpush1.bf16.msra.mxu0 0
  %1555 = vmatprep.subr.bf16.mxu0 0
  %1556 = vmatpush1.bf16.msra.mxu0 0
  %1557 = vmatprep.subr.bf16.mxu0 0
  %1558 = vmatpush1.bf16.msra.mxu0 0
  %1559 = vmatprep.subr.bf16.mxu0 0
  %1560 = vmatpush1.bf16.msra.mxu0 0
  %1561 = vmatprep.subr.bf16.mxu0 0
  %1562 = vmatpush1.bf16.msra.mxu0 0
  %1563 = vmatprep.subr.bf16.mxu0 0
  %1564 = vmatpush1.bf16.msra.mxu0 %v366
  %1565 = vmatprep.subr.bf16.mxu0 0
  %1566 = vmatpush1.bf16.msra.mxu0 %v365
  %1567 = vmatprep.subr.bf16.mxu0 0
  %1568 = vmatpush2.bf16.msra.mxu0 0
  %1569 = vmatprep.subr.bf16.mxu0 0
  %1570 = vmatpush2.bf16.msra.mxu0 0
  %1571 = vmatprep.subr.bf16.mxu0 0
  %1572 = vmatpush2.bf16.msra.mxu0 0
  %1573 = vmatprep.subr.bf16.mxu0 0
  %1574 = vmatpush2.bf16.msra.mxu0 0
  %1575 = vmatprep.subr.bf16.mxu0 0
  %1576 = vmatpush2.bf16.msra.mxu0 0
  %1577 = vmatprep.subr.bf16.mxu0 0
  %1578 = vmatpush2.bf16.msra.mxu0 0
  %1579 = vmatprep.subr.bf16.mxu0 0
  %1580 = vmatpush2.bf16.msra.mxu0 0
  %1581 = vmatprep.subr.bf16.mxu0 0
  %1582 = vmatpush2.bf16.msra.mxu0 0
  %1583 = vmatprep.mubr.bf16.mxu0 0
  %1584 = vmatmul.mubr.bf16.gmra.mxu0 %v1540
  %v1585 = vpop.f32.mrf.mxu0
  %v1586 = vadd.f32 %v322, %v1585
  %v1587 = vpop.f32.mrf.mxu0
  %v1588 = vpop.f32.mrf.mxu0
  %v1589 = vadd.f32 %v325, %v1588
  %v1590 = vpop.f32.mrf.mxu0
  %1591 = vmatprep.mubr.bf16.mxu0 0
  %1592 = vmatmul.mubr.bf16.gmra.mxu0 %v1543
  %v1593 = vpop.f32.mrf.mxu0
  %v1594 = vadd.f32 %v330, %v1593
  %v1595 = vpop.f32.mrf.mxu0
  %v1596 = vpop.f32.mrf.mxu0
  %v1597 = vadd.f32 %v333, %v1596
  %v1598 = vpop.f32.mrf.mxu0
  %1599 = vmatprep.mubr.bf16.mxu0 0
  %1600 = vmatmul.mubr.bf16.gmra.mxu0 %v1546
  %v1601 = vpop.f32.mrf.mxu0
  %v1602 = vadd.f32 %v338, %v1601
  %v1603 = vpop.f32.mrf.mxu0
  %v1604 = vpop.f32.mrf.mxu0
  %v1605 = vadd.f32 %v341, %v1604
  %v1606 = vpop.f32.mrf.mxu0
  %1607 = vmatprep.mubr.bf16.mxu0 0
  %1608 = vmatmul.mubr.bf16.gmra.mxu0 %v1549
  %v1609 = vpop.f32.mrf.mxu0
  %v1610 = vadd.f32 %v346, %v1609
  %v1611 = vpop.f32.mrf.mxu0
  %v1612 = vpop.f32.mrf.mxu0
  %v1613 = vadd.f32 %v349, %v1612
  %v1614 = vpop.f32.mrf.mxu0
  %1615 = vdwg.mxu0
  %v1616 = vadd.f32 %v1586, %v442
  %v1617 = vadd.f32 %v1589, %v442
  %v1618 = vadd.f32 %v1594, %v442
  %v1619 = vadd.f32 %v1597, %v442
  %v1620 = vadd.f32 %v1602, %v442
  %v1621 = vadd.f32 %v1605, %v442
  %v1622 = vadd.f32 %v1610, %v442
  %v1623 = vadd.f32 %v1613, %v442
  %v1624 = vxor.u32 %v1616, 2147483648
  %v1625 = vxor.u32 %v1617, 2147483648
  %v1626 = vxor.u32 %v1618, 2147483648
  %v1627 = vxor.u32 %v1619, 2147483648
  %v1628 = vxor.u32 %v1620, 2147483648
  %v1629 = vxor.u32 %v1621, 2147483648
  %v1630 = vxor.u32 %v1622, 2147483648
  %v1631 = vxor.u32 %v1623, 2147483648
  %v1632 = vmul.f32 %v1624, 1.442695
  %v1633 = vpow.pop %v1632
  %v1634 = vmul.f32 %v1625, 1.442695
  %v1635 = vpow.pop %v1634
  %v1636 = vmul.f32 %v1626, 1.442695
  %v1637 = vpow.pop %v1636
  %v1638 = vmul.f32 %v1627, 1.442695
  %v1639 = vpow.pop %v1638
  %v1640 = vmul.f32 %v1628, 1.442695
  %v1641 = vpow.pop %v1640
  %v1642 = vmul.f32 %v1629, 1.442695
  %v1643 = vpow.pop %v1642
  %v1644 = vmul.f32 %v1630, 1.442695
  %v1645 = vpow.pop %v1644
  %v1646 = vmul.f32 %v1631, 1.442695
  %v1647 = vpow.pop %v1646
  %v1648 = vadd.f32 %v1633, 1.0
  %v1649 = vadd.f32 %v1635, 1.0
  %v1650 = vadd.f32 %v1637, 1.0
  %v1651 = vadd.f32 %v1639, 1.0
  %v1652 = vadd.f32 %v1641, 1.0
  %v1653 = vadd.f32 %v1643, 1.0
  %v1654 = vadd.f32 %v1645, 1.0
  %v1655 = vadd.f32 %v1647, 1.0
  %v1656 = vrcp.pop %v1648
  %v1657 = vmul.f32 1.0, %v1656
  %v1658 = vrcp.pop %v1649
  %v1659 = vmul.f32 1.0, %v1658
  %v1660 = vrcp.pop %v1650
  %v1661 = vmul.f32 1.0, %v1660
  %v1662 = vrcp.pop %v1651
  %v1663 = vmul.f32 1.0, %v1662
  %v1664 = vrcp.pop %v1652
  %v1665 = vmul.f32 1.0, %v1664
  %v1666 = vrcp.pop %v1653
  %v1667 = vmul.f32 1.0, %v1666
  %v1668 = vrcp.pop %v1654
  %v1669 = vmul.f32 1.0, %v1668
  %v1670 = vrcp.pop %v1655
  %v1671 = vmul.f32 1.0, %v1670
  %v1672 = vtanh.pop %v1616
  %v1673 = vtanh.pop %v1617
  %v1674 = vtanh.pop %v1618
  %v1675 = vtanh.pop %v1619
  %v1676 = vtanh.pop %v1620
  %v1677 = vtanh.pop %v1621
  %v1678 = vtanh.pop %v1622
  %v1679 = vtanh.pop %v1623
  %v1680 = vmul.f32 %v1657, %v1467
  %v1681 = vmul.f32 %v1659, %v1468
  %v1682 = vmul.f32 %v1661, %v1469
  %v1683 = vmul.f32 %v1663, %v1470
  %v1684 = vmul.f32 %v1665, %v1471
  %v1685 = vmul.f32 %v1667, %v1472
  %v1686 = vmul.f32 %v1669, %v1473
  %v1687 = vmul.f32 %v1671, %v1474
  %1696 = vrot.lane.b32.xlu0 %v1672, 64
  %v1697 = vpop.permute.xlu0 %1696
  %1698 = vrot.lane.b32.xlu0 %v1673, 64
  %v1699 = vpop.permute.xlu0 %1698
  %1700 = vrot.lane.b32.xlu0 %v1674, 64
  %v1701 = vpop.permute.xlu0 %1700
  %1702 = vrot.lane.b32.xlu0 %v1675, 64
  %v1703 = vpop.permute.xlu0 %1702
  %1704 = vrot.lane.b32.xlu0 %v1676, 64
  %v1705 = vpop.permute.xlu0 %1704
  %1706 = vrot.lane.b32.xlu0 %v1677, 64
  %v1707 = vpop.permute.xlu0 %1706
  %1708 = vrot.lane.b32.xlu0 %v1678, 64
  %v1709 = vpop.permute.xlu0 %1708
  %1710 = vrot.lane.b32.xlu0 %v1679, 64
  %v1711 = vpop.permute.xlu0 %1710
  %v1720 = vmul.f32 %v1657, %v1697
  %v1721 = vmul.f32 %v1659, %v1699
  %v1722 = vmul.f32 %v1661, %v1701
  %v1723 = vmul.f32 %v1663, %v1703
  %v1724 = vmul.f32 %v1665, %v1705
  %v1725 = vmul.f32 %v1667, %v1707
  %v1726 = vmul.f32 %v1669, %v1709
  %v1727 = vmul.f32 %v1671, %v1711
  %1736 = vrot.lane.b32.xlu0 %v1720, 32
  %v1737 = vpop.permute.xlu0 %1736
  %1738 = vrot.lane.b32.xlu0 %v1721, 32
  %v1739 = vpop.permute.xlu0 %1738
  %1740 = vrot.lane.b32.xlu0 %v1722, 32
  %v1741 = vpop.permute.xlu0 %1740
  %1742 = vrot.lane.b32.xlu0 %v1723, 32
  %v1743 = vpop.permute.xlu0 %1742
  %1744 = vrot.lane.b32.xlu0 %v1724, 32
  %v1745 = vpop.permute.xlu0 %1744
  %1746 = vrot.lane.b32.xlu0 %v1725, 32
  %v1747 = vpop.permute.xlu0 %1746
  %1748 = vrot.lane.b32.xlu0 %v1726, 32
  %v1749 = vpop.permute.xlu0 %1748
  %1750 = vrot.lane.b32.xlu0 %v1727, 32
  %v1751 = vpop.permute.xlu0 %1750
  %v1760 = vadd.f32 %v1680, %v1737
  %v1761 = vadd.f32 %v1681, %v1739
  %v1762 = vadd.f32 %v1682, %v1741
  %v1763 = vadd.f32 %v1683, %v1743
  %v1764 = vadd.f32 %v1684, %v1745
  %v1765 = vadd.f32 %v1685, %v1747
  %v1766 = vadd.f32 %v1686, %v1749
  %v1767 = vadd.f32 %v1687, %v1751
  %v1768 = vtanh.pop %v1760
  %v1769 = vtanh.pop %v1761
  %v1770 = vtanh.pop %v1762
  %v1771 = vtanh.pop %v1763
  %v1772 = vtanh.pop %v1764
  %v1773 = vtanh.pop %v1765
  %v1774 = vtanh.pop %v1766
  %v1775 = vtanh.pop %v1767
  %1784 = vrot.lane.b32.xlu0 %v1768, 64
  %v1785 = vpop.permute.xlu0 %1784
  %1786 = vrot.lane.b32.xlu0 %v1769, 64
  %v1787 = vpop.permute.xlu0 %1786
  %1788 = vrot.lane.b32.xlu0 %v1770, 64
  %v1789 = vpop.permute.xlu0 %1788
  %1790 = vrot.lane.b32.xlu0 %v1771, 64
  %v1791 = vpop.permute.xlu0 %1790
  %1792 = vrot.lane.b32.xlu0 %v1772, 64
  %v1793 = vpop.permute.xlu0 %1792
  %1794 = vrot.lane.b32.xlu0 %v1773, 64
  %v1795 = vpop.permute.xlu0 %1794
  %1796 = vrot.lane.b32.xlu0 %v1774, 64
  %v1797 = vpop.permute.xlu0 %1796
  %1798 = vrot.lane.b32.xlu0 %v1775, 64
  %v1799 = vpop.permute.xlu0 %1798
  %v1808 = vmul.f32 %v1657, %v1785
  %v1809 = vmul.f32 %v1659, %v1787
  %v1810 = vmul.f32 %v1661, %v1789
  %v1811 = vmul.f32 %v1663, %v1791
  %v1812 = vmul.f32 %v1665, %v1793
  %v1813 = vmul.f32 %v1667, %v1795
  %v1814 = vmul.f32 %v1669, %v1797
  %v1815 = vmul.f32 %v1671, %v1799
  %v1816 = vpack.c.bf16 %v1809, %v1808
  %v1817 = vpack.c.bf16 %v1811, %v1810
  %v1818 = vpack.c.bf16 %v1813, %v1812
  %v1819 = vpack.c.bf16 %v1815, %v1814
  %v1820 = vld [vmem:[%s4] sm:$0xf]
  %v1821 = vld [vmem:[%s4 + $0x4] sm:$0xf]
  %v1822 = vld [vmem:[%s4 + $0x8] sm:$0xf]
  %v1823 = vld [vmem:[%s4 + $0xc] sm:$0xf]
  %v1824 = vld [vmem:[%s5] sm:$0x1]
  %v1826 = vlaneseq
  %v1827 = vshrl.u32 %v1826, 7
  %v1828 = vsub.s32 0, %v1827
  %v1829 = vrot.slane %v1824, %v1828
  %1835 = vrot.lane.b32.xlu0 %v1816, 32
  %v1836 = vpop.permute.xlu0 %1835
  %1837 = vrot.lane.b32.xlu0 %v1817, 32
  %v1838 = vpop.permute.xlu0 %1837
  %1839 = vrot.lane.b32.xlu0 %v1818, 32
  %v1840 = vpop.permute.xlu0 %1839
  %1841 = vrot.lane.b32.xlu0 %v1819, 32
  %v1842 = vpop.permute.xlu0 %1841
  %v1847 = vunpack.c.l.b16 %v1820
  %v1848 = vunpack.c.l.b16 %v1821
  %v1849 = vunpack.c.l.b16 %v1822
  %v1850 = vunpack.c.l.b16 %v1823
  %v1851 = vpack.c.b16 %v1848, %v1847
  %v1852 = vpack.c.b16 %v1850, %v1849
  %v1856 = vsel %vm369, %v1836, 0
  %v1859 = vsel %vm369, %v1838, 0
  %v1862 = vsel %vm369, %v1840, 0
  %v1865 = vsel %vm369, %v1842, 0
  %1867 = vmatprep.subr.bf16.mxu0 0
  %1868 = vmatpush1.bf16.msra.mxu0 0
  %1869 = vmatprep.subr.bf16.mxu0 0
  %1870 = vmatpush1.bf16.msra.mxu0 0
  %1871 = vmatprep.subr.bf16.mxu0 0
  %1872 = vmatpush1.bf16.msra.mxu0 0
  %1873 = vmatprep.subr.bf16.mxu0 0
  %1874 = vmatpush1.bf16.msra.mxu0 0
  %1875 = vmatprep.subr.bf16.mxu0 0
  %1876 = vmatpush1.bf16.msra.mxu0 0
  %1877 = vmatprep.subr.bf16.mxu0 0
  %1878 = vmatpush1.bf16.msra.mxu0 0
  %1879 = vmatprep.subr.bf16.mxu0 0
  %1880 = vmatpush1.bf16.msra.mxu0 %v1852
  %1881 = vmatprep.subr.bf16.mxu0 0
  %1882 = vmatpush1.bf16.msra.mxu0 %v1851
  %1883 = vmatprep.subr.bf16.mxu0 0
  %1884 = vmatpush2.bf16.msra.mxu0 0
  %1885 = vmatprep.subr.bf16.mxu0 0
  %1886 = vmatpush2.bf16.msra.mxu0 0
  %1887 = vmatprep.subr.bf16.mxu0 0
  %1888 = vmatpush2.bf16.msra.mxu0 0
  %1889 = vmatprep.subr.bf16.mxu0 0
  %1890 = vmatpush2.bf16.msra.mxu0 0
  %1891 = vmatprep.subr.bf16.mxu0 0
  %1892 = vmatpush2.bf16.msra.mxu0 0
  %1893 = vmatprep.subr.bf16.mxu0 0
  %1894 = vmatpush2.bf16.msra.mxu0 0
  %1895 = vmatprep.subr.bf16.mxu0 0
  %1896 = vmatpush2.bf16.msra.mxu0 0
  %1897 = vmatprep.subr.bf16.mxu0 0
  %1898 = vmatpush2.bf16.msra.mxu0 0
  %1899 = vmatprep.mubr.bf16.mxu0 0
  %1900 = vmatmul.mubr.bf16.gmra.mxu0 %v1856
  %v1901 = vpop.f32.mrf.mxu0
  %v1902 = vadd.f32 %v1829, %v1901
  %v1903 = vpop.f32.mrf.mxu0
  %v1904 = vpop.f32.mrf.mxu0
  %v1905 = vadd.f32 %v1829, %v1904
  %v1906 = vpop.f32.mrf.mxu0
  %1907 = vmatprep.mubr.bf16.mxu0 0
  %1908 = vmatmul.mubr.bf16.gmra.mxu0 %v1859
  %v1909 = vpop.f32.mrf.mxu0
  %v1910 = vadd.f32 %v1829, %v1909
  %v1911 = vpop.f32.mrf.mxu0
  %v1912 = vpop.f32.mrf.mxu0
  %v1913 = vadd.f32 %v1829, %v1912
  %v1914 = vpop.f32.mrf.mxu0
  %1915 = vmatprep.mubr.bf16.mxu0 0
  %1916 = vmatmul.mubr.bf16.gmra.mxu0 %v1862
  %v1917 = vpop.f32.mrf.mxu0
  %v1918 = vadd.f32 %v1829, %v1917
  %v1919 = vpop.f32.mrf.mxu0
  %v1920 = vpop.f32.mrf.mxu0
  %v1921 = vadd.f32 %v1829, %v1920
  %v1922 = vpop.f32.mrf.mxu0
  %1923 = vmatprep.mubr.bf16.mxu0 0
  %1924 = vmatmul.mubr.bf16.gmra.mxu0 %v1865
  %v1925 = vpop.f32.mrf.mxu0
  %v1926 = vadd.f32 %v1829, %v1925
  %v1927 = vpop.f32.mrf.mxu0
  %v1928 = vpop.f32.mrf.mxu0
  %v1929 = vadd.f32 %v1829, %v1928
  %v1930 = vpop.f32.mrf.mxu0
  %1931 = vdwg.mxu0
  %v1932 = vmax.f32 %v1902, 0.0
  %v1933 = vmax.f32 %v1905, 0.0
  %v1934 = vmax.f32 %v1910, 0.0
  %v1935 = vmax.f32 %v1913, 0.0
  %v1936 = vmax.f32 %v1918, 0.0
  %v1937 = vmax.f32 %v1921, 0.0
  %v1938 = vmax.f32 %v1926, 0.0
  %v1939 = vmax.f32 %v1929, 0.0
  %v1940 = vadd.f32 %v1932, %v1936
  %v1941 = vadd.f32 %v1933, %v1937
  %v1942 = vadd.f32 %v1934, %v1938
  %v1943 = vadd.f32 %v1935, %v1939
  %v1944 = vmul.f32 %v1940, 0.5
  %v1945 = vmul.f32 %v1941, 0.5
  %v1946 = vmul.f32 %v1942, 0.5
  %v1947 = vmul.f32 %v1943, 0.5
  %v1948 = vsel %vm369, %v1944, 0.0
  %v1949 = vsel %vm369, %v1945, 0.0
  %v1950 = vadd.f32 %v1948, %v1949
  %v1951 = vsel %vm369, %v1946, 0.0
  %v1952 = vadd.f32 %v1950, %v1951
  %v1953 = vsel %vm369, %v1947, 0.0
  %v1954 = vadd.f32 %v1952, %v1953
  %v1955 = vrot.slane %v1954, 4
  %v1956 = vadd.f32 %v1954, %v1955
  %v1957 = vrot.slane %v1956, 2
  %v1958 = vadd.f32 %v1956, %v1957
  %v1959 = vrot.slane %v1958, 1
  %v1960 = vadd.f32 %v1958, %v1959
  %v1961 = vrcp.pop 32.0
  %v1962 = vmul.f32 %v1960, %v1961
  %v1963 = vsub.f32 %v1944, %v1962
  %v1964 = vsub.f32 %v1945, %v1962
  %v1965 = vsub.f32 %v1946, %v1962
  %v1966 = vsub.f32 %v1947, %v1962
  %v1967 = vmul.f32 %v1963, %v1963
  %v1968 = vmul.f32 %v1964, %v1964
  %v1969 = vmul.f32 %v1965, %v1965
  %v1970 = vmul.f32 %v1966, %v1966
  %v1971 = vsel %vm369, %v1967, 0.0
  %v1972 = vsel %vm369, %v1968, 0.0
  %v1973 = vadd.f32 %v1971, %v1972
  %v1974 = vsel %vm369, %v1969, 0.0
  %v1975 = vadd.f32 %v1973, %v1974
  %v1976 = vsel %vm369, %v1970, 0.0
  %v1977 = vadd.f32 %v1975, %v1976
  %v1978 = vrot.slane %v1977, 4
  %v1979 = vadd.f32 %v1977, %v1978
  %v1980 = vrot.slane %v1979, 2
  %v1981 = vadd.f32 %v1979, %v1980
  %v1982 = vrot.slane %v1981, 1
  %v1983 = vadd.f32 %v1981, %v1982
  %v1984 = vmul.f32 %v1983, %v1961
  %v1985 = vadd.f32 %v1984, 1e-05
  %v1986 = vrsqrt.pop %v1985
  %v1987 = vmul.f32 %v1963, %v1986
  %v1988 = vmul.f32 %v1964, %v1986
  %v1989 = vmul.f32 %v1965, %v1986
  %v1990 = vmul.f32 %v1966, %v1986
  %v1991 = vld [vmem:[%s6] sm:$0x1]
  %v1993 = vlaneseq
  %v1994 = vshrl.u32 %v1993, 7
  %v1995 = vsub.s32 0, %v1994
  %v1996 = vrot.slane %v1991, %v1995
  %v1998 = vmul.f32 %v1987, %v1996
  %v1999 = vmul.f32 %v1988, %v1996
  %v2000 = vmul.f32 %v1989, %v1996
  %v2001 = vmul.f32 %v1990, %v1996
  %v2002 = vld [vmem:[%s7] sm:$0x1]
  %v2004 = vlaneseq
  %v2005 = vshrl.u32 %v2004, 7
  %v2006 = vsub.s32 0, %v2005
  %v2007 = vrot.slane %v2002, %v2006
  %v2009 = vadd.f32 %v1998, %v2007
  %v2010 = vadd.f32 %v1999, %v2007
  %v2011 = vadd.f32 %v2000, %v2007
  %v2012 = vadd.f32 %v2001, %v2007
  %2013 = vst.msk [vmem:[%s8] sm:$0xff] %vm369, %v2009
  %2014 = vst.msk [vmem:[%s8 + $0x8] sm:$0xff] %vm369, %v2010
  %2015 = vst.msk [vmem:[%s8 + $0x10] sm:$0xff] %vm369, %v2011
  %2016 = vst.msk [vmem:[%s8 + $0x18] sm:$0xff] %vm369, %v2012
  // Predicated region
  $region34: #{representation_forward.2} parent=0 // pred_check
    _
  $region35: #{representation_forward.2} parent=0 // pred_check_branch
    %2018 = sbr.rel (0) target = $region37
  $region36: #{representation_forward.2} parent=0 // pred_region
    _
  $region37: #{representation_forward.2} parent=0 // pred_fallthru
    _
  // Predicated region
  $region38: #{representation_forward.2} parent=0 // pred_check
    _
  $region39: #{representation_forward.2} parent=0 // pred_check_branch
    %2020 = sbr.rel (0) target = $region41
  $region40: #{representation_forward.2} parent=0 // pred_region
    _
  $region41: #{representation_forward.2} parent=0 // pred_fallthru
    _

</llo_original>
